<compile_context>
chip_gen: v7x
topology: tpu7x:2x2x1
jax: 0.10.0
libtpu: 0.0.40
codegen_flags: <defaults>
</compile_context>

<pallas_src>
import functools
import math

import jax
import jax.numpy as jnp
import numpy as np
from jax import lax
from jax.experimental import pallas as pl
from jax.experimental.pallas import tpu as pltpu


def _cra_kernel(xp_ref, x_ref, srw_ref, srb_ref, g_ref, b_ref,
                kw_ref, vw_ref, pw_ref, qw2_ref, pb_ref,
                segs_ref, segb_ref, cmask_ref, tile_ref, tilet_ref,
                pmatl_ref, aconst_ref,
                o_ref,
                a_ref, wft_ref, chi_ref, clo_ref,
                *, num_heads, eps):
    f32 = jnp.float32
    H = num_heads

    # ---- Once per batch element (first token tile): pooled-side precompute. ----
    @pl.when(pl.program_id(1) == 0)
    def _pooled_precompute():
        xpT = xp_ref[0]                                                    # (C, M)
        # sr 1x1 conv == per-token linear over channels (channels-leading).
        x_srT = jnp.dot(srw_ref[...], xpT,
                        preferred_element_type=f32) + srb_ref[...]         # (C, M)
        # LayerNorm over channels (axis 0), eps=1e-5, biased variance; exact GELU.
        mu = jnp.mean(x_srT, axis=0, keepdims=True)                        # (1, M)
        var = jnp.mean((x_srT - mu) ** 2, axis=0, keepdims=True)
        x_nT = (x_srT - mu) * lax.rsqrt(var + eps) * g_ref[...] + b_ref[...]
        x_gT = 0.5 * x_nT * (1.0 + lax.erf(x_nT * 0.7071067811865476))

        kT = jnp.dot(kw_ref[...], x_gT, preferred_element_type=f32)        # (H, M)
        vT = jnp.dot(vw_ref[...], x_gT, preferred_element_type=f32)        # (C, M)

        # Stabilizer columns: rows 0..H-1 of rhs stay q, rows H.. become
        # smax = max_m q*k = q*kmax (q>=0) else q*kmin (rank-1 exact row max).
        ones_h = jnp.ones((H, 1), f32)
        chi_ref[0:H, :] = ones_h
        clo_ref[0:H, :] = ones_h
        chi_ref[H:2 * H, :] = jnp.max(kT, axis=1, keepdims=True)
        clo_ref[H:2 * H, :] = jnp.min(kT, axis=1, keepdims=True)

        # A = [k_seg | -seg_s] so that A @ [q ; smax] gives the shifted logits
        # k[m,h]*q[h,n] - smax[h,n] in ONE matmul per token tile.
        segs = segs_ref[...].astype(f32)                                   # (HM, H)
        k_rep = lax.dot_general(tile_ref[...].astype(f32), kT,             # (HM, H)
                                dimension_numbers=(((1,), (1,)), ((), ())),
                                preferred_element_type=f32)
        k_seg = segs * k_rep
        a_ref[...] = (jnp.dot(k_seg, pmatl_ref[...].astype(f32),
                              preferred_element_type=f32)
                      + aconst_ref[...].astype(f32))

        # Fused value + output-projection weight, channels-leading:
        #   wfT[:, h*M+m] = proj_h^T @ v_h[m]   (no per-head loop, lane-dense).
        v_exp = jnp.dot(vT, tilet_ref[...].astype(f32),
                        preferred_element_type=f32) * cmask_ref[...].astype(f32)
        wft_ref[...] = jnp.dot(pw_ref[...], v_exp, preferred_element_type=f32)

    # ---- Per token tile: rank-1 attention + fused projection, all (.., TN). ----
    xT = x_ref[0]                                                          # (C, TN)
    qq = jnp.dot(qw2_ref[...], xT, preferred_element_type=f32)             # (2H, TN), both halves = q
    rhs = jnp.where(qq >= 0.0, qq * chi_ref[...], qq * clo_ref[...])       # [q ; smax]
    logits = jnp.dot(a_ref[...], rhs, preferred_element_type=f32)          # (HM, TN), shifted
    p = jnp.exp(logits)
    l = jnp.dot(segb_ref[...].astype(f32), p, preferred_element_type=f32)  # (H, TN) per-head sums
    inv_l = pl.reciprocal(l, approx=True)
    attn = p * jnp.dot(segs_ref[...].astype(f32), inv_l,
                       preferred_element_type=f32)                         # (HM, TN)
    # attn_drop / proj_drop (p=0) are identities.
    yT = jnp.dot(wft_ref[...], attn, preferred_element_type=f32) + pb_ref[...]
    o_ref[0] = yT.astype(o_ref.dtype)                                      # lane-dense store


def channel_reduction_attention(x_img, params, *, num_heads=8, pool_ratio=2,
                                token_tile=256):
    B, C, H_, W_ = x_img.shape
    N = H_ * W_
    hp, wp = H_ // pool_ratio, W_ // pool_ratio
    M = hp * wp
    dh = C // num_heads
    HM = num_heads * M
    H2 = 2 * num_heads
    scale = dh ** (-0.5)
    f32 = jnp.float32
    bf16 = jnp.bfloat16

    tn = min(token_tile, N)
    assert C % num_heads == 0
    assert N % tn == 0 and (tn % 128 == 0 or tn == N), \
        "token tile must divide N and keep the lane dim dense (multiple of 128)"

    # NCHW consumed directly: both reshapes are trailing-dim merges (free).
    x_flat = x_img.reshape(B, C, N)
    xp_flat = x_img.reshape(B, C, hp, pool_ratio, wp, pool_ratio).mean(axis=(3, 5)) \
                   .reshape(B, C, M)                               # AvgPool2d(p, p)

    # Channel-major weights (tiny, resident in VMEM across the whole grid).
    srw_t = params["srw"].T.astype(f32)                 # (C_out, C_in)
    srb_c = params["srb"].reshape(C, 1).astype(f32)
    g_c = params["gamma"].reshape(C, 1).astype(f32)
    b_c = params["beta"].reshape(C, 1).astype(f32)
    kw_t = params["kw"].T.astype(f32)                   # (H, C)
    vw_t = params["vw"].T.astype(f32)                   # (C, C)
    pw_t = params["pw"].T.astype(f32)                   # (C, C)
    pb_c = params["pb"].reshape(C, 1).astype(f32)
    # softmax scale folded into q's weight; stacked twice so one matmul yields [q; q].
    qw_ts = (params["qw"] * f32(scale)).T.astype(f32)   # (H, C)
    qw2 = jnp.concatenate([qw_ts, qw_ts], axis=0)       # (2H, C)

    # 0/1 indicator constants for the head-major flat axis r = h*M + m (bf16: exact).
    r_head = jnp.arange(HM, dtype=jnp.int32) // M
    r_tok = jnp.arange(HM, dtype=jnp.int32) % M
    segs_f = (r_head[:, None] == jnp.arange(num_heads)[None, :]).astype(f32)    # (HM, H)
    seg_s = segs_f.astype(bf16)
    seg_b = segs_f.T.astype(bf16)                                                # (H, HM)
    cmask_t = ((jnp.arange(C)[:, None] // dh) == r_head[None, :]).astype(bf16)   # (C, HM)
    tile_mat = (r_tok[:, None] == jnp.arange(M)[None, :]).astype(bf16)           # (HM, M)
    tile_t = jnp.transpose(tile_mat)                                             # (M, HM)
    pmatl = jnp.concatenate([jnp.eye(num_heads, dtype=f32),
                             jnp.zeros((num_heads, num_heads), f32)],
                            axis=1).astype(bf16)                                  # (H, 2H) = [I | 0]
    a_const = jnp.concatenate([jnp.zeros((HM, num_heads), f32), -segs_f],
                              axis=1).astype(bf16)                                # (HM, 2H) = [0 | -seg_s]

    def resident(shape):
        return pl.BlockSpec(shape, lambda b, n: (0,) * len(shape))

    # Advisory cost hint so XLA schedules the pooling glue around the custom call.
    flops = int(2 * B * N * (H2 * C + HM * H2 + 2 * num_heads * HM + C * HM)
                + 2 * B * (2 * C * C * M + num_heads * C * M + HM * M * num_heads
                           + HM * num_heads * H2 + C * M * HM + C * C * HM))
    transcendentals = int(B * N * HM + B * M * C + B * N * num_heads)
    bytes_accessed = int(4 * (2 * B * C * N + B * C * M + 4 * C * C + 3 * num_heads * C + 5 * C)
                         + 2 * (HM * (3 * num_heads + M + H2) + M * HM + C * HM))

    kern = functools.partial(_cra_kernel, num_heads=num_heads, eps=1e-5)

    # VMEM: x/out tiles double-buffered (~0.3 MiB), weights/indicators < 0.5 MiB,
    # scratch (A, wfT, chi, clo) < 0.2 MiB, (HM, TN) slabs ~1 MiB -- far under the
    # 32 MiB scoped limit on every generation (re-derive if tn or C are scaled up).
    out_flat = pl.pallas_call(
        kern,
        out_shape=jax.ShapeDtypeStruct((B, C, N), x_img.dtype),
        grid_spec=pltpu.PrefetchScalarGridSpec(
            num_scalar_prefetch=0,
            grid=(B, N // tn),
            in_specs=[
                pl.BlockSpec((1, C, M), lambda b, n: (b, 0, 0)),     # x_pool (channels-leading)
                pl.BlockSpec((1, C, tn), lambda b, n: (b, 0, n)),    # x tile (channels-leading)
                resident((C, C)),            # sr 1x1 conv weight (out, in)
                resident((C, 1)),            # sr bias
                resident((C, 1)),            # LN gamma
                resident((C, 1)),            # LN beta
                resident((num_heads, C)),    # k weight (head-major)
                resident((C, C)),            # v weight (out, in)
                resident((C, C)),            # proj weight transposed
                resident((H2, C)),           # scaled q weight stacked twice
                resident((C, 1)),            # proj bias
                resident((HM, num_heads)),   # seg_s indicator
                resident((num_heads, HM)),   # seg_b indicator
                resident((C, HM)),           # per-head channel mask
                resident((HM, M)),           # token tiling indicator
                resident((M, HM)),           # token tiling indicator (transposed)
                resident((num_heads, H2)),   # [I | 0]
                resident((HM, H2)),          # [0 | -seg_s]
            ],
            out_specs=pl.BlockSpec((1, C, tn), lambda b, n: (b, 0, n)),
            scratch_shapes=[
                pltpu.VMEM((HM, H2), f32),   # A = [k_seg | -seg_s]
                pltpu.VMEM((C, HM), f32),    # fused v @ proj (channels-leading)
                pltpu.VMEM((H2, 1), f32),    # chi = [1; kmax]
                pltpu.VMEM((H2, 1), f32),    # clo = [1; kmin]
            ]),
        compiler_params=pltpu.CompilerParams(
            dimension_semantics=("parallel", "arbitrary"),
            vmem_limit_bytes=32 * 1024 * 1024),
        cost_estimate=pl.CostEstimate(flops=flops, transcendentals=transcendentals,
                                      bytes_accessed=bytes_accessed),
    )(xp_flat, x_flat, srw_t, srb_c, g_c, b_c, kw_t, vw_t, pw_t, qw2, pb_c,
      seg_s, seg_b, cmask_t, tile_mat, tile_t, pmatl, a_const)

    return out_flat.reshape(B, C, H_, W_)


def ref_forward(x_img, p, *, num_heads=8, pool_ratio=2):
    """Pure-JAX reference mirroring the PyTorch forward (f32, HIGHEST matmuls)."""
    hi = lax.Precision.HIGHEST
    B, C, H_, W_ = x_img.shape
    N = H_ * W_
    hp, wp = H_ // pool_ratio, W_ // pool_ratio
    M = hp * wp
    dh = C // num_heads
    scale = dh ** (-0.5)

    x = jnp.transpose(x_img.reshape(B, C, N), (0, 2, 1))                      # (B,N,C)
    xp = x_img.reshape(B, C, hp, pool_ratio, wp, pool_ratio).mean(axis=(3, 5))
    xp = jnp.transpose(xp.reshape(B, C, M), (0, 2, 1))                        # (B,M,C)

    x_sr = jnp.einsum("bmc,cd->bmd", xp, p["srw"], precision=hi) + p["srb"]
    mu = x_sr.mean(-1, keepdims=True)
    var = ((x_sr - mu) ** 2).mean(-1, keepdims=True)
    x_n = (x_sr - mu) * lax.rsqrt(var + 1e-5) * p["gamma"] + p["beta"]
    x_g = 0.5 * x_n * (1.0 + lax.erf(x_n * 0.7071067811865476))

    q = jnp.einsum("bnc,ch->bnh", x, p["qw"], precision=hi)
    k = jnp.einsum("bmc,ch->bmh", x_g, p["kw"], precision=hi)
    v = jnp.einsum("bmc,cd->bmd", x_g, p["vw"], precision=hi)

    s = jnp.einsum("bnh,bmh->bhnm", q, k) * scale
    attn = jax.nn.softmax(s, axis=-1)
    vr = jnp.transpose(v.reshape(B, M, num_heads, dh), (0, 2, 1, 3))          # (B,H,M,dh)
    o = jnp.einsum("bhnm,bhmd->bnhd", attn, vr, precision=hi).reshape(B, N, C)
    y = jnp.einsum("bnc,cd->bnd", o, p["pw"], precision=hi) + p["pb"]
    return jnp.transpose(y, (0, 2, 1)).reshape(B, C, H_, W_)


if __name__ == "__main__":
    B, C, H_, W_ = 2, 32, 16, 16          # dim1 = 32, divisible by num_heads = 8
    num_heads, pool_ratio = 8, 2

    key = jax.random.PRNGKey(0)
    ks = jax.random.split(key, 6)
    x_img = jax.random.normal(ks[0], (B, C, H_, W_), jnp.float32)

    # Deterministic synthetic weights (shapes from __init__).
    # TODO(synk): trunc_normal_(std=0.02) approximated by plain normal * 0.02.
    params = dict(
        qw=jax.random.normal(ks[1], (C, num_heads), jnp.float32) * 0.02,  # q: Linear(C->H), no bias
        kw=jax.random.normal(ks[2], (C, num_heads), jnp.float32) * 0.02,  # k: Linear(C->H), no bias
        vw=jax.random.normal(ks[3], (C, C), jnp.float32) * 0.02,          # v: Linear(C->C), no bias
        srw=jax.random.normal(ks[4], (C, C), jnp.float32) * math.sqrt(2.0 / C),  # sr: Conv2d 1x1
        srb=jnp.zeros((1, C), jnp.float32),
        gamma=jnp.ones((1, C), jnp.float32),                              # LayerNorm weight
        beta=jnp.zeros((1, C), jnp.float32),                              # LayerNorm bias
        pw=jax.random.normal(ks[5], (C, C), jnp.float32) * 0.02,          # proj: Linear(C->C)
        pb=jnp.zeros((1, C), jnp.float32),
    )

    out = channel_reduction_attention(x_img, params, num_heads=num_heads,
                                      pool_ratio=pool_ratio, token_tile=256)
    out = jax.block_until_ready(out)
    assert out.shape == (B, C, H_, W_)

    ref = ref_forward(x_img, params, num_heads=num_heads, pool_ratio=pool_ratio)
    np.testing.assert_allclose(np.asarray(out), np.asarray(ref), atol=2e-3, rtol=2e-3)
    print("KERNEL_OK")
</pallas_src>

<mosaic_0001>
module attributes {stable_mosaic.version = 11 : i64} {
  func.func @_cra_kernel(%arg0: i32, %arg1: i32, %arg2: memref<1x32x64xf32, #tpu.memory_space<vmem>>, %arg3: memref<1x32x256xf32, #tpu.memory_space<vmem>>, %arg4: memref<32x32xf32, #tpu.memory_space<vmem>>, %arg5: memref<32x1xf32, #tpu.memory_space<vmem>>, %arg6: memref<32x1xf32, #tpu.memory_space<vmem>>, %arg7: memref<32x1xf32, #tpu.memory_space<vmem>>, %arg8: memref<8x32xf32, #tpu.memory_space<vmem>>, %arg9: memref<32x32xf32, #tpu.memory_space<vmem>>, %arg10: memref<32x32xf32, #tpu.memory_space<vmem>>, %arg11: memref<16x32xf32, #tpu.memory_space<vmem>>, %arg12: memref<32x1xf32, #tpu.memory_space<vmem>>, %arg13: memref<512x8xbf16, #tpu.memory_space<vmem>>, %arg14: memref<8x512xbf16, #tpu.memory_space<vmem>>, %arg15: memref<32x512xbf16, #tpu.memory_space<vmem>>, %arg16: memref<512x64xbf16, #tpu.memory_space<vmem>>, %arg17: memref<64x512xbf16, #tpu.memory_space<vmem>>, %arg18: memref<8x16xbf16, #tpu.memory_space<vmem>>, %arg19: memref<512x16xbf16, #tpu.memory_space<vmem>>, %arg20: memref<1x32x256xf32, #tpu.memory_space<vmem>>, %arg21: memref<512x16xf32, #tpu.memory_space<vmem>>, %arg22: memref<32x512xf32, #tpu.memory_space<vmem>>, %arg23: memref<16x1xf32, #tpu.memory_space<vmem>>, %arg24: memref<16x1xf32, #tpu.memory_space<vmem>>) attributes {dimension_semantics = [#tpu.dimension_semantics<parallel>, #tpu.dimension_semantics<arbitrary>], iteration_bounds = array<i64: 2, 1>, scalar_prefetch = 0 : i64, scratch_operands = 4 : i64, tpu.core_type = #tpu.core_type<tc>, window_params = [{transform_indices = @transform_0, window_bounds = array<i64: 1, 32, 64>}, {transform_indices = @transform_1, window_bounds = array<i64: 1, 32, 256>}, {pipeline_mode = #tpu.pipeline_mode<synchronous>, transform_indices = @transform_2, window_bounds = array<i64: 32, 32>}, {pipeline_mode = #tpu.pipeline_mode<synchronous>, transform_indices = @transform_3, window_bounds = array<i64: 32, 1>}, {pipeline_mode = #tpu.pipeline_mode<synchronous>, transform_indices = @transform_4, window_bounds = array<i64: 32, 1>}, {pipeline_mode = #tpu.pipeline_mode<synchronous>, transform_indices = @transform_5, window_bounds = array<i64: 32, 1>}, {pipeline_mode = #tpu.pipeline_mode<synchronous>, transform_indices = @transform_6, window_bounds = array<i64: 8, 32>}, {pipeline_mode = #tpu.pipeline_mode<synchronous>, transform_indices = @transform_7, window_bounds = array<i64: 32, 32>}, {pipeline_mode = #tpu.pipeline_mode<synchronous>, transform_indices = @transform_8, window_bounds = array<i64: 32, 32>}, {pipeline_mode = #tpu.pipeline_mode<synchronous>, transform_indices = @transform_9, window_bounds = array<i64: 16, 32>}, {pipeline_mode = #tpu.pipeline_mode<synchronous>, transform_indices = @transform_10, window_bounds = array<i64: 32, 1>}, {pipeline_mode = #tpu.pipeline_mode<synchronous>, transform_indices = @transform_11, window_bounds = array<i64: 512, 8>}, {pipeline_mode = #tpu.pipeline_mode<synchronous>, transform_indices = @transform_12, window_bounds = array<i64: 8, 512>}, {pipeline_mode = #tpu.pipeline_mode<synchronous>, transform_indices = @transform_13, window_bounds = array<i64: 32, 512>}, {pipeline_mode = #tpu.pipeline_mode<synchronous>, transform_indices = @transform_14, window_bounds = array<i64: 512, 64>}, {pipeline_mode = #tpu.pipeline_mode<synchronous>, transform_indices = @transform_15, window_bounds = array<i64: 64, 512>}, {pipeline_mode = #tpu.pipeline_mode<synchronous>, transform_indices = @transform_16, window_bounds = array<i64: 8, 16>}, {pipeline_mode = #tpu.pipeline_mode<synchronous>, transform_indices = @transform_17, window_bounds = array<i64: 512, 16>}, {transform_indices = @transform_18, window_bounds = array<i64: 1, 32, 256>}]} {
    %c0_i32 = arith.constant 0 : i32
    %0 = arith.cmpi eq, %arg1, %c0_i32 : i32
    %1 = arith.extui %0 : i1 to i32
    %c0_i32_0 = arith.constant 0 : i32
    %2 = arith.cmpi ne, %1, %c0_i32_0 : i32
    scf.if %2 {
      %c0_27 = arith.constant 0 : index
      %c0_28 = arith.constant 0 : index
      %c0_29 = arith.constant 0 : index
      %35 = vector.load %arg2[%c0_27, %c0_28, %c0_29] : memref<1x32x64xf32, #tpu.memory_space<vmem>>, vector<1x32x64xf32>
      %36 = vector.shape_cast %35 : vector<1x32x64xf32> to vector<32x64xf32>
      %c0_30 = arith.constant 0 : index
      %c0_31 = arith.constant 0 : index
      %37 = vector.load %arg4[%c0_30, %c0_31] : memref<32x32xf32, #tpu.memory_space<vmem>>, vector<32x32xf32>
      %cst_32 = arith.constant dense<0.000000e+00> : vector<32x64xf32>
      %38 = tpu.matmul %37, %36, %cst_32 {dimension_numbers = #tpu.dot_dimension_numbers<[1], [0], [0], [1], [0, 0, 1, 1], [], []>} : vector<32x32xf32>, vector<32x64xf32>, vector<32x64xf32> -> vector<32x64xf32>
      %c0_33 = arith.constant 0 : index
      %c0_34 = arith.constant 0 : index
      %39 = vector.load %arg5[%c0_33, %c0_34] : memref<32x1xf32, #tpu.memory_space<vmem>>, vector<32x1xf32>
      %40 = vector.broadcast %39 : vector<32x1xf32> to vector<32x64xf32>
      %41 = arith.addf %38, %40 : vector<32x64xf32>
      %cst_35 = arith.constant dense<0.000000e+00> : vector<64xf32>
      %42 = vector.multi_reduction <add>, %41, %cst_35 [0] : vector<32x64xf32> to vector<64xf32>
      %43 = vector.shape_cast %42 : vector<64xf32> to vector<1x64xf32>
      %cst_36 = arith.constant 3.200000e+01 : f32
      %44 = vector.broadcast %cst_36 : f32 to vector<1x64xf32>
      %45 = arith.divf %43, %44 : vector<1x64xf32>
      %46 = vector.broadcast %45 : vector<1x64xf32> to vector<32x64xf32>
      %47 = arith.subf %41, %46 : vector<32x64xf32>
      %48 = arith.mulf %47, %47 : vector<32x64xf32>
      %cst_37 = arith.constant dense<0.000000e+00> : vector<64xf32>
      %49 = vector.multi_reduction <add>, %48, %cst_37 [0] : vector<32x64xf32> to vector<64xf32>
      %50 = vector.shape_cast %49 : vector<64xf32> to vector<1x64xf32>
      %cst_38 = arith.constant 3.200000e+01 : f32
      %51 = vector.broadcast %cst_38 : f32 to vector<1x64xf32>
      %52 = arith.divf %50, %51 : vector<1x64xf32>
      %53 = vector.broadcast %45 : vector<1x64xf32> to vector<32x64xf32>
      %54 = arith.subf %41, %53 : vector<32x64xf32>
      %cst_39 = arith.constant 9.99999974E-6 : f32
      %55 = vector.broadcast %cst_39 : f32 to vector<1x64xf32>
      %56 = arith.addf %52, %55 : vector<1x64xf32>
      %57 = math.rsqrt %56 : vector<1x64xf32>
      %58 = vector.broadcast %57 : vector<1x64xf32> to vector<32x64xf32>
      %59 = arith.mulf %54, %58 : vector<32x64xf32>
      %c0_40 = arith.constant 0 : index
      %c0_41 = arith.constant 0 : index
      %60 = vector.load %arg6[%c0_40, %c0_41] : memref<32x1xf32, #tpu.memory_space<vmem>>, vector<32x1xf32>
      %61 = vector.broadcast %60 : vector<32x1xf32> to vector<32x64xf32>
      %62 = arith.mulf %59, %61 : vector<32x64xf32>
      %c0_42 = arith.constant 0 : index
      %c0_43 = arith.constant 0 : index
      %63 = vector.load %arg7[%c0_42, %c0_43] : memref<32x1xf32, #tpu.memory_space<vmem>>, vector<32x1xf32>
      %64 = vector.broadcast %63 : vector<32x1xf32> to vector<32x64xf32>
      %65 = arith.addf %62, %64 : vector<32x64xf32>
      %cst_44 = arith.constant 5.000000e-01 : f32
      %66 = vector.broadcast %cst_44 : f32 to vector<32x64xf32>
      %67 = arith.mulf %66, %65 : vector<32x64xf32>
      %cst_45 = arith.constant 0.707106769 : f32
      %68 = vector.broadcast %cst_45 : f32 to vector<32x64xf32>
      %69 = arith.mulf %65, %68 : vector<32x64xf32>
      %70 = math.erf %69 : vector<32x64xf32>
      %cst_46 = arith.constant 1.000000e+00 : f32
      %71 = vector.broadcast %cst_46 : f32 to vector<32x64xf32>
      %72 = arith.addf %71, %70 : vector<32x64xf32>
      %73 = arith.mulf %67, %72 : vector<32x64xf32>
      %c0_47 = arith.constant 0 : index
      %c0_48 = arith.constant 0 : index
      %74 = vector.load %arg8[%c0_47, %c0_48] : memref<8x32xf32, #tpu.memory_space<vmem>>, vector<8x32xf32>
      %cst_49 = arith.constant dense<0.000000e+00> : vector<8x64xf32>
      %75 = tpu.matmul %74, %73, %cst_49 {dimension_numbers = #tpu.dot_dimension_numbers<[1], [0], [0], [1], [0, 0, 1, 1], [], []>} : vector<8x32xf32>, vector<32x64xf32>, vector<8x64xf32> -> vector<8x64xf32>
      %c0_50 = arith.constant 0 : index
      %c0_51 = arith.constant 0 : index
      %76 = vector.load %arg9[%c0_50, %c0_51] : memref<32x32xf32, #tpu.memory_space<vmem>>, vector<32x32xf32>
      %cst_52 = arith.constant dense<0.000000e+00> : vector<32x64xf32>
      %77 = tpu.matmul %76, %73, %cst_52 {dimension_numbers = #tpu.dot_dimension_numbers<[1], [0], [0], [1], [0, 0, 1, 1], [], []>} : vector<32x32xf32>, vector<32x64xf32>, vector<32x64xf32> -> vector<32x64xf32>
      %cst_53 = arith.constant 1.000000e+00 : f32
      %78 = vector.broadcast %cst_53 : f32 to vector<8x1xf32>
      %c0_54 = arith.constant 0 : index
      %c0_55 = arith.constant 0 : index
      %79 = vector.load %arg23[%c0_54, %c0_55] : memref<16x1xf32, #tpu.memory_space<vmem>>, vector<8x1xf32>
      tpu.vector_store %arg23[%c0_54, %c0_55], %78 {strides = array<i32>} : memref<16x1xf32, #tpu.memory_space<vmem>>, vector<8x1xf32>,
      %c0_56 = arith.constant 0 : index
      %c0_57 = arith.constant 0 : index
      %80 = vector.load %arg24[%c0_56, %c0_57] : memref<16x1xf32, #tpu.memory_space<vmem>>, vector<8x1xf32>
      tpu.vector_store %arg24[%c0_56, %c0_57], %78 {strides = array<i32>} : memref<16x1xf32, #tpu.memory_space<vmem>>, vector<8x1xf32>,
      %cst_58 = arith.constant dense<0xFF800000> : vector<8xf32>
      %81 = vector.multi_reduction <maximumf>, %75, %cst_58 [1] : vector<8x64xf32> to vector<8xf32>
      %82 = vector.shape_cast %81 : vector<8xf32> to vector<8x1xf32>
      %c8 = arith.constant 8 : index
      %c0_59 = arith.constant 0 : index
      %83 = vector.load %arg23[%c8, %c0_59] : memref<16x1xf32, #tpu.memory_space<vmem>>, vector<8x1xf32>
      tpu.vector_store %arg23[%c8, %c0_59], %82 {strides = array<i32>} : memref<16x1xf32, #tpu.memory_space<vmem>>, vector<8x1xf32>,
      %cst_60 = arith.constant dense<0x7F800000> : vector<8xf32>
      %84 = vector.multi_reduction <minimumf>, %75, %cst_60 [1] : vector<8x64xf32> to vector<8xf32>
      %85 = vector.shape_cast %84 : vector<8xf32> to vector<8x1xf32>
      %c8_61 = arith.constant 8 : index
      %c0_62 = arith.constant 0 : index
      %86 = vector.load %arg24[%c8_61, %c0_62] : memref<16x1xf32, #tpu.memory_space<vmem>>, vector<8x1xf32>
      tpu.vector_store %arg24[%c8_61, %c0_62], %85 {strides = array<i32>} : memref<16x1xf32, #tpu.memory_space<vmem>>, vector<8x1xf32>,
      %c0_63 = arith.constant 0 : index
      %c0_64 = arith.constant 0 : index
      %87 = vector.load %arg13[%c0_63, %c0_64] : memref<512x8xbf16, #tpu.memory_space<vmem>>, vector<512x8xbf16>
      %88 = arith.extf %87 : vector<512x8xbf16> to vector<512x8xf32>
      %c0_65 = arith.constant 0 : index
      %c0_66 = arith.constant 0 : index
      %89 = vector.load %arg16[%c0_65, %c0_66] : memref<512x64xbf16, #tpu.memory_space<vmem>>, vector<512x64xbf16>
      %90 = arith.extf %89 : vector<512x64xbf16> to vector<512x64xf32>
      %cst_67 = arith.constant dense<0.000000e+00> : vector<512x8xf32>
      %91 = tpu.matmul %90, %75, %cst_67 {dimension_numbers = #tpu.dot_dimension_numbers<[1], [1], [0], [0], [0, 0, 1, 0], [], []>} : vector<512x64xf32>, vector<8x64xf32>, vector<512x8xf32> -> vector<512x8xf32>
      %92 = arith.mulf %88, %91 : vector<512x8xf32>
      %c0_68 = arith.constant 0 : index
      %c0_69 = arith.constant 0 : index
      %93 = vector.load %arg18[%c0_68, %c0_69] : memref<8x16xbf16, #tpu.memory_space<vmem>>, vector<8x16xbf16>
      %94 = arith.extf %93 : vector<8x16xbf16> to vector<8x16xf32>
      %cst_70 = arith.constant dense<0.000000e+00> : vector<512x16xf32>
      %95 = tpu.matmul %92, %94, %cst_70 {dimension_numbers = #tpu.dot_dimension_numbers<[1], [0], [0], [1], [0, 0, 1, 1], [], []>} : vector<512x8xf32>, vector<8x16xf32>, vector<512x16xf32> -> vector<512x16xf32>
      %c0_71 = arith.constant 0 : index
      %c0_72 = arith.constant 0 : index
      %96 = vector.load %arg19[%c0_71, %c0_72] : memref<512x16xbf16, #tpu.memory_space<vmem>>, vector<512x16xbf16>
      %97 = arith.extf %96 : vector<512x16xbf16> to vector<512x16xf32>
      %98 = arith.addf %95, %97 : vector<512x16xf32>
      %c0_73 = arith.constant 0 : index
      %c0_74 = arith.constant 0 : index
      %99 = vector.load %arg21[%c0_73, %c0_74] : memref<512x16xf32, #tpu.memory_space<vmem>>, vector<512x16xf32>
      tpu.vector_store %arg21[%c0_73, %c0_74], %98 {strides = array<i32>} : memref<512x16xf32, #tpu.memory_space<vmem>>, vector<512x16xf32>,
      %c0_75 = arith.constant 0 : index
      %c0_76 = arith.constant 0 : index
      %100 = vector.load %arg17[%c0_75, %c0_76] : memref<64x512xbf16, #tpu.memory_space<vmem>>, vector<64x512xbf16>
      %101 = arith.extf %100 : vector<64x512xbf16> to vector<64x512xf32>
      %cst_77 = arith.constant dense<0.000000e+00> : vector<32x512xf32>
      %102 = tpu.matmul %77, %101, %cst_77 {dimension_numbers = #tpu.dot_dimension_numbers<[1], [0], [0], [1], [0, 0, 1, 1], [], []>} : vector<32x64xf32>, vector<64x512xf32>, vector<32x512xf32> -> vector<32x512xf32>
      %c0_78 = arith.constant 0 : index
      %c0_79 = arith.constant 0 : index
      %103 = vector.load %arg15[%c0_78, %c0_79] : memref<32x512xbf16, #tpu.memory_space<vmem>>, vector<32x512xbf16>
      %104 = arith.extf %103 : vector<32x512xbf16> to vector<32x512xf32>
      %105 = arith.mulf %102, %104 : vector<32x512xf32>
      %c0_80 = arith.constant 0 : index
      %c0_81 = arith.constant 0 : index
      %106 = vector.load %arg10[%c0_80, %c0_81] : memref<32x32xf32, #tpu.memory_space<vmem>>, vector<32x32xf32>
      %cst_82 = arith.constant dense<0.000000e+00> : vector<32x512xf32>
      %107 = tpu.matmul %106, %105, %cst_82 {dimension_numbers = #tpu.dot_dimension_numbers<[1], [0], [0], [1], [0, 0, 1, 1], [], []>} : vector<32x32xf32>, vector<32x512xf32>, vector<32x512xf32> -> vector<32x512xf32>
      %c0_83 = arith.constant 0 : index
      %c0_84 = arith.constant 0 : index
      %108 = vector.load %arg22[%c0_83, %c0_84] : memref<32x512xf32, #tpu.memory_space<vmem>>, vector<32x512xf32>
      tpu.vector_store %arg22[%c0_83, %c0_84], %107 {strides = array<i32>} : memref<32x512xf32, #tpu.memory_space<vmem>>, vector<32x512xf32>,
    } else {
    }
    %c0 = arith.constant 0 : index
    %c0_1 = arith.constant 0 : index
    %c0_2 = arith.constant 0 : index
    %3 = vector.load %arg3[%c0, %c0_1, %c0_2] : memref<1x32x256xf32, #tpu.memory_space<vmem>>, vector<1x32x256xf32>
    %4 = vector.shape_cast %3 : vector<1x32x256xf32> to vector<32x256xf32>
    %c0_3 = arith.constant 0 : index
    %c0_4 = arith.constant 0 : index
    %5 = vector.load %arg11[%c0_3, %c0_4] : memref<16x32xf32, #tpu.memory_space<vmem>>, vector<16x32xf32>
    %cst = arith.constant dense<0.000000e+00> : vector<16x256xf32>
    %6 = tpu.matmul %5, %4, %cst {dimension_numbers = #tpu.dot_dimension_numbers<[1], [0], [0], [1], [0, 0, 1, 1], [], []>} : vector<16x32xf32>, vector<32x256xf32>, vector<16x256xf32> -> vector<16x256xf32>
    %cst_5 = arith.constant 0.000000e+00 : f32
    %7 = vector.broadcast %cst_5 : f32 to vector<16x256xf32>
    %8 = arith.cmpf oge, %6, %7 : vector<16x256xf32>
    %c0_6 = arith.constant 0 : index
    %c0_7 = arith.constant 0 : index
    %9 = vector.load %arg23[%c0_6, %c0_7] : memref<16x1xf32, #tpu.memory_space<vmem>>, vector<16x1xf32>
    %10 = vector.broadcast %9 : vector<16x1xf32> to vector<16x256xf32>
    %11 = arith.mulf %6, %10 : vector<16x256xf32>
    %c0_8 = arith.constant 0 : index
    %c0_9 = arith.constant 0 : index
    %12 = vector.load %arg24[%c0_8, %c0_9] : memref<16x1xf32, #tpu.memory_space<vmem>>, vector<16x1xf32>
    %13 = vector.broadcast %12 : vector<16x1xf32> to vector<16x256xf32>
    %14 = arith.mulf %6, %13 : vector<16x256xf32>
    %15 = arith.select %8, %11, %14 : vector<16x256xi1>, vector<16x256xf32>
    %c0_10 = arith.constant 0 : index
    %c0_11 = arith.constant 0 : index
    %16 = vector.load %arg21[%c0_10, %c0_11] : memref<512x16xf32, #tpu.memory_space<vmem>>, vector<512x16xf32>
    %cst_12 = arith.constant dense<0.000000e+00> : vector<512x256xf32>
    %17 = tpu.matmul %16, %15, %cst_12 {dimension_numbers = #tpu.dot_dimension_numbers<[1], [0], [0], [1], [0, 0, 1, 1], [], []>} : vector<512x16xf32>, vector<16x256xf32>, vector<512x256xf32> -> vector<512x256xf32>
    %18 = math.exp %17 : vector<512x256xf32>
    %c0_13 = arith.constant 0 : index
    %c0_14 = arith.constant 0 : index
    %19 = vector.load %arg14[%c0_13, %c0_14] : memref<8x512xbf16, #tpu.memory_space<vmem>>, vector<8x512xbf16>
    %20 = arith.extf %19 : vector<8x512xbf16> to vector<8x512xf32>
    %cst_15 = arith.constant dense<0.000000e+00> : vector<8x256xf32>
    %21 = tpu.matmul %20, %18, %cst_15 {dimension_numbers = #tpu.dot_dimension_numbers<[1], [0], [0], [1], [0, 0, 1, 1], [], []>} : vector<8x512xf32>, vector<512x256xf32>, vector<8x256xf32> -> vector<8x256xf32>
    %22 = tpu.reciprocal %21 {approx = true} : vector<8x256xf32> -> vector<8x256xf32>
    %c0_16 = arith.constant 0 : index
    %c0_17 = arith.constant 0 : index
    %23 = vector.load %arg13[%c0_16, %c0_17] : memref<512x8xbf16, #tpu.memory_space<vmem>>, vector<512x8xbf16>
    %24 = arith.extf %23 : vector<512x8xbf16> to vector<512x8xf32>
    %cst_18 = arith.constant dense<0.000000e+00> : vector<512x256xf32>
    %25 = tpu.matmul %24, %22, %cst_18 {dimension_numbers = #tpu.dot_dimension_numbers<[1], [0], [0], [1], [0, 0, 1, 1], [], []>} : vector<512x8xf32>, vector<8x256xf32>, vector<512x256xf32> -> vector<512x256xf32>
    %26 = arith.mulf %18, %25 : vector<512x256xf32>
    %c0_19 = arith.constant 0 : index
    %c0_20 = arith.constant 0 : index
    %27 = vector.load %arg22[%c0_19, %c0_20] : memref<32x512xf32, #tpu.memory_space<vmem>>, vector<32x512xf32>
    %cst_21 = arith.constant dense<0.000000e+00> : vector<32x256xf32>
    %28 = tpu.matmul %27, %26, %cst_21 {dimension_numbers = #tpu.dot_dimension_numbers<[1], [0], [0], [1], [0, 0, 1, 1], [], []>} : vector<32x512xf32>, vector<512x256xf32>, vector<32x256xf32> -> vector<32x256xf32>
    %c0_22 = arith.constant 0 : index
    %c0_23 = arith.constant 0 : index
    %29 = vector.load %arg12[%c0_22, %c0_23] : memref<32x1xf32, #tpu.memory_space<vmem>>, vector<32x1xf32>
    %30 = vector.broadcast %29 : vector<32x1xf32> to vector<32x256xf32>
    %31 = arith.addf %28, %30 : vector<32x256xf32>
    %c0_24 = arith.constant 0 : index
    %c0_25 = arith.constant 0 : index
    %c0_26 = arith.constant 0 : index
    %32 = vector.load %arg20[%c0_24, %c0_25, %c0_26] : memref<1x32x256xf32, #tpu.memory_space<vmem>>, vector<1x32x256xf32>
    %33 = vector.shape_cast %32 : vector<1x32x256xf32> to vector<32x256xf32>
    %34 = vector.shape_cast %31 : vector<32x256xf32> to vector<1x32x256xf32>
    tpu.vector_store %arg20[%c0_24, %c0_25, %c0_26], %34 {strides = array<i32>} : memref<1x32x256xf32, #tpu.memory_space<vmem>>, vector<1x32x256xf32>,
    return
  }
  func.func @transform_0(%arg0: i32, %arg1: i32) -> (i32, i32, i32) {
    %c0_i32 = arith.constant 0 : i32
    %c0_i32_0 = arith.constant 0 : i32
    %c0_i32_1 = arith.constant 0 : i32
    return %arg0, %c0_i32, %c0_i32_0 : i32, i32, i32
  }
  func.func @transform_1(%arg0: i32, %arg1: i32) -> (i32, i32, i32) {
    %c0_i32 = arith.constant 0 : i32
    %c0_i32_0 = arith.constant 0 : i32
    return %arg0, %c0_i32, %arg1 : i32, i32, i32
  }
  func.func @transform_2(%arg0: i32, %arg1: i32) -> (i32, i32) {
    %c0_i32 = arith.constant 0 : i32
    %c0_i32_0 = arith.constant 0 : i32
    %c0_i32_1 = arith.constant 0 : i32
    return %c0_i32, %c0_i32_0 : i32, i32
  }
  func.func @transform_3(%arg0: i32, %arg1: i32) -> (i32, i32) {
    %c0_i32 = arith.constant 0 : i32
    %c0_i32_0 = arith.constant 0 : i32
    %c0_i32_1 = arith.constant 0 : i32
    return %c0_i32, %c0_i32_0 : i32, i32
  }
  func.func @transform_4(%arg0: i32, %arg1: i32) -> (i32, i32) {
    %c0_i32 = arith.constant 0 : i32
    %c0_i32_0 = arith.constant 0 : i32
    %c0_i32_1 = arith.constant 0 : i32
    return %c0_i32, %c0_i32_0 : i32, i32
  }
  func.func @transform_5(%arg0: i32, %arg1: i32) -> (i32, i32) {
    %c0_i32 = arith.constant 0 : i32
    %c0_i32_0 = arith.constant 0 : i32
    %c0_i32_1 = arith.constant 0 : i32
    return %c0_i32, %c0_i32_0 : i32, i32
  }
  func.func @transform_6(%arg0: i32, %arg1: i32) -> (i32, i32) {
    %c0_i32 = arith.constant 0 : i32
    %c0_i32_0 = arith.constant 0 : i32
    %c0_i32_1 = arith.constant 0 : i32
    return %c0_i32, %c0_i32_0 : i32, i32
  }
  func.func @transform_7(%arg0: i32, %arg1: i32) -> (i32, i32) {
    %c0_i32 = arith.constant 0 : i32
    %c0_i32_0 = arith.constant 0 : i32
    %c0_i32_1 = arith.constant 0 : i32
    return %c0_i32, %c0_i32_0 : i32, i32
  }
  func.func @transform_8(%arg0: i32, %arg1: i32) -> (i32, i32) {
    %c0_i32 = arith.constant 0 : i32
    %c0_i32_0 = arith.constant 0 : i32
    %c0_i32_1 = arith.constant 0 : i32
    return %c0_i32, %c0_i32_0 : i32, i32
  }
  func.func @transform_9(%arg0: i32, %arg1: i32) -> (i32, i32) {
    %c0_i32 = arith.constant 0 : i32
    %c0_i32_0 = arith.constant 0 : i32
    %c0_i32_1 = arith.constant 0 : i32
    return %c0_i32, %c0_i32_0 : i32, i32
  }
  func.func @transform_10(%arg0: i32, %arg1: i32) -> (i32, i32) {
    %c0_i32 = arith.constant 0 : i32
    %c0_i32_0 = arith.constant 0 : i32
    %c0_i32_1 = arith.constant 0 : i32
    return %c0_i32, %c0_i32_0 : i32, i32
  }
  func.func @transform_11(%arg0: i32, %arg1: i32) -> (i32, i32) {
    %c0_i32 = arith.constant 0 : i32
    %c0_i32_0 = arith.constant 0 : i32
    %c0_i32_1 = arith.constant 0 : i32
    return %c0_i32, %c0_i32_0 : i32, i32
  }
  func.func @transform_12(%arg0: i32, %arg1: i32) -> (i32, i32) {
    %c0_i32 = arith.constant 0 : i32
    %c0_i32_0 = arith.constant 0 : i32
    %c0_i32_1 = arith.constant 0 : i32
    return %c0_i32, %c0_i32_0 : i32, i32
  }
  func.func @transform_13(%arg0: i32, %arg1: i32) -> (i32, i32) {
    %c0_i32 = arith.constant 0 : i32
    %c0_i32_0 = arith.constant 0 : i32
    %c0_i32_1 = arith.constant 0 : i32
    return %c0_i32, %c0_i32_0 : i32, i32
  }
  func.func @transform_14(%arg0: i32, %arg1: i32) -> (i32, i32) {
    %c0_i32 = arith.constant 0 : i32
    %c0_i32_0 = arith.constant 0 : i32
    %c0_i32_1 = arith.constant 0 : i32
    return %c0_i32, %c0_i32_0 : i32, i32
  }
  func.func @transform_15(%arg0: i32, %arg1: i32) -> (i32, i32) {
    %c0_i32 = arith.constant 0 : i32
    %c0_i32_0 = arith.constant 0 : i32
    %c0_i32_1 = arith.constant 0 : i32
    return %c0_i32, %c0_i32_0 : i32, i32
  }
  func.func @transform_16(%arg0: i32, %arg1: i32) -> (i32, i32) {
    %c0_i32 = arith.constant 0 : i32
    %c0_i32_0 = arith.constant 0 : i32
    %c0_i32_1 = arith.constant 0 : i32
    return %c0_i32, %c0_i32_0 : i32, i32
  }
  func.func @transform_17(%arg0: i32, %arg1: i32) -> (i32, i32) {
    %c0_i32 = arith.constant 0 : i32
    %c0_i32_0 = arith.constant 0 : i32
    %c0_i32_1 = arith.constant 0 : i32
    return %c0_i32, %c0_i32_0 : i32, i32
  }
  func.func @transform_18(%arg0: i32, %arg1: i32) -> (i32, i32, i32) {
    %c0_i32 = arith.constant 0 : i32
    %c0_i32_0 = arith.constant 0 : i32
    return %arg0, %c0_i32, %arg1 : i32, i32, i32
  }
}

</mosaic_0001>

<llo_original>
// kernel: tpu_custom_call.1
$region0: #{tpu_custom_call.1}
  #allocation0 [shape = 'u32[]', space=smem, size = 0x4, offset = 0x4, fixed_abs, tag = 'smem constant byte address 0x4 - core index']
  #allocation1 [shape = 'u32[144,128]{1,0:T(1,128)}', space=vmem, size = 0x12000, scoped, tag = 'internal scratch']
  #allocation2 [shape = 'f32[512,16]{1,0:T(8,128)}', space=vmem, size = 0x40000, scoped, tag = 'scratch operand']
  #allocation3 [shape = 'f32[32,512]{1,0:T(8,128)}', space=vmem, size = 0x10000, scoped, tag = 'scratch operand']
  #allocation4 [shape = 'f32[16,1]{1,0:T(8,128)}', space=vmem, size = 0x2000, scoped, tag = 'scratch operand']
  #allocation5 [shape = 'f32[16,1]{1,0:T(8,128)}', space=vmem, size = 0x2000, scoped, tag = 'scratch operand']
  %s0 = inlined_call_operand.vmem [shape: f32[2,32,64], index: 0, kind: input, shape index: {}]
  %s1 = inlined_call_operand.vmem [shape: f32[2,32,256], index: 1, kind: input, shape index: {}]
  %s2 = inlined_call_operand.vmem [shape: f32[32,32], index: 2, kind: input, shape index: {}]
  %s3 = inlined_call_operand.vmem [shape: f32[32,1], index: 3, kind: input, shape index: {}]
  %s4 = inlined_call_operand.vmem [shape: f32[32,1], index: 4, kind: input, shape index: {}]
  %s5 = inlined_call_operand.vmem [shape: f32[32,1], index: 5, kind: input, shape index: {}]
  %s6 = inlined_call_operand.vmem [shape: f32[8,32], index: 6, kind: input, shape index: {}]
  %s7 = inlined_call_operand.vmem [shape: f32[32,32], index: 7, kind: input, shape index: {}]
  %s8 = inlined_call_operand.vmem [shape: f32[32,32], index: 8, kind: input, shape index: {}]
  %s9 = inlined_call_operand.vmem [shape: f32[16,32], index: 9, kind: input, shape index: {}]
  %s10 = inlined_call_operand.vmem [shape: f32[32,1], index: 10, kind: input, shape index: {}]
  %s11 = inlined_call_operand.vmem [shape: bf16[512,8], index: 11, kind: input, shape index: {}]
  %s12 = inlined_call_operand.vmem [shape: bf16[8,512], index: 12, kind: input, shape index: {}]
  %s13 = inlined_call_operand.vmem [shape: bf16[32,512], index: 13, kind: input, shape index: {}]
  %s14 = inlined_call_operand.vmem [shape: bf16[512,64], index: 14, kind: input, shape index: {}]
  %s15 = inlined_call_operand.vmem [shape: bf16[64,512], index: 15, kind: input, shape index: {}]
  %s16 = inlined_call_operand.vmem [shape: bf16[8,16], index: 16, kind: input, shape index: {}]
  %s17 = inlined_call_operand.vmem [shape: bf16[512,16], index: 17, kind: input, shape index: {}]
  %s18 = inlined_call_operand.hbm [shape: f32[2,32,256], index: 18, kind: output, shape index: {}]
  %s19 = sld [smem:[#allocation0]]
  $region109: #{tpu_custom_call.1} parent=0
    _
  %s21 = ssub.s32 1, %s19
  %s22 = scalar_select 0, %s21, %s19
  $region1: #{tpu_custom_call.1} parent=0
    #allocation6 [shape = 'u8[65536]{0}', space=vmem, size = 0x10000, scoped, tag = 'output window, operand 0']
    #allocation7 [shape = 's32[2]{0}', space=sflag, size = 0x8, scoped, tag = 'scoped memory for tpu_custom_call.1']
    %23 = vsyncpa [#allocation7], 0
    %s24 = scalar_lea.sflag [#allocation7], 1
    %25 = vsyncpa %s24, 0
    loop: start=0, step=1, limit=4
    $region2: #{tpu_custom_call.1} parent=1 // loop_pre_header
      _
    $region3: #{tpu_custom_call.1} parent=1 // loop_header
      %s27 = sphi 0, %s31
      %p28 = scmp.ge.s32.totalorder %s27, 4
      %s34 = sphi 0, %s46
      %s35 = sphi 0, %s42
      %s36 = sphi 0, %s34
      %s37 = sphi 0, %s35
      %s38 = sphi 0, %s36
      %s39 = sphi 0, %s37
      %s49 = sphi 0, %s51
      %s52 = sphi 0, %s49
      %s53 = sphi 0, %s52
      %s69 = sphi 0, %s53
      %s77 = sphi 0, %s79
      %s80 = sphi 0, %s77
      %s81 = sphi 0, %s80
      %s97 = sphi 0, %s81
      %s101 = sphi 0, %s101
      %s103 = sphi 0, %s101
      %s104 = sphi 0, %s103
      %s118 = sphi 0, %s104
      %s122 = sphi 0, %s122
      %s124 = sphi 0, %s122
      %s125 = sphi 0, %s124
      %s139 = sphi 0, %s125
      %s143 = sphi 0, %s143
      %s145 = sphi 0, %s143
      %s146 = sphi 0, %s145
      %s160 = sphi 0, %s146
      %s164 = sphi 0, %s164
      %s166 = sphi 0, %s164
      %s167 = sphi 0, %s166
      %s181 = sphi 0, %s167
      %s185 = sphi 0, %s185
      %s187 = sphi 0, %s185
      %s188 = sphi 0, %s187
      %s202 = sphi 0, %s188
      %s206 = sphi 0, %s206
      %s208 = sphi 0, %s206
      %s209 = sphi 0, %s208
      %s223 = sphi 0, %s209
      %s227 = sphi 0, %s227
      %s229 = sphi 0, %s227
      %s230 = sphi 0, %s229
      %s244 = sphi 0, %s230
      %s248 = sphi 0, %s248
      %s250 = sphi 0, %s248
      %s251 = sphi 0, %s250
      %s265 = sphi 0, %s251
      %s269 = sphi 0, %s269
      %s271 = sphi 0, %s269
      %s272 = sphi 0, %s271
      %s286 = sphi 0, %s272
      %s290 = sphi 0, %s290
      %s292 = sphi 0, %s290
      %s293 = sphi 0, %s292
      %s307 = sphi 0, %s293
      %s311 = sphi 0, %s311
      %s313 = sphi 0, %s311
      %s314 = sphi 0, %s313
      %s328 = sphi 0, %s314
      %s332 = sphi 0, %s332
      %s334 = sphi 0, %s332
      %s335 = sphi 0, %s334
      %s349 = sphi 0, %s335
      %s353 = sphi 0, %s353
      %s355 = sphi 0, %s353
      %s356 = sphi 0, %s355
      %s370 = sphi 0, %s356
      %s374 = sphi 0, %s374
      %s376 = sphi 0, %s374
      %s377 = sphi 0, %s376
      %s391 = sphi 0, %s377
      %s395 = sphi 0, %s395
      %s397 = sphi 0, %s395
      %s398 = sphi 0, %s397
      %s412 = sphi 0, %s398
      %s416 = sphi 0, %s416
      %s418 = sphi 0, %s416
      %s419 = sphi 0, %s418
      %s433 = sphi 0, %s419
      %s441 = sphi 0, %s443
      %s444 = sphi 0, %s441
      %s445 = sphi 0, %s444
      %s461 = sphi 0, %s445
    $region4: #{tpu_custom_call.1} parent=1 // loop_header_branch
      %30 = sbr.rel (%p28) target = $region8
    $region5: #{tpu_custom_call.1} parent=1 // loop_body
      %s32 = ssub.s32 %s27, 1
      %s33 = ssub.s32 %s27, 2
      %s40 = sadd.s32 1, %s35
      %p41 = scmp.ge.s32.totalorder %s40, 1
      %s42 = scalar_select %p41, 0, %s40
      %s43 = sadd.s32 1, %s34
      %s44 = scalar_select %p41, %s43, %s34
      %p45 = scmp.ge.s32.totalorder %s44, 2
      %s46 = scalar_select %p45, 0, %s44
      %s47 = ssub.s32 %s34, %s46
      %p48 = scmp.eq.s32.totalorder %s47, 0
      %s50 = sadd.s32 %s49, 1
      %s51 = scalar_select %p48, %s49, %s50
      %p54 = pneg %p48
      %p55 = scmp.eq.s32.totalorder %s27, 1
      %p56 = por %p54, %p55
      %p57 = scmp.ne.s32.totalorder %s49, %s52
      %p58 = scmp.eq.s32.totalorder %s27, 0
      %p59 = por %p57, %p58
      %p60 = scmp.ne.s32.totalorder %s49, %s52
      %p61 = scmp.eq.s32.totalorder %s32, 1
      %p62 = por %p60, %p61
      %p63 = scmp.ne.s32.totalorder %s52, %s53
      %p64 = scmp.eq.s32.totalorder %s32, 0
      %p65 = por %p63, %p64
      %p66 = scmp.ne.s32.totalorder %s52, %s53
      %p67 = scmp.eq.s32.totalorder %s33, 1
      %p68 = por %p66, %p67
      %p70 = scmp.ne.s32.totalorder %s53, %s69
      %p71 = scmp.eq.s32.totalorder %s33, 0
      %p72 = por %p70, %p71
      %s73 = ssub.s32 %s34, %s46
      %s74 = ssub.s32 %s35, %s42
      %s75 = sor.u32 %s73, %s74
      %p76 = scmp.eq.s32.totalorder %s75, 0
      %s78 = sadd.s32 %s77, 1
      %s79 = scalar_select %p76, %s77, %s78
      %p82 = pneg %p76
      %p83 = scmp.eq.s32.totalorder %s27, 1
      %p84 = por %p82, %p83
      %p85 = scmp.ne.s32.totalorder %s77, %s80
      %p86 = scmp.eq.s32.totalorder %s27, 0
      %p87 = por %p85, %p86
      %p88 = scmp.ne.s32.totalorder %s77, %s80
      %p89 = scmp.eq.s32.totalorder %s32, 1
      %p90 = por %p88, %p89
      %p91 = scmp.ne.s32.totalorder %s80, %s81
      %p92 = scmp.eq.s32.totalorder %s32, 0
      %p93 = por %p91, %p92
      %p94 = scmp.ne.s32.totalorder %s80, %s81
      %p95 = scmp.eq.s32.totalorder %s33, 1
      %p96 = por %p94, %p95
      %p98 = scmp.ne.s32.totalorder %s81, %s97
      %p99 = scmp.eq.s32.totalorder %s33, 0
      %p100 = por %p98, %p99
      %s102 = sadd.s32 %s101, 1
      %p105 = scmp.eq.s32.totalorder %s27, 1
      %p106 = scmp.ne.s32.totalorder %s101, %s103
      %p107 = scmp.eq.s32.totalorder %s27, 0
      %p108 = por %p106, %p107
      %p109 = scmp.ne.s32.totalorder %s101, %s103
      %p110 = scmp.eq.s32.totalorder %s32, 1
      %p111 = por %p109, %p110
      %p112 = scmp.ne.s32.totalorder %s103, %s104
      %p113 = scmp.eq.s32.totalorder %s32, 0
      %p114 = por %p112, %p113
      %p115 = scmp.ne.s32.totalorder %s103, %s104
      %p116 = scmp.eq.s32.totalorder %s33, 1
      %p117 = por %p115, %p116
      %p119 = scmp.ne.s32.totalorder %s104, %s118
      %p120 = scmp.eq.s32.totalorder %s33, 0
      %p121 = por %p119, %p120
      %s123 = sadd.s32 %s122, 1
      %p126 = scmp.eq.s32.totalorder %s27, 1
      %p127 = scmp.ne.s32.totalorder %s122, %s124
      %p128 = scmp.eq.s32.totalorder %s27, 0
      %p129 = por %p127, %p128
      %p130 = scmp.ne.s32.totalorder %s122, %s124
      %p131 = scmp.eq.s32.totalorder %s32, 1
      %p132 = por %p130, %p131
      %p133 = scmp.ne.s32.totalorder %s124, %s125
      %p134 = scmp.eq.s32.totalorder %s32, 0
      %p135 = por %p133, %p134
      %p136 = scmp.ne.s32.totalorder %s124, %s125
      %p137 = scmp.eq.s32.totalorder %s33, 1
      %p138 = por %p136, %p137
      %p140 = scmp.ne.s32.totalorder %s125, %s139
      %p141 = scmp.eq.s32.totalorder %s33, 0
      %p142 = por %p140, %p141
      %s144 = sadd.s32 %s143, 1
      %p147 = scmp.eq.s32.totalorder %s27, 1
      %p148 = scmp.ne.s32.totalorder %s143, %s145
      %p149 = scmp.eq.s32.totalorder %s27, 0
      %p150 = por %p148, %p149
      %p151 = scmp.ne.s32.totalorder %s143, %s145
      %p152 = scmp.eq.s32.totalorder %s32, 1
      %p153 = por %p151, %p152
      %p154 = scmp.ne.s32.totalorder %s145, %s146
      %p155 = scmp.eq.s32.totalorder %s32, 0
      %p156 = por %p154, %p155
      %p157 = scmp.ne.s32.totalorder %s145, %s146
      %p158 = scmp.eq.s32.totalorder %s33, 1
      %p159 = por %p157, %p158
      %p161 = scmp.ne.s32.totalorder %s146, %s160
      %p162 = scmp.eq.s32.totalorder %s33, 0
      %p163 = por %p161, %p162
      %s165 = sadd.s32 %s164, 1
      %p168 = scmp.eq.s32.totalorder %s27, 1
      %p169 = scmp.ne.s32.totalorder %s164, %s166
      %p170 = scmp.eq.s32.totalorder %s27, 0
      %p171 = por %p169, %p170
      %p172 = scmp.ne.s32.totalorder %s164, %s166
      %p173 = scmp.eq.s32.totalorder %s32, 1
      %p174 = por %p172, %p173
      %p175 = scmp.ne.s32.totalorder %s166, %s167
      %p176 = scmp.eq.s32.totalorder %s32, 0
      %p177 = por %p175, %p176
      %p178 = scmp.ne.s32.totalorder %s166, %s167
      %p179 = scmp.eq.s32.totalorder %s33, 1
      %p180 = por %p178, %p179
      %p182 = scmp.ne.s32.totalorder %s167, %s181
      %p183 = scmp.eq.s32.totalorder %s33, 0
      %p184 = por %p182, %p183
      %s186 = sadd.s32 %s185, 1
      %p189 = scmp.eq.s32.totalorder %s27, 1
      %p190 = scmp.ne.s32.totalorder %s185, %s187
      %p191 = scmp.eq.s32.totalorder %s27, 0
      %p192 = por %p190, %p191
      %p193 = scmp.ne.s32.totalorder %s185, %s187
      %p194 = scmp.eq.s32.totalorder %s32, 1
      %p195 = por %p193, %p194
      %p196 = scmp.ne.s32.totalorder %s187, %s188
      %p197 = scmp.eq.s32.totalorder %s32, 0
      %p198 = por %p196, %p197
      %p199 = scmp.ne.s32.totalorder %s187, %s188
      %p200 = scmp.eq.s32.totalorder %s33, 1
      %p201 = por %p199, %p200
      %p203 = scmp.ne.s32.totalorder %s188, %s202
      %p204 = scmp.eq.s32.totalorder %s33, 0
      %p205 = por %p203, %p204
      %s207 = sadd.s32 %s206, 1
      %p210 = scmp.eq.s32.totalorder %s27, 1
      %p211 = scmp.ne.s32.totalorder %s206, %s208
      %p212 = scmp.eq.s32.totalorder %s27, 0
      %p213 = por %p211, %p212
      %p214 = scmp.ne.s32.totalorder %s206, %s208
      %p215 = scmp.eq.s32.totalorder %s32, 1
      %p216 = por %p214, %p215
      %p217 = scmp.ne.s32.totalorder %s208, %s209
      %p218 = scmp.eq.s32.totalorder %s32, 0
      %p219 = por %p217, %p218
      %p220 = scmp.ne.s32.totalorder %s208, %s209
      %p221 = scmp.eq.s32.totalorder %s33, 1
      %p222 = por %p220, %p221
      %p224 = scmp.ne.s32.totalorder %s209, %s223
      %p225 = scmp.eq.s32.totalorder %s33, 0
      %p226 = por %p224, %p225
      %s228 = sadd.s32 %s227, 1
      %p231 = scmp.eq.s32.totalorder %s27, 1
      %p232 = scmp.ne.s32.totalorder %s227, %s229
      %p233 = scmp.eq.s32.totalorder %s27, 0
      %p234 = por %p232, %p233
      %p235 = scmp.ne.s32.totalorder %s227, %s229
      %p236 = scmp.eq.s32.totalorder %s32, 1
      %p237 = por %p235, %p236
      %p238 = scmp.ne.s32.totalorder %s229, %s230
      %p239 = scmp.eq.s32.totalorder %s32, 0
      %p240 = por %p238, %p239
      %p241 = scmp.ne.s32.totalorder %s229, %s230
      %p242 = scmp.eq.s32.totalorder %s33, 1
      %p243 = por %p241, %p242
      %p245 = scmp.ne.s32.totalorder %s230, %s244
      %p246 = scmp.eq.s32.totalorder %s33, 0
      %p247 = por %p245, %p246
      %s249 = sadd.s32 %s248, 1
      %p252 = scmp.eq.s32.totalorder %s27, 1
      %p253 = scmp.ne.s32.totalorder %s248, %s250
      %p254 = scmp.eq.s32.totalorder %s27, 0
      %p255 = por %p253, %p254
      %p256 = scmp.ne.s32.totalorder %s248, %s250
      %p257 = scmp.eq.s32.totalorder %s32, 1
      %p258 = por %p256, %p257
      %p259 = scmp.ne.s32.totalorder %s250, %s251
      %p260 = scmp.eq.s32.totalorder %s32, 0
      %p261 = por %p259, %p260
      %p262 = scmp.ne.s32.totalorder %s250, %s251
      %p263 = scmp.eq.s32.totalorder %s33, 1
      %p264 = por %p262, %p263
      %p266 = scmp.ne.s32.totalorder %s251, %s265
      %p267 = scmp.eq.s32.totalorder %s33, 0
      %p268 = por %p266, %p267
      %s270 = sadd.s32 %s269, 1
      %p273 = scmp.eq.s32.totalorder %s27, 1
      %p274 = scmp.ne.s32.totalorder %s269, %s271
      %p275 = scmp.eq.s32.totalorder %s27, 0
      %p276 = por %p274, %p275
      %p277 = scmp.ne.s32.totalorder %s269, %s271
      %p278 = scmp.eq.s32.totalorder %s32, 1
      %p279 = por %p277, %p278
      %p280 = scmp.ne.s32.totalorder %s271, %s272
      %p281 = scmp.eq.s32.totalorder %s32, 0
      %p282 = por %p280, %p281
      %p283 = scmp.ne.s32.totalorder %s271, %s272
      %p284 = scmp.eq.s32.totalorder %s33, 1
      %p285 = por %p283, %p284
      %p287 = scmp.ne.s32.totalorder %s272, %s286
      %p288 = scmp.eq.s32.totalorder %s33, 0
      %p289 = por %p287, %p288
      %s291 = sadd.s32 %s290, 1
      %p294 = scmp.eq.s32.totalorder %s27, 1
      %p295 = scmp.ne.s32.totalorder %s290, %s292
      %p296 = scmp.eq.s32.totalorder %s27, 0
      %p297 = por %p295, %p296
      %p298 = scmp.ne.s32.totalorder %s290, %s292
      %p299 = scmp.eq.s32.totalorder %s32, 1
      %p300 = por %p298, %p299
      %p301 = scmp.ne.s32.totalorder %s292, %s293
      %p302 = scmp.eq.s32.totalorder %s32, 0
      %p303 = por %p301, %p302
      %p304 = scmp.ne.s32.totalorder %s292, %s293
      %p305 = scmp.eq.s32.totalorder %s33, 1
      %p306 = por %p304, %p305
      %p308 = scmp.ne.s32.totalorder %s293, %s307
      %p309 = scmp.eq.s32.totalorder %s33, 0
      %p310 = por %p308, %p309
      %s312 = sadd.s32 %s311, 1
      %p315 = scmp.eq.s32.totalorder %s27, 1
      %p316 = scmp.ne.s32.totalorder %s311, %s313
      %p317 = scmp.eq.s32.totalorder %s27, 0
      %p318 = por %p316, %p317
      %p319 = scmp.ne.s32.totalorder %s311, %s313
      %p320 = scmp.eq.s32.totalorder %s32, 1
      %p321 = por %p319, %p320
      %p322 = scmp.ne.s32.totalorder %s313, %s314
      %p323 = scmp.eq.s32.totalorder %s32, 0
      %p324 = por %p322, %p323
      %p325 = scmp.ne.s32.totalorder %s313, %s314
      %p326 = scmp.eq.s32.totalorder %s33, 1
      %p327 = por %p325, %p326
      %p329 = scmp.ne.s32.totalorder %s314, %s328
      %p330 = scmp.eq.s32.totalorder %s33, 0
      %p331 = por %p329, %p330
      %s333 = sadd.s32 %s332, 1
      %p336 = scmp.eq.s32.totalorder %s27, 1
      %p337 = scmp.ne.s32.totalorder %s332, %s334
      %p338 = scmp.eq.s32.totalorder %s27, 0
      %p339 = por %p337, %p338
      %p340 = scmp.ne.s32.totalorder %s332, %s334
      %p341 = scmp.eq.s32.totalorder %s32, 1
      %p342 = por %p340, %p341
      %p343 = scmp.ne.s32.totalorder %s334, %s335
      %p344 = scmp.eq.s32.totalorder %s32, 0
      %p345 = por %p343, %p344
      %p346 = scmp.ne.s32.totalorder %s334, %s335
      %p347 = scmp.eq.s32.totalorder %s33, 1
      %p348 = por %p346, %p347
      %p350 = scmp.ne.s32.totalorder %s335, %s349
      %p351 = scmp.eq.s32.totalorder %s33, 0
      %p352 = por %p350, %p351
      %s354 = sadd.s32 %s353, 1
      %p357 = scmp.eq.s32.totalorder %s27, 1
      %p358 = scmp.ne.s32.totalorder %s353, %s355
      %p359 = scmp.eq.s32.totalorder %s27, 0
      %p360 = por %p358, %p359
      %p361 = scmp.ne.s32.totalorder %s353, %s355
      %p362 = scmp.eq.s32.totalorder %s32, 1
      %p363 = por %p361, %p362
      %p364 = scmp.ne.s32.totalorder %s355, %s356
      %p365 = scmp.eq.s32.totalorder %s32, 0
      %p366 = por %p364, %p365
      %p367 = scmp.ne.s32.totalorder %s355, %s356
      %p368 = scmp.eq.s32.totalorder %s33, 1
      %p369 = por %p367, %p368
      %p371 = scmp.ne.s32.totalorder %s356, %s370
      %p372 = scmp.eq.s32.totalorder %s33, 0
      %p373 = por %p371, %p372
      %s375 = sadd.s32 %s374, 1
      %p378 = scmp.eq.s32.totalorder %s27, 1
      %p379 = scmp.ne.s32.totalorder %s374, %s376
      %p380 = scmp.eq.s32.totalorder %s27, 0
      %p381 = por %p379, %p380
      %p382 = scmp.ne.s32.totalorder %s374, %s376
      %p383 = scmp.eq.s32.totalorder %s32, 1
      %p384 = por %p382, %p383
      %p385 = scmp.ne.s32.totalorder %s376, %s377
      %p386 = scmp.eq.s32.totalorder %s32, 0
      %p387 = por %p385, %p386
      %p388 = scmp.ne.s32.totalorder %s376, %s377
      %p389 = scmp.eq.s32.totalorder %s33, 1
      %p390 = por %p388, %p389
      %p392 = scmp.ne.s32.totalorder %s377, %s391
      %p393 = scmp.eq.s32.totalorder %s33, 0
      %p394 = por %p392, %p393
      %s396 = sadd.s32 %s395, 1
      %p399 = scmp.eq.s32.totalorder %s27, 1
      %p400 = scmp.ne.s32.totalorder %s395, %s397
      %p401 = scmp.eq.s32.totalorder %s27, 0
      %p402 = por %p400, %p401
      %p403 = scmp.ne.s32.totalorder %s395, %s397
      %p404 = scmp.eq.s32.totalorder %s32, 1
      %p405 = por %p403, %p404
      %p406 = scmp.ne.s32.totalorder %s397, %s398
      %p407 = scmp.eq.s32.totalorder %s32, 0
      %p408 = por %p406, %p407
      %p409 = scmp.ne.s32.totalorder %s397, %s398
      %p410 = scmp.eq.s32.totalorder %s33, 1
      %p411 = por %p409, %p410
      %p413 = scmp.ne.s32.totalorder %s398, %s412
      %p414 = scmp.eq.s32.totalorder %s33, 0
      %p415 = por %p413, %p414
      %s417 = sadd.s32 %s416, 1
      %p420 = scmp.eq.s32.totalorder %s27, 1
      %p421 = scmp.ne.s32.totalorder %s416, %s418
      %p422 = scmp.eq.s32.totalorder %s27, 0
      %p423 = por %p421, %p422
      %p424 = scmp.ne.s32.totalorder %s416, %s418
      %p425 = scmp.eq.s32.totalorder %s32, 1
      %p426 = por %p424, %p425
      %p427 = scmp.ne.s32.totalorder %s418, %s419
      %p428 = scmp.eq.s32.totalorder %s32, 0
      %p429 = por %p427, %p428
      %p430 = scmp.ne.s32.totalorder %s418, %s419
      %p431 = scmp.eq.s32.totalorder %s33, 1
      %p432 = por %p430, %p431
      %p434 = scmp.ne.s32.totalorder %s419, %s433
      %p435 = scmp.eq.s32.totalorder %s33, 0
      %p436 = por %p434, %p435
      %s437 = ssub.s32 %s34, %s46
      %s438 = ssub.s32 %s35, %s42
      %s439 = sor.u32 %s437, %s438
      %p440 = scmp.eq.s32.totalorder %s439, 0
      %s442 = sadd.s32 %s441, 1
      %s443 = scalar_select %p440, %s441, %s442
      %p446 = pneg %p440
      %p447 = scmp.eq.s32.totalorder %s27, 1
      %p448 = por %p446, %p447
      %p449 = scmp.ne.s32.totalorder %s441, %s444
      %p450 = scmp.eq.s32.totalorder %s27, 0
      %p451 = por %p449, %p450
      %p452 = scmp.ne.s32.totalorder %s441, %s444
      %p453 = scmp.eq.s32.totalorder %s32, 1
      %p454 = por %p452, %p453
      %p455 = scmp.ne.s32.totalorder %s444, %s445
      %p456 = scmp.eq.s32.totalorder %s32, 0
      %p457 = por %p455, %p456
      %p458 = scmp.ne.s32.totalorder %s444, %s445
      %p459 = scmp.eq.s32.totalorder %s33, 1
      %p460 = por %p458, %p459
      %p462 = scmp.ne.s32.totalorder %s445, %s461
      %p463 = scmp.eq.s32.totalorder %s33, 0
      %p464 = por %p462, %p463
      %p465 = scmp.le.s32.totalorder 1, %s27
      %p466 = scmp.lt.s32.totalorder %s27, 3
      %p467 = pnand %p465, %p466
      %p468 = pneg %p467
      // Predicated region
      $region9: #{tpu_custom_call.1} parent=5 // pred_check
        _
      $region10: #{tpu_custom_call.1} parent=5 // pred_check_branch
        %470 = sbr.rel (%p467) target = $region12
      $region11: #{tpu_custom_call.1} parent=5 // pred_region
        %s471 = ssub.s32 %s27, 1
        // Predicated region
        $region13: #{tpu_custom_call.1} parent=11 // pred_check
          %p472 = pneg %p114
        $region14: #{tpu_custom_call.1} parent=11 // pred_check_branch
          %474 = sbr.rel (%p472) target = $region16
        $region15: #{tpu_custom_call.1} parent=11 // pred_region
          _
        $region16: #{tpu_custom_call.1} parent=11 // pred_fallthru
          _
        // Predicated region
        $region17: #{tpu_custom_call.1} parent=11 // pred_check
          %p475 = pneg %p135
        $region18: #{tpu_custom_call.1} parent=11 // pred_check_branch
          %477 = sbr.rel (%p475) target = $region20
        $region19: #{tpu_custom_call.1} parent=11 // pred_region
          _
        $region20: #{tpu_custom_call.1} parent=11 // pred_fallthru
          _
        // Predicated region
        $region21: #{tpu_custom_call.1} parent=11 // pred_check
          %p478 = pneg %p156
        $region22: #{tpu_custom_call.1} parent=11 // pred_check_branch
          %480 = sbr.rel (%p478) target = $region24
        $region23: #{tpu_custom_call.1} parent=11 // pred_region
          _
        $region24: #{tpu_custom_call.1} parent=11 // pred_fallthru
          _
        // Predicated region
        $region25: #{tpu_custom_call.1} parent=11 // pred_check
          %p481 = pneg %p177
        $region26: #{tpu_custom_call.1} parent=11 // pred_check_branch
          %483 = sbr.rel (%p481) target = $region28
        $region27: #{tpu_custom_call.1} parent=11 // pred_region
          _
        $region28: #{tpu_custom_call.1} parent=11 // pred_fallthru
          _
        // Predicated region
        $region29: #{tpu_custom_call.1} parent=11 // pred_check
          %p484 = pneg %p198
        $region30: #{tpu_custom_call.1} parent=11 // pred_check_branch
          %486 = sbr.rel (%p484) target = $region32
        $region31: #{tpu_custom_call.1} parent=11 // pred_region
          _
        $region32: #{tpu_custom_call.1} parent=11 // pred_fallthru
          _
        // Predicated region
        $region33: #{tpu_custom_call.1} parent=11 // pred_check
          %p487 = pneg %p219
        $region34: #{tpu_custom_call.1} parent=11 // pred_check_branch
          %489 = sbr.rel (%p487) target = $region36
        $region35: #{tpu_custom_call.1} parent=11 // pred_region
          _
        $region36: #{tpu_custom_call.1} parent=11 // pred_fallthru
          _
        // Predicated region
        $region37: #{tpu_custom_call.1} parent=11 // pred_check
          %p490 = pneg %p240
        $region38: #{tpu_custom_call.1} parent=11 // pred_check_branch
          %492 = sbr.rel (%p490) target = $region40
        $region39: #{tpu_custom_call.1} parent=11 // pred_region
          _
        $region40: #{tpu_custom_call.1} parent=11 // pred_fallthru
          _
        // Predicated region
        $region41: #{tpu_custom_call.1} parent=11 // pred_check
          %p493 = pneg %p261
        $region42: #{tpu_custom_call.1} parent=11 // pred_check_branch
          %495 = sbr.rel (%p493) target = $region44
        $region43: #{tpu_custom_call.1} parent=11 // pred_region
          _
        $region44: #{tpu_custom_call.1} parent=11 // pred_fallthru
          _
        // Predicated region
        $region45: #{tpu_custom_call.1} parent=11 // pred_check
          %p496 = pneg %p282
        $region46: #{tpu_custom_call.1} parent=11 // pred_check_branch
          %498 = sbr.rel (%p496) target = $region48
        $region47: #{tpu_custom_call.1} parent=11 // pred_region
          _
        $region48: #{tpu_custom_call.1} parent=11 // pred_fallthru
          _
        // Predicated region
        $region49: #{tpu_custom_call.1} parent=11 // pred_check
          %p499 = pneg %p303
        $region50: #{tpu_custom_call.1} parent=11 // pred_check_branch
          %501 = sbr.rel (%p499) target = $region52
        $region51: #{tpu_custom_call.1} parent=11 // pred_region
          _
        $region52: #{tpu_custom_call.1} parent=11 // pred_fallthru
          _
        // Predicated region
        $region53: #{tpu_custom_call.1} parent=11 // pred_check
          %p502 = pneg %p324
        $region54: #{tpu_custom_call.1} parent=11 // pred_check_branch
          %504 = sbr.rel (%p502) target = $region56
        $region55: #{tpu_custom_call.1} parent=11 // pred_region
          _
        $region56: #{tpu_custom_call.1} parent=11 // pred_fallthru
          _
        // Predicated region
        $region57: #{tpu_custom_call.1} parent=11 // pred_check
          %p505 = pneg %p345
        $region58: #{tpu_custom_call.1} parent=11 // pred_check_branch
          %507 = sbr.rel (%p505) target = $region60
        $region59: #{tpu_custom_call.1} parent=11 // pred_region
          _
        $region60: #{tpu_custom_call.1} parent=11 // pred_fallthru
          _
        // Predicated region
        $region61: #{tpu_custom_call.1} parent=11 // pred_check
          %p508 = pneg %p366
        $region62: #{tpu_custom_call.1} parent=11 // pred_check_branch
          %510 = sbr.rel (%p508) target = $region64
        $region63: #{tpu_custom_call.1} parent=11 // pred_region
          _
        $region64: #{tpu_custom_call.1} parent=11 // pred_fallthru
          _
        // Predicated region
        $region65: #{tpu_custom_call.1} parent=11 // pred_check
          %p511 = pneg %p387
        $region66: #{tpu_custom_call.1} parent=11 // pred_check_branch
          %513 = sbr.rel (%p511) target = $region68
        $region67: #{tpu_custom_call.1} parent=11 // pred_region
          _
        $region68: #{tpu_custom_call.1} parent=11 // pred_fallthru
          _
        // Predicated region
        $region69: #{tpu_custom_call.1} parent=11 // pred_check
          %p514 = pneg %p408
        $region70: #{tpu_custom_call.1} parent=11 // pred_check_branch
          %516 = sbr.rel (%p514) target = $region72
        $region71: #{tpu_custom_call.1} parent=11 // pred_region
          _
        $region72: #{tpu_custom_call.1} parent=11 // pred_fallthru
          _
        // Predicated region
        $region73: #{tpu_custom_call.1} parent=11 // pred_check
          %p517 = pneg %p429
        $region74: #{tpu_custom_call.1} parent=11 // pred_check_branch
          %519 = sbr.rel (%p517) target = $region76
        $region75: #{tpu_custom_call.1} parent=11 // pred_region
          _
        $region76: #{tpu_custom_call.1} parent=11 // pred_fallthru
          _
      $region12: #{tpu_custom_call.1} parent=5 // pred_fallthru
        _
      %p520 = scmp.lt.s32.totalorder %s27, 2
      // Predicated region
      $region77: #{tpu_custom_call.1} parent=5 // pred_check
        %p521 = pneg %p520
      $region78: #{tpu_custom_call.1} parent=5 // pred_check_branch
        %523 = sbr.rel (%p521) target = $region80
      $region79: #{tpu_custom_call.1} parent=5 // pred_region
        // Predicated region
        $region81: #{tpu_custom_call.1} parent=79 // pred_check
          %p524 = pneg %p59
        $region82: #{tpu_custom_call.1} parent=79 // pred_check_branch
          %526 = sbr.rel (%p524) target = $region84
        $region83: #{tpu_custom_call.1} parent=79 // pred_region
          %p527 = scmp.lt.s32.totalorder %s34, 1
          %s528 = scalar_select %p527, %s34, 1
          %s529 = smul.addr %s528, 4
          %s530 = smul.addr %s529, 8
          %s531 = scalar_lea.vmem %s0, %s530
        $region84: #{tpu_custom_call.1} parent=79 // pred_fallthru
          _
        // Predicated region
        $region85: #{tpu_custom_call.1} parent=79 // pred_check
          %p532 = pneg %p87
        $region86: #{tpu_custom_call.1} parent=79 // pred_check_branch
          %534 = sbr.rel (%p532) target = $region88
        $region87: #{tpu_custom_call.1} parent=79 // pred_region
          %s535 = smul.u32 2, %s35
          %p536 = scmp.lt.s32.totalorder %s34, 1
          %s537 = scalar_select %p536, %s34, 1
          %p538 = scmp.lt.s32.totalorder %s535, 1
          %s539 = scalar_select %p538, %s535, 1
          %s540 = smul.addr %s537, 8
          %s541 = sadd.s32 %s539, %s540
          %s542 = smul.addr %s541, 8
          %s543 = scalar_lea.vmem %s1, %s542
          %s544 = smul.u32 2, %s35
        $region88: #{tpu_custom_call.1} parent=79 // pred_fallthru
          _
      $region80: #{tpu_custom_call.1} parent=5 // pred_fallthru
        _
      %p545 = scmp.le.s32.totalorder 1, %s27
      %p546 = scmp.lt.s32.totalorder %s27, 3
      %p547 = pnand %p545, %p546
      %p548 = pneg %p547
      // Predicated region
      $region89: #{tpu_custom_call.1} parent=5 // pred_check
        _
      $region90: #{tpu_custom_call.1} parent=5 // pred_check_branch
        %550 = sbr.rel (%p547) target = $region92
      $region91: #{tpu_custom_call.1} parent=5 // pred_region
        %s551 = ssub.s32 %s27, 1
        %p552 = scmp.lt.s32.totalorder %s36, 1
        %s553 = scalar_select %p552, %s36, 1
        %s554 = smul.addr %s553, 4
        %s555 = smul.addr %s554, 8
        %s556 = scalar_lea.vmem %s0, %s555
        %p557 = pneg %p65
        %p558 = pneg %p62
        %s559 = smul.u32 2, %s37
        %p560 = scmp.lt.s32.totalorder %s36, 1
        %s561 = scalar_select %p560, %s36, 1
        %p562 = scmp.lt.s32.totalorder %s559, 1
        %s563 = scalar_select %p562, %s559, 1
        %s564 = smul.addr %s561, 8
        %s565 = sadd.s32 %s563, %s564
        %s566 = smul.addr %s565, 8
        %s567 = scalar_lea.vmem %s1, %s566
        %p568 = pneg %p93
        %p569 = pneg %p90
        %p570 = pneg %p114
        %p571 = pneg %p111
        %p572 = pneg %p135
        %p573 = pneg %p132
        %p574 = pneg %p156
        %p575 = pneg %p153
        %p576 = pneg %p177
        %p577 = pneg %p174
        %p578 = pneg %p198
        %p579 = pneg %p195
        %p580 = pneg %p219
        %p581 = pneg %p216
        %p582 = pneg %p240
        %p583 = pneg %p237
        %p584 = pneg %p261
        %p585 = pneg %p258
        %p586 = pneg %p282
        %p587 = pneg %p279
        %p588 = pneg %p303
        %p589 = pneg %p300
        %p590 = pneg %p324
        %p591 = pneg %p321
        %p592 = pneg %p345
        %p593 = pneg %p342
        %p594 = pneg %p366
        %p595 = pneg %p363
        %p596 = pneg %p387
        %p597 = pneg %p384
        %p598 = pneg %p408
        %p599 = pneg %p405
        %p600 = pneg %p429
        %p601 = pneg %p426
        %p602 = pneg %p457
        %p603 = pneg %p454
        %s604 = sand.u32 %s444, 1
        %s605 = scalar_lea.sflag [#allocation7], %s604
        %s606 = sand.u32 %s444, 1
        %s607 = smul.addr %s606, 64
        %s608 = scalar_lea.vmem [#allocation6], %s607
        %p609 = scmp.lt.s32.totalorder %s36, 1
        %s610 = scalar_select %p609, %s36, 1
        %s611 = smul.addr %s610, 4
        %s612 = smul.addr %s611, 8
        %s613 = scalar_lea.vmem %s0, %s612
        %s614 = smul.u32 2, %s37
        %p615 = scmp.lt.s32.totalorder %s36, 1
        %s616 = scalar_select %p615, %s36, 1
        %p617 = scmp.lt.s32.totalorder %s614, 1
        %s618 = scalar_select %p617, %s614, 1
        %s619 = smul.addr %s616, 8
        %s620 = sadd.s32 %s618, %s619
        %s621 = smul.addr %s620, 8
        %s622 = scalar_lea.vmem %s1, %s621
        %s623 = smul.u32 2, %s37
        %s624 = smul.u32 2, %s37
        %p625 = scmp.eq.s32.totalorder %s37, 0
        // Predicated region
        $region93: #{tpu_custom_call.1} parent=91 // pred_check
          %p626 = pneg %p625
        $region94: #{tpu_custom_call.1} parent=91 // pred_check_branch
          %628 = sbr.rel (%p626) target = $region96
        $region95: #{tpu_custom_call.1} parent=91 // pred_region
          %v629 = vld [vmem:[%s613] sm:$0xff]
          %v630 = vld [vmem:[%s613 + $0x8] sm:$0xff]
          %v631 = vld [vmem:[%s613 + $0x10] sm:$0xff]
          %v632 = vld [vmem:[%s613 + $0x18] sm:$0xff]
          %v633 = vld [vmem:[%s2] sm:$0xff]
          %v634 = vld [vmem:[%s2 + $0x8] sm:$0xff]
          %v635 = vld [vmem:[%s2 + $0x10] sm:$0xff]
          %v636 = vld [vmem:[%s2 + $0x18] sm:$0xff]
          %v637 = vld [vmem:[%s3] sm:$0xff]
          %v638 = vld [vmem:[%s3 + $0x8] sm:$0xff]
          %v639 = vld [vmem:[%s3 + $0x10] sm:$0xff]
          %v640 = vld [vmem:[%s3 + $0x18] sm:$0xff]
          %642 = vset.pattern.permute.xlu0 0
          %643 = vperm.xlu0 %642, %v637
          %v644 = vpop.permute.xlu0 %643
          %647 = vset.pattern.permute.xlu0 0
          %648 = vperm.xlu0 %647, %v638
          %v649 = vpop.permute.xlu0 %648
          %652 = vset.pattern.permute.xlu0 0
          %653 = vperm.xlu0 %652, %v639
          %v654 = vpop.permute.xlu0 %653
          %657 = vset.pattern.permute.xlu0 0
          %658 = vperm.xlu0 %657, %v640
          %v659 = vpop.permute.xlu0 %658
          %vm661 = vcmask 261120
          %v663 = vsel %vm661, %v633, 0
          %v666 = vsel %vm661, %v634, 0
          %v669 = vsel %vm661, %v635, 0
          %v672 = vsel %vm661, %v636, 0
          %674 = vmatprep.subr.mxu0 0.0
          %675 = vmatpush1.msra.mxu0 %v629
          %676 = vmatprep.subr.mxu0 0.0
          %677 = vmatpush1.msra.mxu0 %v630
          %678 = vmatprep.subr.mxu0 0.0
          %679 = vmatpush1.msra.mxu0 %v631
          %680 = vmatprep.subr.mxu0 0.0
          %681 = vmatpush1.msra.mxu0 %v632
          %682 = vmatprep.subr.mxu0 0.0
          %683 = vmatpush1.msra.mxu0 0.0
          %684 = vmatprep.subr.mxu0 0.0
          %685 = vmatpush1.msra.mxu0 0.0
          %686 = vmatprep.subr.mxu0 0.0
          %687 = vmatpush1.msra.mxu0 0.0
          %688 = vmatprep.subr.mxu0 0.0
          %689 = vmatpush1.msra.mxu0 0.0
          %690 = vmatprep.subr.mxu0 0.0
          %691 = vmatpush1.msra.mxu0 0.0
          %692 = vmatprep.subr.mxu0 0.0
          %693 = vmatpush1.msra.mxu0 0.0
          %694 = vmatprep.subr.mxu0 0.0
          %695 = vmatpush1.msra.mxu0 0.0
          %696 = vmatprep.subr.mxu0 0.0
          %697 = vmatpush1.msra.mxu0 0.0
          %698 = vmatprep.subr.mxu0 0.0
          %699 = vmatpush1.msra.mxu0 0.0
          %700 = vmatprep.subr.mxu0 0.0
          %701 = vmatpush1.msra.mxu0 0.0
          %702 = vmatprep.subr.mxu0 0.0
          %703 = vmatpush1.msra.mxu0 0.0
          %704 = vmatprep.subr.mxu0 0.0
          %705 = vmatpush1.msra.mxu0 0.0
          %706 = vmatprep.subr.mxu0 0.0
          %707 = vmatpush1.msra.mxu0 0.0
          %708 = vmatprep.subr.mxu0 0.0
          %709 = vmatpush1.msra.mxu0 0.0
          %710 = vmatprep.subr.mxu0 0.0
          %711 = vmatpush1.msra.mxu0 0.0
          %712 = vmatprep.subr.mxu0 0.0
          %713 = vmatpush1.msra.mxu0 0.0
          %714 = vmatprep.subr.mxu0 0.0
          %715 = vmatpush1.msra.mxu0 0.0
          %716 = vmatprep.subr.mxu0 0.0
          %717 = vmatpush1.msra.mxu0 0.0
          %718 = vmatprep.subr.mxu0 0.0
          %719 = vmatpush1.msra.mxu0 0.0
          %720 = vmatprep.subr.mxu0 0.0
          %721 = vmatpush1.msra.mxu0 0.0
          %722 = vmatprep.subr.mxu0 0.0
          %723 = vmatpush1.msra.mxu0 0.0
          %724 = vmatprep.subr.mxu0 0.0
          %725 = vmatpush1.msra.mxu0 0.0
          %726 = vmatprep.subr.mxu0 0.0
          %727 = vmatpush1.msra.mxu0 0.0
          %728 = vmatprep.subr.mxu0 0.0
          %729 = vmatpush1.msra.mxu0 0.0
          %730 = vmatprep.subr.mxu0 0.0
          %731 = vmatpush1.msra.mxu0 0.0
          %732 = vmatprep.subr.mxu0 0.0
          %733 = vmatpush1.msra.mxu0 0.0
          %734 = vmatprep.subr.mxu0 0.0
          %735 = vmatpush1.msra.mxu0 0.0
          %736 = vmatprep.subr.mxu0 0.0
          %737 = vmatpush1.msra.mxu0 0.0
          %738 = vmatprep.mubr.f32.mxu0 0.0
          %739 = vmatmul.mubr.f32.gmra.mrb[0].mxu0 %v663
          %v740 = vpop.f32.mrb[0].mxu0
          %v741 = vadd.f32 %v644, %v740
          %v742 = vpop.f32.mrb[0].mxu0
          %743 = vmatprep.mubr.f32.mxu0 0.0
          %744 = vmatmul.mubr.f32.gmra.mrb[0].mxu0 %v666
          %v745 = vpop.f32.mrb[0].mxu0
          %v746 = vadd.f32 %v649, %v745
          %v747 = vpop.f32.mrb[0].mxu0
          %748 = vmatprep.mubr.f32.mxu0 0.0
          %749 = vmatmul.mubr.f32.gmra.mrb[0].mxu0 %v669
          %v750 = vpop.f32.mrb[0].mxu0
          %v751 = vadd.f32 %v654, %v750
          %v752 = vpop.f32.mrb[0].mxu0
          %753 = vmatprep.mubr.f32.mxu0 0.0
          %754 = vmatmul.mubr.f32.gmra.mrb[0].mxu0 %v672
          %v755 = vpop.f32.mrb[0].mxu0
          %v756 = vadd.f32 %v659, %v755
          %v757 = vpop.f32.mrb[0].mxu0
          %758 = vdwg.mxu0
          %vm759 = vcmask 523264
          %v760 = vsel %vm759, %v741, 0.0
          %v761 = vsel %vm759, %v746, 0.0
          %v762 = vadd.f32 %v760, %v761
          %v763 = vsel %vm759, %v751, 0.0
          %v764 = vadd.f32 %v762, %v763
          %v765 = vsel %vm759, %v756, 0.0
          %v766 = vadd.f32 %v764, %v765
          %v767 = vrot.slane %v766, 4
          %v768 = vadd.f32 %v766, %v767
          %v769 = vrot.slane %v768, 2
          %v770 = vadd.f32 %v768, %v769
          %v771 = vrot.slane %v770, 1
          %v772 = vadd.f32 %v770, %v771
          %v773 = vrcp.pop 32.0
          %v774 = vmul.f32 %v772, %v773
          %v775 = vsub.f32 %v741, %v774
          %v776 = vsub.f32 %v746, %v774
          %v777 = vsub.f32 %v751, %v774
          %v778 = vsub.f32 %v756, %v774
          %v779 = vmul.f32 %v775, %v775
          %v780 = vmul.f32 %v776, %v776
          %v781 = vmul.f32 %v777, %v777
          %v782 = vmul.f32 %v778, %v778
          %v783 = vsel %vm759, %v779, 0.0
          %v784 = vsel %vm759, %v780, 0.0
          %v785 = vadd.f32 %v783, %v784
          %v786 = vsel %vm759, %v781, 0.0
          %v787 = vadd.f32 %v785, %v786
          %v788 = vsel %vm759, %v782, 0.0
          %v789 = vadd.f32 %v787, %v788
          %v790 = vrot.slane %v789, 4
          %v791 = vadd.f32 %v789, %v790
          %v792 = vrot.slane %v791, 2
          %v793 = vadd.f32 %v791, %v792
          %v794 = vrot.slane %v793, 1
          %v795 = vadd.f32 %v793, %v794
          %v796 = vmul.f32 %v795, %v773
          %v797 = vadd.f32 %v796, 1e-05
          %v798 = vrsqrt.pop %v797
          %v799 = vmul.f32 %v775, %v798
          %v800 = vmul.f32 %v776, %v798
          %v801 = vmul.f32 %v777, %v798
          %v802 = vmul.f32 %v778, %v798
          %v803 = vld [vmem:[%s4] sm:$0xff]
          %v804 = vld [vmem:[%s4 + $0x8] sm:$0xff]
          %v805 = vld [vmem:[%s4 + $0x10] sm:$0xff]
          %v806 = vld [vmem:[%s4 + $0x18] sm:$0xff]
          %808 = vset.pattern.permute.xlu0 0
          %809 = vperm.xlu0 %808, %v803
          %v810 = vpop.permute.xlu0 %809
          %813 = vset.pattern.permute.xlu0 0
          %814 = vperm.xlu0 %813, %v804
          %v815 = vpop.permute.xlu0 %814
          %818 = vset.pattern.permute.xlu0 0
          %819 = vperm.xlu0 %818, %v805
          %v820 = vpop.permute.xlu0 %819
          %823 = vset.pattern.permute.xlu0 0
          %824 = vperm.xlu0 %823, %v806
          %v825 = vpop.permute.xlu0 %824
          %v827 = vmul.f32 %v799, %v810
          %v828 = vmul.f32 %v800, %v815
          %v829 = vmul.f32 %v801, %v820
          %v830 = vmul.f32 %v802, %v825
          %v831 = vld [vmem:[%s5] sm:$0xff]
          %v832 = vld [vmem:[%s5 + $0x8] sm:$0xff]
          %v833 = vld [vmem:[%s5 + $0x10] sm:$0xff]
          %v834 = vld [vmem:[%s5 + $0x18] sm:$0xff]
          %836 = vset.pattern.permute.xlu0 0
          %837 = vperm.xlu0 %836, %v831
          %v838 = vpop.permute.xlu0 %837
          %841 = vset.pattern.permute.xlu0 0
          %842 = vperm.xlu0 %841, %v832
          %v843 = vpop.permute.xlu0 %842
          %846 = vset.pattern.permute.xlu0 0
          %847 = vperm.xlu0 %846, %v833
          %v848 = vpop.permute.xlu0 %847
          %851 = vset.pattern.permute.xlu0 0
          %852 = vperm.xlu0 %851, %v834
          %v853 = vpop.permute.xlu0 %852
          %v855 = vadd.f32 %v827, %v838
          %v856 = vadd.f32 %v828, %v843
          %v857 = vadd.f32 %v829, %v848
          %v858 = vadd.f32 %v830, %v853
          %v859 = vmul.f32 %v855, 0.5
          %v860 = vmul.f32 %v856, 0.5
          %v861 = vmul.f32 %v857, 0.5
          %v862 = vmul.f32 %v858, 0.5
          %v863 = vmul.f32 %v855, 0.70710677
          %v864 = vmul.f32 %v856, 0.70710677
          %v865 = vmul.f32 %v857, 0.70710677
          %v866 = vmul.f32 %v858, 0.70710677
          %v867 = verf.f32.pop %v863
          %v868 = verf.f32.pop %v864
          %v869 = verf.f32.pop %v865
          %v870 = verf.f32.pop %v866
          %v871 = vadd.f32 %v867, 1.0
          %v872 = vadd.f32 %v868, 1.0
          %v873 = vadd.f32 %v869, 1.0
          %v874 = vadd.f32 %v870, 1.0
          %v875 = vmul.f32 %v859, %v871
          %v876 = vmul.f32 %v860, %v872
          %v877 = vmul.f32 %v861, %v873
          %v878 = vmul.f32 %v862, %v874
          %v879 = vld [vmem:[%s6] sm:$0xff]
          %v881 = vsel %vm661, %v879, 0
          %883 = vmatprep.subr.mxu0 0.0
          %884 = vmatpush1.msra.mxu0 %v875
          %885 = vmatprep.subr.mxu0 0.0
          %886 = vmatpush1.msra.mxu0 %v876
          %887 = vmatprep.subr.mxu0 0.0
          %888 = vmatpush1.msra.mxu0 %v877
          %889 = vmatprep.subr.mxu0 0.0
          %890 = vmatpush1.msra.mxu0 %v878
          %891 = vmatprep.subr.mxu0 0.0
          %892 = vmatpush1.msra.mxu0 0.0
          %893 = vmatprep.subr.mxu0 0.0
          %894 = vmatpush1.msra.mxu0 0.0
          %895 = vmatprep.subr.mxu0 0.0
          %896 = vmatpush1.msra.mxu0 0.0
          %897 = vmatprep.subr.mxu0 0.0
          %898 = vmatpush1.msra.mxu0 0.0
          %899 = vmatprep.subr.mxu0 0.0
          %900 = vmatpush1.msra.mxu0 0.0
          %901 = vmatprep.subr.mxu0 0.0
          %902 = vmatpush1.msra.mxu0 0.0
          %903 = vmatprep.subr.mxu0 0.0
          %904 = vmatpush1.msra.mxu0 0.0
          %905 = vmatprep.subr.mxu0 0.0
          %906 = vmatpush1.msra.mxu0 0.0
          %907 = vmatprep.subr.mxu0 0.0
          %908 = vmatpush1.msra.mxu0 0.0
          %909 = vmatprep.subr.mxu0 0.0
          %910 = vmatpush1.msra.mxu0 0.0
          %911 = vmatprep.subr.mxu0 0.0
          %912 = vmatpush1.msra.mxu0 0.0
          %913 = vmatprep.subr.mxu0 0.0
          %914 = vmatpush1.msra.mxu0 0.0
          %915 = vmatprep.subr.mxu0 0.0
          %916 = vmatpush1.msra.mxu0 0.0
          %917 = vmatprep.subr.mxu0 0.0
          %918 = vmatpush1.msra.mxu0 0.0
          %919 = vmatprep.subr.mxu0 0.0
          %920 = vmatpush1.msra.mxu0 0.0
          %921 = vmatprep.subr.mxu0 0.0
          %922 = vmatpush1.msra.mxu0 0.0
          %923 = vmatprep.subr.mxu0 0.0
          %924 = vmatpush1.msra.mxu0 0.0
          %925 = vmatprep.subr.mxu0 0.0
          %926 = vmatpush1.msra.mxu0 0.0
          %927 = vmatprep.subr.mxu0 0.0
          %928 = vmatpush1.msra.mxu0 0.0
          %929 = vmatprep.subr.mxu0 0.0
          %930 = vmatpush1.msra.mxu0 0.0
          %931 = vmatprep.subr.mxu0 0.0
          %932 = vmatpush1.msra.mxu0 0.0
          %933 = vmatprep.subr.mxu0 0.0
          %934 = vmatpush1.msra.mxu0 0.0
          %935 = vmatprep.subr.mxu0 0.0
          %936 = vmatpush1.msra.mxu0 0.0
          %937 = vmatprep.subr.mxu0 0.0
          %938 = vmatpush1.msra.mxu0 0.0
          %939 = vmatprep.subr.mxu0 0.0
          %940 = vmatpush1.msra.mxu0 0.0
          %941 = vmatprep.subr.mxu0 0.0
          %942 = vmatpush1.msra.mxu0 0.0
          %943 = vmatprep.subr.mxu0 0.0
          %944 = vmatpush1.msra.mxu0 0.0
          %945 = vmatprep.subr.mxu0 0.0
          %946 = vmatpush1.msra.mxu0 0.0
          %947 = vmatprep.mubr.f32.mxu0 0.0
          %948 = vmatmul.mubr.f32.gmra.mrb[0].mxu0 %v881
          %v949 = vpop.f32.mrb[0].mxu0
          %v950 = vadd.f32 0.0, %v949
          %v951 = vpop.f32.mrb[0].mxu0
          %952 = vdwg.mxu0
          %v953 = vld [vmem:[%s7] sm:$0xff]
          %v954 = vld [vmem:[%s7 + $0x8] sm:$0xff]
          %v955 = vld [vmem:[%s7 + $0x10] sm:$0xff]
          %v956 = vld [vmem:[%s7 + $0x18] sm:$0xff]
          %v958 = vsel %vm661, %v953, 0
          %v961 = vsel %vm661, %v954, 0
          %v964 = vsel %vm661, %v955, 0
          %v967 = vsel %vm661, %v956, 0
          %969 = vmatprep.subr.mxu0 0.0
          %970 = vmatpush1.msra.mxu0 %v875
          %971 = vmatprep.subr.mxu0 0.0
          %972 = vmatpush1.msra.mxu0 %v876
          %973 = vmatprep.subr.mxu0 0.0
          %974 = vmatpush1.msra.mxu0 %v877
          %975 = vmatprep.subr.mxu0 0.0
          %976 = vmatpush1.msra.mxu0 %v878
          %977 = vmatprep.subr.mxu0 0.0
          %978 = vmatpush1.msra.mxu0 0.0
          %979 = vmatprep.subr.mxu0 0.0
          %980 = vmatpush1.msra.mxu0 0.0
          %981 = vmatprep.subr.mxu0 0.0
          %982 = vmatpush1.msra.mxu0 0.0
          %983 = vmatprep.subr.mxu0 0.0
          %984 = vmatpush1.msra.mxu0 0.0
          %985 = vmatprep.subr.mxu0 0.0
          %986 = vmatpush1.msra.mxu0 0.0
          %987 = vmatprep.subr.mxu0 0.0
          %988 = vmatpush1.msra.mxu0 0.0
          %989 = vmatprep.subr.mxu0 0.0
          %990 = vmatpush1.msra.mxu0 0.0
          %991 = vmatprep.subr.mxu0 0.0
          %992 = vmatpush1.msra.mxu0 0.0
          %993 = vmatprep.subr.mxu0 0.0
          %994 = vmatpush1.msra.mxu0 0.0
          %995 = vmatprep.subr.mxu0 0.0
          %996 = vmatpush1.msra.mxu0 0.0
          %997 = vmatprep.subr.mxu0 0.0
          %998 = vmatpush1.msra.mxu0 0.0
          %999 = vmatprep.subr.mxu0 0.0
          %1000 = vmatpush1.msra.mxu0 0.0
          %1001 = vmatprep.subr.mxu0 0.0
          %1002 = vmatpush1.msra.mxu0 0.0
          %1003 = vmatprep.subr.mxu0 0.0
          %1004 = vmatpush1.msra.mxu0 0.0
          %1005 = vmatprep.subr.mxu0 0.0
          %1006 = vmatpush1.msra.mxu0 0.0
          %1007 = vmatprep.subr.mxu0 0.0
          %1008 = vmatpush1.msra.mxu0 0.0
          %1009 = vmatprep.subr.mxu0 0.0
          %1010 = vmatpush1.msra.mxu0 0.0
          %1011 = vmatprep.subr.mxu0 0.0
          %1012 = vmatpush1.msra.mxu0 0.0
          %1013 = vmatprep.subr.mxu0 0.0
          %1014 = vmatpush1.msra.mxu0 0.0
          %1015 = vmatprep.subr.mxu0 0.0
          %1016 = vmatpush1.msra.mxu0 0.0
          %1017 = vmatprep.subr.mxu0 0.0
          %1018 = vmatpush1.msra.mxu0 0.0
          %1019 = vmatprep.subr.mxu0 0.0
          %1020 = vmatpush1.msra.mxu0 0.0
          %1021 = vmatprep.subr.mxu0 0.0
          %1022 = vmatpush1.msra.mxu0 0.0
          %1023 = vmatprep.subr.mxu0 0.0
          %1024 = vmatpush1.msra.mxu0 0.0
          %1025 = vmatprep.subr.mxu0 0.0
          %1026 = vmatpush1.msra.mxu0 0.0
          %1027 = vmatprep.subr.mxu0 0.0
          %1028 = vmatpush1.msra.mxu0 0.0
          %1029 = vmatprep.subr.mxu0 0.0
          %1030 = vmatpush1.msra.mxu0 0.0
          %1031 = vmatprep.subr.mxu0 0.0
          %1032 = vmatpush1.msra.mxu0 0.0
          %1033 = vmatprep.mubr.f32.mxu0 0.0
          %1034 = vmatmul.mubr.f32.gmra.mrb[0].mxu0 %v958
          %v1035 = vpop.f32.mrb[0].mxu0
          %v1036 = vadd.f32 0.0, %v1035
          %v1037 = vpop.f32.mrb[0].mxu0
          %1038 = vmatprep.mubr.f32.mxu0 0.0
          %1039 = vmatmul.mubr.f32.gmra.mrb[0].mxu0 %v961
          %v1040 = vpop.f32.mrb[0].mxu0
          %v1041 = vadd.f32 0.0, %v1040
          %v1042 = vpop.f32.mrb[0].mxu0
          %1043 = vmatprep.mubr.f32.mxu0 0.0
          %1044 = vmatmul.mubr.f32.gmra.mrb[0].mxu0 %v964
          %v1045 = vpop.f32.mrb[0].mxu0
          %v1046 = vadd.f32 0.0, %v1045
          %v1047 = vpop.f32.mrb[0].mxu0
          %1048 = vmatprep.mubr.f32.mxu0 0.0
          %1049 = vmatmul.mubr.f32.gmra.mrb[0].mxu0 %v967
          %v1050 = vpop.f32.mrb[0].mxu0
          %v1051 = vadd.f32 0.0, %v1050
          %v1052 = vpop.f32.mrb[0].mxu0
          %1053 = vdwg.mxu0
          %vm1054 = vcmask 7168
          %1055 = vst.msk [vmem:[#allocation4] sm:$0xff] %vm1054, 1.0
          %1056 = vst.msk [vmem:[#allocation5] sm:$0xff] %vm1054, 1.0
          %v1057 = vsel %vm759, %v950, -inf
          %1058 = vmax.xlane.f32.xlu0 %v1057
          %v1059 = vpop.xlane.xlu0 %1058
          %1060 = vst.msk [vmem:[#allocation4 + $0x8] sm:$0xff] %vm1054, %v1059
          %v1061 = vsel %vm759, %v950, inf
          %1062 = vmin.xlane.f32.xlu0 %v1061
          %v1063 = vpop.xlane.xlu0 %1062
          %1064 = vst.msk [vmem:[#allocation5 + $0x8] sm:$0xff] %vm1054, %v1063
          %v1065 = vld [vmem:[%s11] sm:$0xf]
          %v1066 = vld [vmem:[%s11 + $0x4] sm:$0xf]
          %v1067 = vld [vmem:[%s11 + $0x8] sm:$0xf]
          %v1068 = vld [vmem:[%s11 + $0xc] sm:$0xf]
          %v1069 = vld [vmem:[%s11 + $0x10] sm:$0xf]
          %v1070 = vld [vmem:[%s11 + $0x14] sm:$0xf]
          %v1071 = vld [vmem:[%s11 + $0x18] sm:$0xf]
          %v1072 = vld [vmem:[%s11 + $0x1c] sm:$0xf]
          %v1073 = vld [vmem:[%s11 + $0x20] sm:$0xf]
          %v1074 = vld [vmem:[%s11 + $0x24] sm:$0xf]
          %v1075 = vld [vmem:[%s11 + $0x28] sm:$0xf]
          %v1076 = vld [vmem:[%s11 + $0x2c] sm:$0xf]
          %v1077 = vld [vmem:[%s11 + $0x30] sm:$0xf]
          %v1078 = vld [vmem:[%s11 + $0x34] sm:$0xf]
          %v1079 = vld [vmem:[%s11 + $0x38] sm:$0xf]
          %v1080 = vld [vmem:[%s11 + $0x3c] sm:$0xf]
          %v1081 = vld [vmem:[%s11 + $0x40] sm:$0xf]
          %v1082 = vld [vmem:[%s11 + $0x44] sm:$0xf]
          %v1083 = vld [vmem:[%s11 + $0x48] sm:$0xf]
          %v1084 = vld [vmem:[%s11 + $0x4c] sm:$0xf]
          %v1085 = vld [vmem:[%s11 + $0x50] sm:$0xf]
          %v1086 = vld [vmem:[%s11 + $0x54] sm:$0xf]
          %v1087 = vld [vmem:[%s11 + $0x58] sm:$0xf]
          %v1088 = vld [vmem:[%s11 + $0x5c] sm:$0xf]
          %v1089 = vld [vmem:[%s11 + $0x60] sm:$0xf]
          %v1090 = vld [vmem:[%s11 + $0x64] sm:$0xf]
          %v1091 = vld [vmem:[%s11 + $0x68] sm:$0xf]
          %v1092 = vld [vmem:[%s11 + $0x6c] sm:$0xf]
          %v1093 = vld [vmem:[%s11 + $0x70] sm:$0xf]
          %v1094 = vld [vmem:[%s11 + $0x74] sm:$0xf]
          %v1095 = vld [vmem:[%s11 + $0x78] sm:$0xf]
          %v1096 = vld [vmem:[%s11 + $0x7c] sm:$0xf]
          %v1097 = vld [vmem:[%s11 + $0x80] sm:$0xf]
          %v1098 = vld [vmem:[%s11 + $0x84] sm:$0xf]
          %v1099 = vld [vmem:[%s11 + $0x88] sm:$0xf]
          %v1100 = vld [vmem:[%s11 + $0x8c] sm:$0xf]
          %v1101 = vld [vmem:[%s11 + $0x90] sm:$0xf]
          %v1102 = vld [vmem:[%s11 + $0x94] sm:$0xf]
          %v1103 = vld [vmem:[%s11 + $0x98] sm:$0xf]
          %v1104 = vld [vmem:[%s11 + $0x9c] sm:$0xf]
          %v1105 = vld [vmem:[%s11 + $0xa0] sm:$0xf]
          %v1106 = vld [vmem:[%s11 + $0xa4] sm:$0xf]
          %v1107 = vld [vmem:[%s11 + $0xa8] sm:$0xf]
          %v1108 = vld [vmem:[%s11 + $0xac] sm:$0xf]
          %v1109 = vld [vmem:[%s11 + $0xb0] sm:$0xf]
          %v1110 = vld [vmem:[%s11 + $0xb4] sm:$0xf]
          %v1111 = vld [vmem:[%s11 + $0xb8] sm:$0xf]
          %v1112 = vld [vmem:[%s11 + $0xbc] sm:$0xf]
          %v1113 = vld [vmem:[%s11 + $0xc0] sm:$0xf]
          %v1114 = vld [vmem:[%s11 + $0xc4] sm:$0xf]
          %v1115 = vld [vmem:[%s11 + $0xc8] sm:$0xf]
          %v1116 = vld [vmem:[%s11 + $0xcc] sm:$0xf]
          %v1117 = vld [vmem:[%s11 + $0xd0] sm:$0xf]
          %v1118 = vld [vmem:[%s11 + $0xd4] sm:$0xf]
          %v1119 = vld [vmem:[%s11 + $0xd8] sm:$0xf]
          %v1120 = vld [vmem:[%s11 + $0xdc] sm:$0xf]
          %v1121 = vld [vmem:[%s11 + $0xe0] sm:$0xf]
          %v1122 = vld [vmem:[%s11 + $0xe4] sm:$0xf]
          %v1123 = vld [vmem:[%s11 + $0xe8] sm:$0xf]
          %v1124 = vld [vmem:[%s11 + $0xec] sm:$0xf]
          %v1125 = vld [vmem:[%s11 + $0xf0] sm:$0xf]
          %v1126 = vld [vmem:[%s11 + $0xf4] sm:$0xf]
          %v1127 = vld [vmem:[%s11 + $0xf8] sm:$0xf]
          %v1128 = vld [vmem:[%s11 + $0xfc] sm:$0xf]
          %v1129 = vunpack.c.l.bf16 %v1065
          %v1130 = vunpack.c.l.bf16 %v1066
          %v1131 = vunpack.c.l.bf16 %v1067
          %v1132 = vunpack.c.l.bf16 %v1068
          %v1133 = vunpack.c.l.bf16 %v1069
          %v1134 = vunpack.c.l.bf16 %v1070
          %v1135 = vunpack.c.l.bf16 %v1071
          %v1136 = vunpack.c.l.bf16 %v1072
          %v1137 = vunpack.c.l.bf16 %v1073
          %v1138 = vunpack.c.l.bf16 %v1074
          %v1139 = vunpack.c.l.bf16 %v1075
          %v1140 = vunpack.c.l.bf16 %v1076
          %v1141 = vunpack.c.l.bf16 %v1077
          %v1142 = vunpack.c.l.bf16 %v1078
          %v1143 = vunpack.c.l.bf16 %v1079
          %v1144 = vunpack.c.l.bf16 %v1080
          %v1145 = vunpack.c.l.bf16 %v1081
          %v1146 = vunpack.c.l.bf16 %v1082
          %v1147 = vunpack.c.l.bf16 %v1083
          %v1148 = vunpack.c.l.bf16 %v1084
          %v1149 = vunpack.c.l.bf16 %v1085
          %v1150 = vunpack.c.l.bf16 %v1086
          %v1151 = vunpack.c.l.bf16 %v1087
          %v1152 = vunpack.c.l.bf16 %v1088
          %v1153 = vunpack.c.l.bf16 %v1089
          %v1154 = vunpack.c.l.bf16 %v1090
          %v1155 = vunpack.c.l.bf16 %v1091
          %v1156 = vunpack.c.l.bf16 %v1092
          %v1157 = vunpack.c.l.bf16 %v1093
          %v1158 = vunpack.c.l.bf16 %v1094
          %v1159 = vunpack.c.l.bf16 %v1095
          %v1160 = vunpack.c.l.bf16 %v1096
          %v1161 = vunpack.c.l.bf16 %v1097
          %v1162 = vunpack.c.l.bf16 %v1098
          %v1163 = vunpack.c.l.bf16 %v1099
          %v1164 = vunpack.c.l.bf16 %v1100
          %v1165 = vunpack.c.l.bf16 %v1101
          %v1166 = vunpack.c.l.bf16 %v1102
          %v1167 = vunpack.c.l.bf16 %v1103
          %v1168 = vunpack.c.l.bf16 %v1104
          %v1169 = vunpack.c.l.bf16 %v1105
          %v1170 = vunpack.c.l.bf16 %v1106
          %v1171 = vunpack.c.l.bf16 %v1107
          %v1172 = vunpack.c.l.bf16 %v1108
          %v1173 = vunpack.c.l.bf16 %v1109
          %v1174 = vunpack.c.l.bf16 %v1110
          %v1175 = vunpack.c.l.bf16 %v1111
          %v1176 = vunpack.c.l.bf16 %v1112
          %v1177 = vunpack.c.l.bf16 %v1113
          %v1178 = vunpack.c.l.bf16 %v1114
          %v1179 = vunpack.c.l.bf16 %v1115
          %v1180 = vunpack.c.l.bf16 %v1116
          %v1181 = vunpack.c.l.bf16 %v1117
          %v1182 = vunpack.c.l.bf16 %v1118
          %v1183 = vunpack.c.l.bf16 %v1119
          %v1184 = vunpack.c.l.bf16 %v1120
          %v1185 = vunpack.c.l.bf16 %v1121
          %v1186 = vunpack.c.l.bf16 %v1122
          %v1187 = vunpack.c.l.bf16 %v1123
          %v1188 = vunpack.c.l.bf16 %v1124
          %v1189 = vunpack.c.l.bf16 %v1125
          %v1190 = vunpack.c.l.bf16 %v1126
          %v1191 = vunpack.c.l.bf16 %v1127
          %v1192 = vunpack.c.l.bf16 %v1128
          %v1193 = vld [vmem:[%s14] sm:$0xf]
          %v1194 = vld [vmem:[%s14 + $0x4] sm:$0xf]
          %v1195 = vld [vmem:[%s14 + $0x8] sm:$0xf]
          %v1196 = vld [vmem:[%s14 + $0xc] sm:$0xf]
          %v1197 = vld [vmem:[%s14 + $0x10] sm:$0xf]
          %v1198 = vld [vmem:[%s14 + $0x14] sm:$0xf]
          %v1199 = vld [vmem:[%s14 + $0x18] sm:$0xf]
          %v1200 = vld [vmem:[%s14 + $0x1c] sm:$0xf]
          %v1201 = vld [vmem:[%s14 + $0x20] sm:$0xf]
          %v1202 = vld [vmem:[%s14 + $0x24] sm:$0xf]
          %v1203 = vld [vmem:[%s14 + $0x28] sm:$0xf]
          %v1204 = vld [vmem:[%s14 + $0x2c] sm:$0xf]
          %v1205 = vld [vmem:[%s14 + $0x30] sm:$0xf]
          %v1206 = vld [vmem:[%s14 + $0x34] sm:$0xf]
          %v1207 = vld [vmem:[%s14 + $0x38] sm:$0xf]
          %v1208 = vld [vmem:[%s14 + $0x3c] sm:$0xf]
          %v1209 = vld [vmem:[%s14 + $0x40] sm:$0xf]
          %v1210 = vld [vmem:[%s14 + $0x44] sm:$0xf]
          %v1211 = vld [vmem:[%s14 + $0x48] sm:$0xf]
          %v1212 = vld [vmem:[%s14 + $0x4c] sm:$0xf]
          %v1213 = vld [vmem:[%s14 + $0x50] sm:$0xf]
          %v1214 = vld [vmem:[%s14 + $0x54] sm:$0xf]
          %v1215 = vld [vmem:[%s14 + $0x58] sm:$0xf]
          %v1216 = vld [vmem:[%s14 + $0x5c] sm:$0xf]
          %v1217 = vld [vmem:[%s14 + $0x60] sm:$0xf]
          %v1218 = vld [vmem:[%s14 + $0x64] sm:$0xf]
          %v1219 = vld [vmem:[%s14 + $0x68] sm:$0xf]
          %v1220 = vld [vmem:[%s14 + $0x6c] sm:$0xf]
          %v1221 = vld [vmem:[%s14 + $0x70] sm:$0xf]
          %v1222 = vld [vmem:[%s14 + $0x74] sm:$0xf]
          %v1223 = vld [vmem:[%s14 + $0x78] sm:$0xf]
          %v1224 = vld [vmem:[%s14 + $0x7c] sm:$0xf]
          %v1225 = vld [vmem:[%s14 + $0x80] sm:$0xf]
          %v1226 = vld [vmem:[%s14 + $0x84] sm:$0xf]
          %v1227 = vld [vmem:[%s14 + $0x88] sm:$0xf]
          %v1228 = vld [vmem:[%s14 + $0x8c] sm:$0xf]
          %v1229 = vld [vmem:[%s14 + $0x90] sm:$0xf]
          %v1230 = vld [vmem:[%s14 + $0x94] sm:$0xf]
          %v1231 = vld [vmem:[%s14 + $0x98] sm:$0xf]
          %v1232 = vld [vmem:[%s14 + $0x9c] sm:$0xf]
          %v1233 = vld [vmem:[%s14 + $0xa0] sm:$0xf]
          %v1234 = vld [vmem:[%s14 + $0xa4] sm:$0xf]
          %v1235 = vld [vmem:[%s14 + $0xa8] sm:$0xf]
          %v1236 = vld [vmem:[%s14 + $0xac] sm:$0xf]
          %v1237 = vld [vmem:[%s14 + $0xb0] sm:$0xf]
          %v1238 = vld [vmem:[%s14 + $0xb4] sm:$0xf]
          %v1239 = vld [vmem:[%s14 + $0xb8] sm:$0xf]
          %v1240 = vld [vmem:[%s14 + $0xbc] sm:$0xf]
          %v1241 = vld [vmem:[%s14 + $0xc0] sm:$0xf]
          %v1242 = vld [vmem:[%s14 + $0xc4] sm:$0xf]
          %v1243 = vld [vmem:[%s14 + $0xc8] sm:$0xf]
          %v1244 = vld [vmem:[%s14 + $0xcc] sm:$0xf]
          %v1245 = vld [vmem:[%s14 + $0xd0] sm:$0xf]
          %v1246 = vld [vmem:[%s14 + $0xd4] sm:$0xf]
          %v1247 = vld [vmem:[%s14 + $0xd8] sm:$0xf]
          %v1248 = vld [vmem:[%s14 + $0xdc] sm:$0xf]
          %v1249 = vld [vmem:[%s14 + $0xe0] sm:$0xf]
          %v1250 = vld [vmem:[%s14 + $0xe4] sm:$0xf]
          %v1251 = vld [vmem:[%s14 + $0xe8] sm:$0xf]
          %v1252 = vld [vmem:[%s14 + $0xec] sm:$0xf]
          %v1253 = vld [vmem:[%s14 + $0xf0] sm:$0xf]
          %v1254 = vld [vmem:[%s14 + $0xf4] sm:$0xf]
          %v1255 = vld [vmem:[%s14 + $0xf8] sm:$0xf]
          %v1256 = vld [vmem:[%s14 + $0xfc] sm:$0xf]
          %v1257 = vunpack.c.l.bf16 %v1193
          %v1258 = vunpack.c.l.bf16 %v1194
          %v1259 = vunpack.c.l.bf16 %v1195
          %v1260 = vunpack.c.l.bf16 %v1196
          %v1261 = vunpack.c.l.bf16 %v1197
          %v1262 = vunpack.c.l.bf16 %v1198
          %v1263 = vunpack.c.l.bf16 %v1199
          %v1264 = vunpack.c.l.bf16 %v1200
          %v1265 = vunpack.c.l.bf16 %v1201
          %v1266 = vunpack.c.l.bf16 %v1202
          %v1267 = vunpack.c.l.bf16 %v1203
          %v1268 = vunpack.c.l.bf16 %v1204
          %v1269 = vunpack.c.l.bf16 %v1205
          %v1270 = vunpack.c.l.bf16 %v1206
          %v1271 = vunpack.c.l.bf16 %v1207
          %v1272 = vunpack.c.l.bf16 %v1208
          %v1273 = vunpack.c.l.bf16 %v1209
          %v1274 = vunpack.c.l.bf16 %v1210
          %v1275 = vunpack.c.l.bf16 %v1211
          %v1276 = vunpack.c.l.bf16 %v1212
          %v1277 = vunpack.c.l.bf16 %v1213
          %v1278 = vunpack.c.l.bf16 %v1214
          %v1279 = vunpack.c.l.bf16 %v1215
          %v1280 = vunpack.c.l.bf16 %v1216
          %v1281 = vunpack.c.l.bf16 %v1217
          %v1282 = vunpack.c.l.bf16 %v1218
          %v1283 = vunpack.c.l.bf16 %v1219
          %v1284 = vunpack.c.l.bf16 %v1220
          %v1285 = vunpack.c.l.bf16 %v1221
          %v1286 = vunpack.c.l.bf16 %v1222
          %v1287 = vunpack.c.l.bf16 %v1223
          %v1288 = vunpack.c.l.bf16 %v1224
          %v1289 = vunpack.c.l.bf16 %v1225
          %v1290 = vunpack.c.l.bf16 %v1226
          %v1291 = vunpack.c.l.bf16 %v1227
          %v1292 = vunpack.c.l.bf16 %v1228
          %v1293 = vunpack.c.l.bf16 %v1229
          %v1294 = vunpack.c.l.bf16 %v1230
          %v1295 = vunpack.c.l.bf16 %v1231
          %v1296 = vunpack.c.l.bf16 %v1232
          %v1297 = vunpack.c.l.bf16 %v1233
          %v1298 = vunpack.c.l.bf16 %v1234
          %v1299 = vunpack.c.l.bf16 %v1235
          %v1300 = vunpack.c.l.bf16 %v1236
          %v1301 = vunpack.c.l.bf16 %v1237
          %v1302 = vunpack.c.l.bf16 %v1238
          %v1303 = vunpack.c.l.bf16 %v1239
          %v1304 = vunpack.c.l.bf16 %v1240
          %v1305 = vunpack.c.l.bf16 %v1241
          %v1306 = vunpack.c.l.bf16 %v1242
          %v1307 = vunpack.c.l.bf16 %v1243
          %v1308 = vunpack.c.l.bf16 %v1244
          %v1309 = vunpack.c.l.bf16 %v1245
          %v1310 = vunpack.c.l.bf16 %v1246
          %v1311 = vunpack.c.l.bf16 %v1247
          %v1312 = vunpack.c.l.bf16 %v1248
          %v1313 = vunpack.c.l.bf16 %v1249
          %v1314 = vunpack.c.l.bf16 %v1250
          %v1315 = vunpack.c.l.bf16 %v1251
          %v1316 = vunpack.c.l.bf16 %v1252
          %v1317 = vunpack.c.l.bf16 %v1253
          %v1318 = vunpack.c.l.bf16 %v1254
          %v1319 = vunpack.c.l.bf16 %v1255
          %v1320 = vunpack.c.l.bf16 %v1256
          %v1322 = vsel %vm759, %v1257, 0
          %v1325 = vsel %vm759, %v1258, 0
          %v1328 = vsel %vm759, %v1259, 0
          %v1331 = vsel %vm759, %v1260, 0
          %v1334 = vsel %vm759, %v1261, 0
          %v1337 = vsel %vm759, %v1262, 0
          %v1340 = vsel %vm759, %v1263, 0
          %v1343 = vsel %vm759, %v1264, 0
          %v1346 = vsel %vm759, %v1265, 0
          %v1349 = vsel %vm759, %v1266, 0
          %v1352 = vsel %vm759, %v1267, 0
          %v1355 = vsel %vm759, %v1268, 0
          %v1358 = vsel %vm759, %v1269, 0
          %v1361 = vsel %vm759, %v1270, 0
          %v1364 = vsel %vm759, %v1271, 0
          %v1367 = vsel %vm759, %v1272, 0
          %v1370 = vsel %vm759, %v1273, 0
          %v1373 = vsel %vm759, %v1274, 0
          %v1376 = vsel %vm759, %v1275, 0
          %v1379 = vsel %vm759, %v1276, 0
          %v1382 = vsel %vm759, %v1277, 0
          %v1385 = vsel %vm759, %v1278, 0
          %v1388 = vsel %vm759, %v1279, 0
          %v1391 = vsel %vm759, %v1280, 0
          %v1394 = vsel %vm759, %v1281, 0
          %v1397 = vsel %vm759, %v1282, 0
          %v1400 = vsel %vm759, %v1283, 0
          %v1403 = vsel %vm759, %v1284, 0
          %v1406 = vsel %vm759, %v1285, 0
          %v1409 = vsel %vm759, %v1286, 0
          %v1412 = vsel %vm759, %v1287, 0
          %v1415 = vsel %vm759, %v1288, 0
          %v1418 = vsel %vm759, %v1289, 0
          %v1421 = vsel %vm759, %v1290, 0
          %v1424 = vsel %vm759, %v1291, 0
          %v1427 = vsel %vm759, %v1292, 0
          %v1430 = vsel %vm759, %v1293, 0
          %v1433 = vsel %vm759, %v1294, 0
          %v1436 = vsel %vm759, %v1295, 0
          %v1439 = vsel %vm759, %v1296, 0
          %v1442 = vsel %vm759, %v1297, 0
          %v1445 = vsel %vm759, %v1298, 0
          %v1448 = vsel %vm759, %v1299, 0
          %v1451 = vsel %vm759, %v1300, 0
          %v1454 = vsel %vm759, %v1301, 0
          %v1457 = vsel %vm759, %v1302, 0
          %v1460 = vsel %vm759, %v1303, 0
          %v1463 = vsel %vm759, %v1304, 0
          %v1466 = vsel %vm759, %v1305, 0
          %v1469 = vsel %vm759, %v1306, 0
          %v1472 = vsel %vm759, %v1307, 0
          %v1475 = vsel %vm759, %v1308, 0
          %v1478 = vsel %vm759, %v1309, 0
          %v1481 = vsel %vm759, %v1310, 0
          %v1484 = vsel %vm759, %v1311, 0
          %v1487 = vsel %vm759, %v1312, 0
          %v1490 = vsel %vm759, %v1313, 0
          %v1493 = vsel %vm759, %v1314, 0
          %v1496 = vsel %vm759, %v1315, 0
          %v1499 = vsel %vm759, %v1316, 0
          %v1502 = vsel %vm759, %v1317, 0
          %v1505 = vsel %vm759, %v1318, 0
          %v1508 = vsel %vm759, %v1319, 0
          %v1511 = vsel %vm759, %v1320, 0
          %v1514 = vsel %vm759, %v950, 0
          %1516 = vmatprep.subr.mxu0 0.0
          %1517 = vmatpush1.xpose.msra.mxu0 %v1514
          %1518 = vmatprep.subr.mxu0 0.0
          %1519 = vmatpush1.xpose.msra.mxu0 0.0
          %1520 = vmatprep.subr.mxu0 0.0
          %1521 = vmatpush1.xpose.msra.mxu0 0.0
          %1522 = vmatprep.subr.mxu0 0.0
          %1523 = vmatpush1.xpose.msra.mxu0 0.0
          %1524 = vmatprep.subr.mxu0 0.0
          %1525 = vmatpush1.xpose.msra.mxu0 0.0
          %1526 = vmatprep.subr.mxu0 0.0
          %1527 = vmatpush1.xpose.msra.mxu0 0.0
          %1528 = vmatprep.subr.mxu0 0.0
          %1529 = vmatpush1.xpose.msra.mxu0 0.0
          %1530 = vmatprep.subr.mxu0 0.0
          %1531 = vmatpush1.xpose.msra.mxu0 0.0
          %1532 = vmatprep.subr.mxu0 0.0
          %1533 = vmatpush1.xpose.msra.mxu0 0.0
          %1534 = vmatprep.subr.mxu0 0.0
          %1535 = vmatpush1.xpose.msra.mxu0 0.0
          %1536 = vmatprep.subr.mxu0 0.0
          %1537 = vmatpush1.xpose.msra.mxu0 0.0
          %1538 = vmatprep.subr.mxu0 0.0
          %1539 = vmatpush1.xpose.msra.mxu0 0.0
          %1540 = vmatprep.subr.mxu0 0.0
          %1541 = vmatpush1.xpose.msra.mxu0 0.0
          %1542 = vmatprep.subr.mxu0 0.0
          %1543 = vmatpush1.xpose.msra.mxu0 0.0
          %1544 = vmatprep.subr.mxu0 0.0
          %1545 = vmatpush1.xpose.msra.mxu0 0.0
          %1546 = vmatprep.subr.mxu0 0.0
          %1547 = vmatpush1.xpose.msra.mxu0 0.0
          %1548 = vmatprep.subr.mxu0 0.0
          %1549 = vmatpush1.xpose.msra.mxu0 0.0
          %1550 = vmatprep.subr.mxu0 0.0
          %1551 = vmatpush1.xpose.msra.mxu0 0.0
          %1552 = vmatprep.subr.mxu0 0.0
          %1553 = vmatpush1.xpose.msra.mxu0 0.0
          %1554 = vmatprep.subr.mxu0 0.0
          %1555 = vmatpush1.xpose.msra.mxu0 0.0
          %1556 = vmatprep.subr.mxu0 0.0
          %1557 = vmatpush1.xpose.msra.mxu0 0.0
          %1558 = vmatprep.subr.mxu0 0.0
          %1559 = vmatpush1.xpose.msra.mxu0 0.0
          %1560 = vmatprep.subr.mxu0 0.0
          %1561 = vmatpush1.xpose.msra.mxu0 0.0
          %1562 = vmatprep.subr.mxu0 0.0
          %1563 = vmatpush1.xpose.msra.mxu0 0.0
          %1564 = vmatprep.subr.mxu0 0.0
          %1565 = vmatpush1.xpose.msra.mxu0 0.0
          %1566 = vmatprep.subr.mxu0 0.0
          %1567 = vmatpush1.xpose.msra.mxu0 0.0
          %1568 = vmatprep.subr.mxu0 0.0
          %1569 = vmatpush1.xpose.msra.mxu0 0.0
          %1570 = vmatprep.subr.mxu0 0.0
          %1571 = vmatpush1.xpose.msra.mxu0 0.0
          %1572 = vmatprep.subr.mxu0 0.0
          %1573 = vmatpush1.xpose.msra.mxu0 0.0
          %1574 = vmatprep.subr.mxu0 0.0
          %1575 = vmatpush1.xpose.msra.mxu0 0.0
          %1576 = vmatprep.subr.mxu0 0.0
          %1577 = vmatpush1.xpose.msra.mxu0 0.0
          %1578 = vmatprep.subr.mxu0 0.0
          %1579 = vmatpush1.xpose.msra.mxu0 0.0
          %1580 = vmatprep.mubr.f32.mxu0 0.0
          %1581 = vmatmul.mubr.f32.gmra.mrb[0].mxu0 %v1322
          %v1582 = vpop.f32.mrb[0].mxu0
          %v1583 = vadd.f32 0.0, %v1582
          %v1584 = vpop.f32.mrb[0].mxu0
          %1585 = vmatprep.mubr.f32.mxu0 0.0
          %1586 = vmatmul.mubr.f32.gmra.mrb[0].mxu0 %v1325
          %v1587 = vpop.f32.mrb[0].mxu0
          %v1588 = vadd.f32 0.0, %v1587
          %v1589 = vpop.f32.mrb[0].mxu0
          %1590 = vmatprep.mubr.f32.mxu0 0.0
          %1591 = vmatmul.mubr.f32.gmra.mrb[0].mxu0 %v1328
          %v1592 = vpop.f32.mrb[0].mxu0
          %v1593 = vadd.f32 0.0, %v1592
          %v1594 = vpop.f32.mrb[0].mxu0
          %1595 = vmatprep.mubr.f32.mxu0 0.0
          %1596 = vmatmul.mubr.f32.gmra.mrb[0].mxu0 %v1331
          %v1597 = vpop.f32.mrb[0].mxu0
          %v1598 = vadd.f32 0.0, %v1597
          %v1599 = vpop.f32.mrb[0].mxu0
          %1600 = vmatprep.mubr.f32.mxu0 0.0
          %1601 = vmatmul.mubr.f32.gmra.mrb[0].mxu0 %v1334
          %v1602 = vpop.f32.mrb[0].mxu0
          %v1603 = vadd.f32 0.0, %v1602
          %v1604 = vpop.f32.mrb[0].mxu0
          %1605 = vmatprep.mubr.f32.mxu0 0.0
          %1606 = vmatmul.mubr.f32.gmra.mrb[0].mxu0 %v1337
          %v1607 = vpop.f32.mrb[0].mxu0
          %v1608 = vadd.f32 0.0, %v1607
          %v1609 = vpop.f32.mrb[0].mxu0
          %1610 = vmatprep.mubr.f32.mxu0 0.0
          %1611 = vmatmul.mubr.f32.gmra.mrb[0].mxu0 %v1340
          %v1612 = vpop.f32.mrb[0].mxu0
          %v1613 = vadd.f32 0.0, %v1612
          %v1614 = vpop.f32.mrb[0].mxu0
          %1615 = vmatprep.mubr.f32.mxu0 0.0
          %1616 = vmatmul.mubr.f32.gmra.mrb[0].mxu0 %v1343
          %v1617 = vpop.f32.mrb[0].mxu0
          %v1618 = vadd.f32 0.0, %v1617
          %v1619 = vpop.f32.mrb[0].mxu0
          %1620 = vmatprep.mubr.f32.mxu0 0.0
          %1621 = vmatmul.mubr.f32.gmra.mrb[0].mxu0 %v1346
          %v1622 = vpop.f32.mrb[0].mxu0
          %v1623 = vadd.f32 0.0, %v1622
          %v1624 = vpop.f32.mrb[0].mxu0
          %1625 = vmatprep.mubr.f32.mxu0 0.0
          %1626 = vmatmul.mubr.f32.gmra.mrb[0].mxu0 %v1349
          %v1627 = vpop.f32.mrb[0].mxu0
          %v1628 = vadd.f32 0.0, %v1627
          %v1629 = vpop.f32.mrb[0].mxu0
          %1630 = vmatprep.mubr.f32.mxu0 0.0
          %1631 = vmatmul.mubr.f32.gmra.mrb[0].mxu0 %v1352
          %v1632 = vpop.f32.mrb[0].mxu0
          %v1633 = vadd.f32 0.0, %v1632
          %v1634 = vpop.f32.mrb[0].mxu0
          %1635 = vmatprep.mubr.f32.mxu0 0.0
          %1636 = vmatmul.mubr.f32.gmra.mrb[0].mxu0 %v1355
          %v1637 = vpop.f32.mrb[0].mxu0
          %v1638 = vadd.f32 0.0, %v1637
          %v1639 = vpop.f32.mrb[0].mxu0
          %1640 = vmatprep.mubr.f32.mxu0 0.0
          %1641 = vmatmul.mubr.f32.gmra.mrb[0].mxu0 %v1358
          %v1642 = vpop.f32.mrb[0].mxu0
          %v1643 = vadd.f32 0.0, %v1642
          %v1644 = vpop.f32.mrb[0].mxu0
          %1645 = vmatprep.mubr.f32.mxu0 0.0
          %1646 = vmatmul.mubr.f32.gmra.mrb[0].mxu0 %v1361
          %v1647 = vpop.f32.mrb[0].mxu0
          %v1648 = vadd.f32 0.0, %v1647
          %v1649 = vpop.f32.mrb[0].mxu0
          %1650 = vmatprep.mubr.f32.mxu0 0.0
          %1651 = vmatmul.mubr.f32.gmra.mrb[0].mxu0 %v1364
          %v1652 = vpop.f32.mrb[0].mxu0
          %v1653 = vadd.f32 0.0, %v1652
          %v1654 = vpop.f32.mrb[0].mxu0
          %1655 = vmatprep.mubr.f32.mxu0 0.0
          %1656 = vmatmul.mubr.f32.gmra.mrb[0].mxu0 %v1367
          %v1657 = vpop.f32.mrb[0].mxu0
          %v1658 = vadd.f32 0.0, %v1657
          %v1659 = vpop.f32.mrb[0].mxu0
          %1660 = vmatprep.mubr.f32.mxu0 0.0
          %1661 = vmatmul.mubr.f32.gmra.mrb[0].mxu0 %v1370
          %v1662 = vpop.f32.mrb[0].mxu0
          %v1663 = vadd.f32 0.0, %v1662
          %v1664 = vpop.f32.mrb[0].mxu0
          %1665 = vmatprep.mubr.f32.mxu0 0.0
          %1666 = vmatmul.mubr.f32.gmra.mrb[0].mxu0 %v1373
          %v1667 = vpop.f32.mrb[0].mxu0
          %v1668 = vadd.f32 0.0, %v1667
          %v1669 = vpop.f32.mrb[0].mxu0
          %1670 = vmatprep.mubr.f32.mxu0 0.0
          %1671 = vmatmul.mubr.f32.gmra.mrb[0].mxu0 %v1376
          %v1672 = vpop.f32.mrb[0].mxu0
          %v1673 = vadd.f32 0.0, %v1672
          %v1674 = vpop.f32.mrb[0].mxu0
          %1675 = vmatprep.mubr.f32.mxu0 0.0
          %1676 = vmatmul.mubr.f32.gmra.mrb[0].mxu0 %v1379
          %v1677 = vpop.f32.mrb[0].mxu0
          %v1678 = vadd.f32 0.0, %v1677
          %v1679 = vpop.f32.mrb[0].mxu0
          %1680 = vmatprep.mubr.f32.mxu0 0.0
          %1681 = vmatmul.mubr.f32.gmra.mrb[0].mxu0 %v1382
          %v1682 = vpop.f32.mrb[0].mxu0
          %v1683 = vadd.f32 0.0, %v1682
          %v1684 = vpop.f32.mrb[0].mxu0
          %1685 = vmatprep.mubr.f32.mxu0 0.0
          %1686 = vmatmul.mubr.f32.gmra.mrb[0].mxu0 %v1385
          %v1687 = vpop.f32.mrb[0].mxu0
          %v1688 = vadd.f32 0.0, %v1687
          %v1689 = vpop.f32.mrb[0].mxu0
          %1690 = vmatprep.mubr.f32.mxu0 0.0
          %1691 = vmatmul.mubr.f32.gmra.mrb[0].mxu0 %v1388
          %v1692 = vpop.f32.mrb[0].mxu0
          %v1693 = vadd.f32 0.0, %v1692
          %v1694 = vpop.f32.mrb[0].mxu0
          %1695 = vmatprep.mubr.f32.mxu0 0.0
          %1696 = vmatmul.mubr.f32.gmra.mrb[0].mxu0 %v1391
          %v1697 = vpop.f32.mrb[0].mxu0
          %v1698 = vadd.f32 0.0, %v1697
          %v1699 = vpop.f32.mrb[0].mxu0
          %1700 = vmatprep.mubr.f32.mxu0 0.0
          %1701 = vmatmul.mubr.f32.gmra.mrb[0].mxu0 %v1394
          %v1702 = vpop.f32.mrb[0].mxu0
          %v1703 = vadd.f32 0.0, %v1702
          %v1704 = vpop.f32.mrb[0].mxu0
          %1705 = vmatprep.mubr.f32.mxu0 0.0
          %1706 = vmatmul.mubr.f32.gmra.mrb[0].mxu0 %v1397
          %v1707 = vpop.f32.mrb[0].mxu0
          %v1708 = vadd.f32 0.0, %v1707
          %v1709 = vpop.f32.mrb[0].mxu0
          %1710 = vmatprep.mubr.f32.mxu0 0.0
          %1711 = vmatmul.mubr.f32.gmra.mrb[0].mxu0 %v1400
          %v1712 = vpop.f32.mrb[0].mxu0
          %v1713 = vadd.f32 0.0, %v1712
          %v1714 = vpop.f32.mrb[0].mxu0
          %1715 = vmatprep.mubr.f32.mxu0 0.0
          %1716 = vmatmul.mubr.f32.gmra.mrb[0].mxu0 %v1403
          %v1717 = vpop.f32.mrb[0].mxu0
          %v1718 = vadd.f32 0.0, %v1717
          %v1719 = vpop.f32.mrb[0].mxu0
          %1720 = vmatprep.mubr.f32.mxu0 0.0
          %1721 = vmatmul.mubr.f32.gmra.mrb[0].mxu0 %v1406
          %v1722 = vpop.f32.mrb[0].mxu0
          %v1723 = vadd.f32 0.0, %v1722
          %v1724 = vpop.f32.mrb[0].mxu0
          %1725 = vmatprep.mubr.f32.mxu0 0.0
          %1726 = vmatmul.mubr.f32.gmra.mrb[0].mxu0 %v1409
          %v1727 = vpop.f32.mrb[0].mxu0
          %v1728 = vadd.f32 0.0, %v1727
          %v1729 = vpop.f32.mrb[0].mxu0
          %1730 = vmatprep.mubr.f32.mxu0 0.0
          %1731 = vmatmul.mubr.f32.gmra.mrb[0].mxu0 %v1412
          %v1732 = vpop.f32.mrb[0].mxu0
          %v1733 = vadd.f32 0.0, %v1732
          %v1734 = vpop.f32.mrb[0].mxu0
          %1735 = vmatprep.mubr.f32.mxu0 0.0
          %1736 = vmatmul.mubr.f32.gmra.mrb[0].mxu0 %v1415
          %v1737 = vpop.f32.mrb[0].mxu0
          %v1738 = vadd.f32 0.0, %v1737
          %v1739 = vpop.f32.mrb[0].mxu0
          %1740 = vmatprep.mubr.f32.mxu0 0.0
          %1741 = vmatmul.mubr.f32.gmra.mrb[0].mxu0 %v1418
          %v1742 = vpop.f32.mrb[0].mxu0
          %v1743 = vadd.f32 0.0, %v1742
          %v1744 = vpop.f32.mrb[0].mxu0
          %1745 = vmatprep.mubr.f32.mxu0 0.0
          %1746 = vmatmul.mubr.f32.gmra.mrb[0].mxu0 %v1421
          %v1747 = vpop.f32.mrb[0].mxu0
          %v1748 = vadd.f32 0.0, %v1747
          %v1749 = vpop.f32.mrb[0].mxu0
          %1750 = vmatprep.mubr.f32.mxu0 0.0
          %1751 = vmatmul.mubr.f32.gmra.mrb[0].mxu0 %v1424
          %v1752 = vpop.f32.mrb[0].mxu0
          %v1753 = vadd.f32 0.0, %v1752
          %v1754 = vpop.f32.mrb[0].mxu0
          %1755 = vmatprep.mubr.f32.mxu0 0.0
          %1756 = vmatmul.mubr.f32.gmra.mrb[0].mxu0 %v1427
          %v1757 = vpop.f32.mrb[0].mxu0
          %v1758 = vadd.f32 0.0, %v1757
          %v1759 = vpop.f32.mrb[0].mxu0
          %1760 = vmatprep.mubr.f32.mxu0 0.0
          %1761 = vmatmul.mubr.f32.gmra.mrb[0].mxu0 %v1430
          %v1762 = vpop.f32.mrb[0].mxu0
          %v1763 = vadd.f32 0.0, %v1762
          %v1764 = vpop.f32.mrb[0].mxu0
          %1765 = vmatprep.mubr.f32.mxu0 0.0
          %1766 = vmatmul.mubr.f32.gmra.mrb[0].mxu0 %v1433
          %v1767 = vpop.f32.mrb[0].mxu0
          %v1768 = vadd.f32 0.0, %v1767
          %v1769 = vpop.f32.mrb[0].mxu0
          %1770 = vmatprep.mubr.f32.mxu0 0.0
          %1771 = vmatmul.mubr.f32.gmra.mrb[0].mxu0 %v1436
          %v1772 = vpop.f32.mrb[0].mxu0
          %v1773 = vadd.f32 0.0, %v1772
          %v1774 = vpop.f32.mrb[0].mxu0
          %1775 = vmatprep.mubr.f32.mxu0 0.0
          %1776 = vmatmul.mubr.f32.gmra.mrb[0].mxu0 %v1439
          %v1777 = vpop.f32.mrb[0].mxu0
          %v1778 = vadd.f32 0.0, %v1777
          %v1779 = vpop.f32.mrb[0].mxu0
          %1780 = vmatprep.mubr.f32.mxu0 0.0
          %1781 = vmatmul.mubr.f32.gmra.mrb[0].mxu0 %v1442
          %v1782 = vpop.f32.mrb[0].mxu0
          %v1783 = vadd.f32 0.0, %v1782
          %v1784 = vpop.f32.mrb[0].mxu0
          %1785 = vmatprep.mubr.f32.mxu0 0.0
          %1786 = vmatmul.mubr.f32.gmra.mrb[0].mxu0 %v1445
          %v1787 = vpop.f32.mrb[0].mxu0
          %v1788 = vadd.f32 0.0, %v1787
          %v1789 = vpop.f32.mrb[0].mxu0
          %1790 = vmatprep.mubr.f32.mxu0 0.0
          %1791 = vmatmul.mubr.f32.gmra.mrb[0].mxu0 %v1448
          %v1792 = vpop.f32.mrb[0].mxu0
          %v1793 = vadd.f32 0.0, %v1792
          %v1794 = vpop.f32.mrb[0].mxu0
          %1795 = vmatprep.mubr.f32.mxu0 0.0
          %1796 = vmatmul.mubr.f32.gmra.mrb[0].mxu0 %v1451
          %v1797 = vpop.f32.mrb[0].mxu0
          %v1798 = vadd.f32 0.0, %v1797
          %v1799 = vpop.f32.mrb[0].mxu0
          %1800 = vmatprep.mubr.f32.mxu0 0.0
          %1801 = vmatmul.mubr.f32.gmra.mrb[0].mxu0 %v1454
          %v1802 = vpop.f32.mrb[0].mxu0
          %v1803 = vadd.f32 0.0, %v1802
          %v1804 = vpop.f32.mrb[0].mxu0
          %1805 = vmatprep.mubr.f32.mxu0 0.0
          %1806 = vmatmul.mubr.f32.gmra.mrb[0].mxu0 %v1457
          %v1807 = vpop.f32.mrb[0].mxu0
          %v1808 = vadd.f32 0.0, %v1807
          %v1809 = vpop.f32.mrb[0].mxu0
          %1810 = vmatprep.mubr.f32.mxu0 0.0
          %1811 = vmatmul.mubr.f32.gmra.mrb[0].mxu0 %v1460
          %v1812 = vpop.f32.mrb[0].mxu0
          %v1813 = vadd.f32 0.0, %v1812
          %v1814 = vpop.f32.mrb[0].mxu0
          %1815 = vmatprep.mubr.f32.mxu0 0.0
          %1816 = vmatmul.mubr.f32.gmra.mrb[0].mxu0 %v1463
          %v1817 = vpop.f32.mrb[0].mxu0
          %v1818 = vadd.f32 0.0, %v1817
          %v1819 = vpop.f32.mrb[0].mxu0
          %1820 = vmatprep.mubr.f32.mxu0 0.0
          %1821 = vmatmul.mubr.f32.gmra.mrb[0].mxu0 %v1466
          %v1822 = vpop.f32.mrb[0].mxu0
          %v1823 = vadd.f32 0.0, %v1822
          %v1824 = vpop.f32.mrb[0].mxu0
          %1825 = vmatprep.mubr.f32.mxu0 0.0
          %1826 = vmatmul.mubr.f32.gmra.mrb[0].mxu0 %v1469
          %v1827 = vpop.f32.mrb[0].mxu0
          %v1828 = vadd.f32 0.0, %v1827
          %v1829 = vpop.f32.mrb[0].mxu0
          %1830 = vmatprep.mubr.f32.mxu0 0.0
          %1831 = vmatmul.mubr.f32.gmra.mrb[0].mxu0 %v1472
          %v1832 = vpop.f32.mrb[0].mxu0
          %v1833 = vadd.f32 0.0, %v1832
          %v1834 = vpop.f32.mrb[0].mxu0
          %1835 = vmatprep.mubr.f32.mxu0 0.0
          %1836 = vmatmul.mubr.f32.gmra.mrb[0].mxu0 %v1475
          %v1837 = vpop.f32.mrb[0].mxu0
          %v1838 = vadd.f32 0.0, %v1837
          %v1839 = vpop.f32.mrb[0].mxu0
          %1840 = vmatprep.mubr.f32.mxu0 0.0
          %1841 = vmatmul.mubr.f32.gmra.mrb[0].mxu0 %v1478
          %v1842 = vpop.f32.mrb[0].mxu0
          %v1843 = vadd.f32 0.0, %v1842
          %v1844 = vpop.f32.mrb[0].mxu0
          %1845 = vmatprep.mubr.f32.mxu0 0.0
          %1846 = vmatmul.mubr.f32.gmra.mrb[0].mxu0 %v1481
          %v1847 = vpop.f32.mrb[0].mxu0
          %v1848 = vadd.f32 0.0, %v1847
          %v1849 = vpop.f32.mrb[0].mxu0
          %1850 = vmatprep.mubr.f32.mxu0 0.0
          %1851 = vmatmul.mubr.f32.gmra.mrb[0].mxu0 %v1484
          %v1852 = vpop.f32.mrb[0].mxu0
          %v1853 = vadd.f32 0.0, %v1852
          %v1854 = vpop.f32.mrb[0].mxu0
          %1855 = vmatprep.mubr.f32.mxu0 0.0
          %1856 = vmatmul.mubr.f32.gmra.mrb[0].mxu0 %v1487
          %v1857 = vpop.f32.mrb[0].mxu0
          %v1858 = vadd.f32 0.0, %v1857
          %v1859 = vpop.f32.mrb[0].mxu0
          %1860 = vmatprep.mubr.f32.mxu0 0.0
          %1861 = vmatmul.mubr.f32.gmra.mrb[0].mxu0 %v1490
          %v1862 = vpop.f32.mrb[0].mxu0
          %v1863 = vadd.f32 0.0, %v1862
          %v1864 = vpop.f32.mrb[0].mxu0
          %1865 = vmatprep.mubr.f32.mxu0 0.0
          %1866 = vmatmul.mubr.f32.gmra.mrb[0].mxu0 %v1493
          %v1867 = vpop.f32.mrb[0].mxu0
          %v1868 = vadd.f32 0.0, %v1867
          %v1869 = vpop.f32.mrb[0].mxu0
          %1870 = vmatprep.mubr.f32.mxu0 0.0
          %1871 = vmatmul.mubr.f32.gmra.mrb[0].mxu0 %v1496
          %v1872 = vpop.f32.mrb[0].mxu0
          %v1873 = vadd.f32 0.0, %v1872
          %v1874 = vpop.f32.mrb[0].mxu0
          %1875 = vmatprep.mubr.f32.mxu0 0.0
          %1876 = vmatmul.mubr.f32.gmra.mrb[0].mxu0 %v1499
          %v1877 = vpop.f32.mrb[0].mxu0
          %v1878 = vadd.f32 0.0, %v1877
          %v1879 = vpop.f32.mrb[0].mxu0
          %1880 = vmatprep.mubr.f32.mxu0 0.0
          %1881 = vmatmul.mubr.f32.gmra.mrb[0].mxu0 %v1502
          %v1882 = vpop.f32.mrb[0].mxu0
          %v1883 = vadd.f32 0.0, %v1882
          %v1884 = vpop.f32.mrb[0].mxu0
          %1885 = vmatprep.mubr.f32.mxu0 0.0
          %1886 = vmatmul.mubr.f32.gmra.mrb[0].mxu0 %v1505
          %v1887 = vpop.f32.mrb[0].mxu0
          %v1888 = vadd.f32 0.0, %v1887
          %v1889 = vpop.f32.mrb[0].mxu0
          %1890 = vmatprep.mubr.f32.mxu0 0.0
          %1891 = vmatmul.mubr.f32.gmra.mrb[0].mxu0 %v1508
          %v1892 = vpop.f32.mrb[0].mxu0
          %v1893 = vadd.f32 0.0, %v1892
          %v1894 = vpop.f32.mrb[0].mxu0
          %1895 = vmatprep.mubr.f32.mxu0 0.0
          %1896 = vmatmul.mubr.f32.gmra.mrb[0].mxu0 %v1511
          %v1897 = vpop.f32.mrb[0].mxu0
          %v1898 = vadd.f32 0.0, %v1897
          %v1899 = vpop.f32.mrb[0].mxu0
          %1900 = vdwg.mxu0
          %v1901 = vmul.f32 %v1129, %v1583
          %v1902 = vmul.f32 %v1130, %v1588
          %v1903 = vmul.f32 %v1131, %v1593
          %v1904 = vmul.f32 %v1132, %v1598
          %v1905 = vmul.f32 %v1133, %v1603
          %v1906 = vmul.f32 %v1134, %v1608
          %v1907 = vmul.f32 %v1135, %v1613
          %v1908 = vmul.f32 %v1136, %v1618
          %v1909 = vmul.f32 %v1137, %v1623
          %v1910 = vmul.f32 %v1138, %v1628
          %v1911 = vmul.f32 %v1139, %v1633
          %v1912 = vmul.f32 %v1140, %v1638
          %v1913 = vmul.f32 %v1141, %v1643
          %v1914 = vmul.f32 %v1142, %v1648
          %v1915 = vmul.f32 %v1143, %v1653
          %v1916 = vmul.f32 %v1144, %v1658
          %v1917 = vmul.f32 %v1145, %v1663
          %v1918 = vmul.f32 %v1146, %v1668
          %v1919 = vmul.f32 %v1147, %v1673
          %v1920 = vmul.f32 %v1148, %v1678
          %v1921 = vmul.f32 %v1149, %v1683
          %v1922 = vmul.f32 %v1150, %v1688
          %v1923 = vmul.f32 %v1151, %v1693
          %v1924 = vmul.f32 %v1152, %v1698
          %v1925 = vmul.f32 %v1153, %v1703
          %v1926 = vmul.f32 %v1154, %v1708
          %v1927 = vmul.f32 %v1155, %v1713
          %v1928 = vmul.f32 %v1156, %v1718
          %v1929 = vmul.f32 %v1157, %v1723
          %v1930 = vmul.f32 %v1158, %v1728
          %v1931 = vmul.f32 %v1159, %v1733
          %v1932 = vmul.f32 %v1160, %v1738
          %v1933 = vmul.f32 %v1161, %v1743
          %v1934 = vmul.f32 %v1162, %v1748
          %v1935 = vmul.f32 %v1163, %v1753
          %v1936 = vmul.f32 %v1164, %v1758
          %v1937 = vmul.f32 %v1165, %v1763
          %v1938 = vmul.f32 %v1166, %v1768
          %v1939 = vmul.f32 %v1167, %v1773
          %v1940 = vmul.f32 %v1168, %v1778
          %v1941 = vmul.f32 %v1169, %v1783
          %v1942 = vmul.f32 %v1170, %v1788
          %v1943 = vmul.f32 %v1171, %v1793
          %v1944 = vmul.f32 %v1172, %v1798
          %v1945 = vmul.f32 %v1173, %v1803
          %v1946 = vmul.f32 %v1174, %v1808
          %v1947 = vmul.f32 %v1175, %v1813
          %v1948 = vmul.f32 %v1176, %v1818
          %v1949 = vmul.f32 %v1177, %v1823
          %v1950 = vmul.f32 %v1178, %v1828
          %v1951 = vmul.f32 %v1179, %v1833
          %v1952 = vmul.f32 %v1180, %v1838
          %v1953 = vmul.f32 %v1181, %v1843
          %v1954 = vmul.f32 %v1182, %v1848
          %v1955 = vmul.f32 %v1183, %v1853
          %v1956 = vmul.f32 %v1184, %v1858
          %v1957 = vmul.f32 %v1185, %v1863
          %v1958 = vmul.f32 %v1186, %v1868
          %v1959 = vmul.f32 %v1187, %v1873
          %v1960 = vmul.f32 %v1188, %v1878
          %v1961 = vmul.f32 %v1189, %v1883
          %v1962 = vmul.f32 %v1190, %v1888
          %v1963 = vmul.f32 %v1191, %v1893
          %v1964 = vmul.f32 %v1192, %v1898
          %v1965 = vld [vmem:[%s16] sm:$0xf]
          %v1966 = vunpack.c.l.bf16 %v1965
          %v1967 = vld [vmem:[%s17] sm:$0xf]
          %v1968 = vld [vmem:[%s17 + $0x4] sm:$0xf]
          %v1969 = vld [vmem:[%s17 + $0x8] sm:$0xf]
          %v1970 = vld [vmem:[%s17 + $0xc] sm:$0xf]
          %v1971 = vld [vmem:[%s17 + $0x10] sm:$0xf]
          %v1972 = vld [vmem:[%s17 + $0x14] sm:$0xf]
          %v1973 = vld [vmem:[%s17 + $0x18] sm:$0xf]
          %v1974 = vld [vmem:[%s17 + $0x1c] sm:$0xf]
          %v1975 = vld [vmem:[%s17 + $0x20] sm:$0xf]
          %v1976 = vld [vmem:[%s17 + $0x24] sm:$0xf]
          %v1977 = vld [vmem:[%s17 + $0x28] sm:$0xf]
          %v1978 = vld [vmem:[%s17 + $0x2c] sm:$0xf]
          %v1979 = vld [vmem:[%s17 + $0x30] sm:$0xf]
          %v1980 = vld [vmem:[%s17 + $0x34] sm:$0xf]
          %v1981 = vld [vmem:[%s17 + $0x38] sm:$0xf]
          %v1982 = vld [vmem:[%s17 + $0x3c] sm:$0xf]
          %v1983 = vld [vmem:[%s17 + $0x40] sm:$0xf]
          %v1984 = vld [vmem:[%s17 + $0x44] sm:$0xf]
          %v1985 = vld [vmem:[%s17 + $0x48] sm:$0xf]
          %v1986 = vld [vmem:[%s17 + $0x4c] sm:$0xf]
          %v1987 = vld [vmem:[%s17 + $0x50] sm:$0xf]
          %v1988 = vld [vmem:[%s17 + $0x54] sm:$0xf]
          %v1989 = vld [vmem:[%s17 + $0x58] sm:$0xf]
          %v1990 = vld [vmem:[%s17 + $0x5c] sm:$0xf]
          %v1991 = vld [vmem:[%s17 + $0x60] sm:$0xf]
          %v1992 = vld [vmem:[%s17 + $0x64] sm:$0xf]
          %v1993 = vld [vmem:[%s17 + $0x68] sm:$0xf]
          %v1994 = vld [vmem:[%s17 + $0x6c] sm:$0xf]
          %v1995 = vld [vmem:[%s17 + $0x70] sm:$0xf]
          %v1996 = vld [vmem:[%s17 + $0x74] sm:$0xf]
          %v1997 = vld [vmem:[%s17 + $0x78] sm:$0xf]
          %v1998 = vld [vmem:[%s17 + $0x7c] sm:$0xf]
          %v1999 = vld [vmem:[%s17 + $0x80] sm:$0xf]
          %v2000 = vld [vmem:[%s17 + $0x84] sm:$0xf]
          %v2001 = vld [vmem:[%s17 + $0x88] sm:$0xf]
          %v2002 = vld [vmem:[%s17 + $0x8c] sm:$0xf]
          %v2003 = vld [vmem:[%s17 + $0x90] sm:$0xf]
          %v2004 = vld [vmem:[%s17 + $0x94] sm:$0xf]
          %v2005 = vld [vmem:[%s17 + $0x98] sm:$0xf]
          %v2006 = vld [vmem:[%s17 + $0x9c] sm:$0xf]
          %v2007 = vld [vmem:[%s17 + $0xa0] sm:$0xf]
          %v2008 = vld [vmem:[%s17 + $0xa4] sm:$0xf]
          %v2009 = vld [vmem:[%s17 + $0xa8] sm:$0xf]
          %v2010 = vld [vmem:[%s17 + $0xac] sm:$0xf]
          %v2011 = vld [vmem:[%s17 + $0xb0] sm:$0xf]
          %v2012 = vld [vmem:[%s17 + $0xb4] sm:$0xf]
          %v2013 = vld [vmem:[%s17 + $0xb8] sm:$0xf]
          %v2014 = vld [vmem:[%s17 + $0xbc] sm:$0xf]
          %v2015 = vld [vmem:[%s17 + $0xc0] sm:$0xf]
          %v2016 = vld [vmem:[%s17 + $0xc4] sm:$0xf]
          %v2017 = vld [vmem:[%s17 + $0xc8] sm:$0xf]
          %v2018 = vld [vmem:[%s17 + $0xcc] sm:$0xf]
          %v2019 = vld [vmem:[%s17 + $0xd0] sm:$0xf]
          %v2020 = vld [vmem:[%s17 + $0xd4] sm:$0xf]
          %v2021 = vld [vmem:[%s17 + $0xd8] sm:$0xf]
          %v2022 = vld [vmem:[%s17 + $0xdc] sm:$0xf]
          %v2023 = vld [vmem:[%s17 + $0xe0] sm:$0xf]
          %v2024 = vld [vmem:[%s17 + $0xe4] sm:$0xf]
          %v2025 = vld [vmem:[%s17 + $0xe8] sm:$0xf]
          %v2026 = vld [vmem:[%s17 + $0xec] sm:$0xf]
          %v2027 = vld [vmem:[%s17 + $0xf0] sm:$0xf]
          %v2028 = vld [vmem:[%s17 + $0xf4] sm:$0xf]
          %v2029 = vld [vmem:[%s17 + $0xf8] sm:$0xf]
          %v2030 = vld [vmem:[%s17 + $0xfc] sm:$0xf]
          %v2031 = vunpack.c.l.bf16 %v1967
          %v2032 = vunpack.c.l.bf16 %v1968
          %v2033 = vunpack.c.l.bf16 %v1969
          %v2034 = vunpack.c.l.bf16 %v1970
          %v2035 = vunpack.c.l.bf16 %v1971
          %v2036 = vunpack.c.l.bf16 %v1972
          %v2037 = vunpack.c.l.bf16 %v1973
          %v2038 = vunpack.c.l.bf16 %v1974
          %v2039 = vunpack.c.l.bf16 %v1975
          %v2040 = vunpack.c.l.bf16 %v1976
          %v2041 = vunpack.c.l.bf16 %v1977
          %v2042 = vunpack.c.l.bf16 %v1978
          %v2043 = vunpack.c.l.bf16 %v1979
          %v2044 = vunpack.c.l.bf16 %v1980
          %v2045 = vunpack.c.l.bf16 %v1981
          %v2046 = vunpack.c.l.bf16 %v1982
          %v2047 = vunpack.c.l.bf16 %v1983
          %v2048 = vunpack.c.l.bf16 %v1984
          %v2049 = vunpack.c.l.bf16 %v1985
          %v2050 = vunpack.c.l.bf16 %v1986
          %v2051 = vunpack.c.l.bf16 %v1987
          %v2052 = vunpack.c.l.bf16 %v1988
          %v2053 = vunpack.c.l.bf16 %v1989
          %v2054 = vunpack.c.l.bf16 %v1990
          %v2055 = vunpack.c.l.bf16 %v1991
          %v2056 = vunpack.c.l.bf16 %v1992
          %v2057 = vunpack.c.l.bf16 %v1993
          %v2058 = vunpack.c.l.bf16 %v1994
          %v2059 = vunpack.c.l.bf16 %v1995
          %v2060 = vunpack.c.l.bf16 %v1996
          %v2061 = vunpack.c.l.bf16 %v1997
          %v2062 = vunpack.c.l.bf16 %v1998
          %v2063 = vunpack.c.l.bf16 %v1999
          %v2064 = vunpack.c.l.bf16 %v2000
          %v2065 = vunpack.c.l.bf16 %v2001
          %v2066 = vunpack.c.l.bf16 %v2002
          %v2067 = vunpack.c.l.bf16 %v2003
          %v2068 = vunpack.c.l.bf16 %v2004
          %v2069 = vunpack.c.l.bf16 %v2005
          %v2070 = vunpack.c.l.bf16 %v2006
          %v2071 = vunpack.c.l.bf16 %v2007
          %v2072 = vunpack.c.l.bf16 %v2008
          %v2073 = vunpack.c.l.bf16 %v2009
          %v2074 = vunpack.c.l.bf16 %v2010
          %v2075 = vunpack.c.l.bf16 %v2011
          %v2076 = vunpack.c.l.bf16 %v2012
          %v2077 = vunpack.c.l.bf16 %v2013
          %v2078 = vunpack.c.l.bf16 %v2014
          %v2079 = vunpack.c.l.bf16 %v2015
          %v2080 = vunpack.c.l.bf16 %v2016
          %v2081 = vunpack.c.l.bf16 %v2017
          %v2082 = vunpack.c.l.bf16 %v2018
          %v2083 = vunpack.c.l.bf16 %v2019
          %v2084 = vunpack.c.l.bf16 %v2020
          %v2085 = vunpack.c.l.bf16 %v2021
          %v2086 = vunpack.c.l.bf16 %v2022
          %v2087 = vunpack.c.l.bf16 %v2023
          %v2088 = vunpack.c.l.bf16 %v2024
          %v2089 = vunpack.c.l.bf16 %v2025
          %v2090 = vunpack.c.l.bf16 %v2026
          %v2091 = vunpack.c.l.bf16 %v2027
          %v2092 = vunpack.c.l.bf16 %v2028
          %v2093 = vunpack.c.l.bf16 %v2029
          %v2094 = vunpack.c.l.bf16 %v2030
          %vm2095 = vcmask 64512
          %v2097 = vsel %vm2095, %v1901, 0
          %v2100 = vsel %vm2095, %v1902, 0
          %v2103 = vsel %vm2095, %v1903, 0
          %v2106 = vsel %vm2095, %v1904, 0
          %v2109 = vsel %vm2095, %v1905, 0
          %v2112 = vsel %vm2095, %v1906, 0
          %v2115 = vsel %vm2095, %v1907, 0
          %v2118 = vsel %vm2095, %v1908, 0
          %v2121 = vsel %vm2095, %v1909, 0
          %v2124 = vsel %vm2095, %v1910, 0
          %v2127 = vsel %vm2095, %v1911, 0
          %v2130 = vsel %vm2095, %v1912, 0
          %v2133 = vsel %vm2095, %v1913, 0
          %v2136 = vsel %vm2095, %v1914, 0
          %v2139 = vsel %vm2095, %v1915, 0
          %v2142 = vsel %vm2095, %v1916, 0
          %v2145 = vsel %vm2095, %v1917, 0
          %v2148 = vsel %vm2095, %v1918, 0
          %v2151 = vsel %vm2095, %v1919, 0
          %v2154 = vsel %vm2095, %v1920, 0
          %v2157 = vsel %vm2095, %v1921, 0
          %v2160 = vsel %vm2095, %v1922, 0
          %v2163 = vsel %vm2095, %v1923, 0
          %v2166 = vsel %vm2095, %v1924, 0
          %v2169 = vsel %vm2095, %v1925, 0
          %v2172 = vsel %vm2095, %v1926, 0
          %v2175 = vsel %vm2095, %v1927, 0
          %v2178 = vsel %vm2095, %v1928, 0
          %v2181 = vsel %vm2095, %v1929, 0
          %v2184 = vsel %vm2095, %v1930, 0
          %v2187 = vsel %vm2095, %v1931, 0
          %v2190 = vsel %vm2095, %v1932, 0
          %v2193 = vsel %vm2095, %v1933, 0
          %v2196 = vsel %vm2095, %v1934, 0
          %v2199 = vsel %vm2095, %v1935, 0
          %v2202 = vsel %vm2095, %v1936, 0
          %v2205 = vsel %vm2095, %v1937, 0
          %v2208 = vsel %vm2095, %v1938, 0
          %v2211 = vsel %vm2095, %v1939, 0
          %v2214 = vsel %vm2095, %v1940, 0
          %v2217 = vsel %vm2095, %v1941, 0
          %v2220 = vsel %vm2095, %v1942, 0
          %v2223 = vsel %vm2095, %v1943, 0
          %v2226 = vsel %vm2095, %v1944, 0
          %v2229 = vsel %vm2095, %v1945, 0
          %v2232 = vsel %vm2095, %v1946, 0
          %v2235 = vsel %vm2095, %v1947, 0
          %v2238 = vsel %vm2095, %v1948, 0
          %v2241 = vsel %vm2095, %v1949, 0
          %v2244 = vsel %vm2095, %v1950, 0
          %v2247 = vsel %vm2095, %v1951, 0
          %v2250 = vsel %vm2095, %v1952, 0
          %v2253 = vsel %vm2095, %v1953, 0
          %v2256 = vsel %vm2095, %v1954, 0
          %v2259 = vsel %vm2095, %v1955, 0
          %v2262 = vsel %vm2095, %v1956, 0
          %v2265 = vsel %vm2095, %v1957, 0
          %v2268 = vsel %vm2095, %v1958, 0
          %v2271 = vsel %vm2095, %v1959, 0
          %v2274 = vsel %vm2095, %v1960, 0
          %v2277 = vsel %vm2095, %v1961, 0
          %v2280 = vsel %vm2095, %v1962, 0
          %v2283 = vsel %vm2095, %v1963, 0
          %v2286 = vsel %vm2095, %v1964, 0
          %2288 = vmatprep.subr.mxu0 0.0
          %2289 = vmatpush1.msra.mxu0 %v1966
          %2290 = vmatprep.subr.mxu0 0.0
          %2291 = vmatpush1.msra.mxu0 0.0
          %2292 = vmatprep.subr.mxu0 0.0
          %2293 = vmatpush1.msra.mxu0 0.0
          %2294 = vmatprep.subr.mxu0 0.0
          %2295 = vmatpush1.msra.mxu0 0.0
          %2296 = vmatprep.subr.mxu0 0.0
          %2297 = vmatpush1.msra.mxu0 0.0
          %2298 = vmatprep.subr.mxu0 0.0
          %2299 = vmatpush1.msra.mxu0 0.0
          %2300 = vmatprep.subr.mxu0 0.0
          %2301 = vmatpush1.msra.mxu0 0.0
          %2302 = vmatprep.subr.mxu0 0.0
          %2303 = vmatpush1.msra.mxu0 0.0
          %2304 = vmatprep.subr.mxu0 0.0
          %2305 = vmatpush1.msra.mxu0 0.0
          %2306 = vmatprep.subr.mxu0 0.0
          %2307 = vmatpush1.msra.mxu0 0.0
          %2308 = vmatprep.subr.mxu0 0.0
          %2309 = vmatpush1.msra.mxu0 0.0
          %2310 = vmatprep.subr.mxu0 0.0
          %2311 = vmatpush1.msra.mxu0 0.0
          %2312 = vmatprep.subr.mxu0 0.0
          %2313 = vmatpush1.msra.mxu0 0.0
          %2314 = vmatprep.subr.mxu0 0.0
          %2315 = vmatpush1.msra.mxu0 0.0
          %2316 = vmatprep.subr.mxu0 0.0
          %2317 = vmatpush1.msra.mxu0 0.0
          %2318 = vmatprep.subr.mxu0 0.0
          %2319 = vmatpush1.msra.mxu0 0.0
          %2320 = vmatprep.subr.mxu0 0.0
          %2321 = vmatpush1.msra.mxu0 0.0
          %2322 = vmatprep.subr.mxu0 0.0
          %2323 = vmatpush1.msra.mxu0 0.0
          %2324 = vmatprep.subr.mxu0 0.0
          %2325 = vmatpush1.msra.mxu0 0.0
          %2326 = vmatprep.subr.mxu0 0.0
          %2327 = vmatpush1.msra.mxu0 0.0
          %2328 = vmatprep.subr.mxu0 0.0
          %2329 = vmatpush1.msra.mxu0 0.0
          %2330 = vmatprep.subr.mxu0 0.0
          %2331 = vmatpush1.msra.mxu0 0.0
          %2332 = vmatprep.subr.mxu0 0.0
          %2333 = vmatpush1.msra.mxu0 0.0
          %2334 = vmatprep.subr.mxu0 0.0
          %2335 = vmatpush1.msra.mxu0 0.0
          %2336 = vmatprep.subr.mxu0 0.0
          %2337 = vmatpush1.msra.mxu0 0.0
          %2338 = vmatprep.subr.mxu0 0.0
          %2339 = vmatpush1.msra.mxu0 0.0
          %2340 = vmatprep.subr.mxu0 0.0
          %2341 = vmatpush1.msra.mxu0 0.0
          %2342 = vmatprep.subr.mxu0 0.0
          %2343 = vmatpush1.msra.mxu0 0.0
          %2344 = vmatprep.subr.mxu0 0.0
          %2345 = vmatpush1.msra.mxu0 0.0
          %2346 = vmatprep.subr.mxu0 0.0
          %2347 = vmatpush1.msra.mxu0 0.0
          %2348 = vmatprep.subr.mxu0 0.0
          %2349 = vmatpush1.msra.mxu0 0.0
          %2350 = vmatprep.subr.mxu0 0.0
          %2351 = vmatpush1.msra.mxu0 0.0
          %2352 = vmatprep.mubr.f32.mxu0 0.0
          %2353 = vmatmul.mubr.f32.gmra.mrb[0].mxu0 %v2097
          %v2354 = vpop.f32.mrb[0].mxu0
          %v2355 = vadd.f32 %v2031, %v2354
          %v2356 = vpop.f32.mrb[0].mxu0
          %2357 = vmatprep.mubr.f32.mxu0 0.0
          %2358 = vmatmul.mubr.f32.gmra.mrb[0].mxu0 %v2100
          %v2359 = vpop.f32.mrb[0].mxu0
          %v2360 = vadd.f32 %v2032, %v2359
          %v2361 = vpop.f32.mrb[0].mxu0
          %2362 = vmatprep.mubr.f32.mxu0 0.0
          %2363 = vmatmul.mubr.f32.gmra.mrb[0].mxu0 %v2103
          %v2364 = vpop.f32.mrb[0].mxu0
          %v2365 = vadd.f32 %v2033, %v2364
          %v2366 = vpop.f32.mrb[0].mxu0
          %2367 = vmatprep.mubr.f32.mxu0 0.0
          %2368 = vmatmul.mubr.f32.gmra.mrb[0].mxu0 %v2106
          %v2369 = vpop.f32.mrb[0].mxu0
          %v2370 = vadd.f32 %v2034, %v2369
          %v2371 = vpop.f32.mrb[0].mxu0
          %2372 = vmatprep.mubr.f32.mxu0 0.0
          %2373 = vmatmul.mubr.f32.gmra.mrb[0].mxu0 %v2109
          %v2374 = vpop.f32.mrb[0].mxu0
          %v2375 = vadd.f32 %v2035, %v2374
          %v2376 = vpop.f32.mrb[0].mxu0
          %2377 = vmatprep.mubr.f32.mxu0 0.0
          %2378 = vmatmul.mubr.f32.gmra.mrb[0].mxu0 %v2112
          %v2379 = vpop.f32.mrb[0].mxu0
          %v2380 = vadd.f32 %v2036, %v2379
          %v2381 = vpop.f32.mrb[0].mxu0
          %2382 = vmatprep.mubr.f32.mxu0 0.0
          %2383 = vmatmul.mubr.f32.gmra.mrb[0].mxu0 %v2115
          %v2384 = vpop.f32.mrb[0].mxu0
          %v2385 = vadd.f32 %v2037, %v2384
          %v2386 = vpop.f32.mrb[0].mxu0
          %2387 = vmatprep.mubr.f32.mxu0 0.0
          %2388 = vmatmul.mubr.f32.gmra.mrb[0].mxu0 %v2118
          %v2389 = vpop.f32.mrb[0].mxu0
          %v2390 = vadd.f32 %v2038, %v2389
          %v2391 = vpop.f32.mrb[0].mxu0
          %2392 = vmatprep.mubr.f32.mxu0 0.0
          %2393 = vmatmul.mubr.f32.gmra.mrb[0].mxu0 %v2121
          %v2394 = vpop.f32.mrb[0].mxu0
          %v2395 = vadd.f32 %v2039, %v2394
          %v2396 = vpop.f32.mrb[0].mxu0
          %2397 = vmatprep.mubr.f32.mxu0 0.0
          %2398 = vmatmul.mubr.f32.gmra.mrb[0].mxu0 %v2124
          %v2399 = vpop.f32.mrb[0].mxu0
          %v2400 = vadd.f32 %v2040, %v2399
          %v2401 = vpop.f32.mrb[0].mxu0
          %2402 = vmatprep.mubr.f32.mxu0 0.0
          %2403 = vmatmul.mubr.f32.gmra.mrb[0].mxu0 %v2127
          %v2404 = vpop.f32.mrb[0].mxu0
          %v2405 = vadd.f32 %v2041, %v2404
          %v2406 = vpop.f32.mrb[0].mxu0
          %2407 = vmatprep.mubr.f32.mxu0 0.0
          %2408 = vmatmul.mubr.f32.gmra.mrb[0].mxu0 %v2130
          %v2409 = vpop.f32.mrb[0].mxu0
          %v2410 = vadd.f32 %v2042, %v2409
          %v2411 = vpop.f32.mrb[0].mxu0
          %2412 = vmatprep.mubr.f32.mxu0 0.0
          %2413 = vmatmul.mubr.f32.gmra.mrb[0].mxu0 %v2133
          %v2414 = vpop.f32.mrb[0].mxu0
          %v2415 = vadd.f32 %v2043, %v2414
          %v2416 = vpop.f32.mrb[0].mxu0
          %2417 = vmatprep.mubr.f32.mxu0 0.0
          %2418 = vmatmul.mubr.f32.gmra.mrb[0].mxu0 %v2136
          %v2419 = vpop.f32.mrb[0].mxu0
          %v2420 = vadd.f32 %v2044, %v2419
          %v2421 = vpop.f32.mrb[0].mxu0
          %2422 = vmatprep.mubr.f32.mxu0 0.0
          %2423 = vmatmul.mubr.f32.gmra.mrb[0].mxu0 %v2139
          %v2424 = vpop.f32.mrb[0].mxu0
          %v2425 = vadd.f32 %v2045, %v2424
          %v2426 = vpop.f32.mrb[0].mxu0
          %2427 = vmatprep.mubr.f32.mxu0 0.0
          %2428 = vmatmul.mubr.f32.gmra.mrb[0].mxu0 %v2142
          %v2429 = vpop.f32.mrb[0].mxu0
          %v2430 = vadd.f32 %v2046, %v2429
          %v2431 = vpop.f32.mrb[0].mxu0
          %2432 = vmatprep.mubr.f32.mxu0 0.0
          %2433 = vmatmul.mubr.f32.gmra.mrb[0].mxu0 %v2145
          %v2434 = vpop.f32.mrb[0].mxu0
          %v2435 = vadd.f32 %v2047, %v2434
          %v2436 = vpop.f32.mrb[0].mxu0
          %2437 = vmatprep.mubr.f32.mxu0 0.0
          %2438 = vmatmul.mubr.f32.gmra.mrb[0].mxu0 %v2148
          %v2439 = vpop.f32.mrb[0].mxu0
          %v2440 = vadd.f32 %v2048, %v2439
          %v2441 = vpop.f32.mrb[0].mxu0
          %2442 = vmatprep.mubr.f32.mxu0 0.0
          %2443 = vmatmul.mubr.f32.gmra.mrb[0].mxu0 %v2151
          %v2444 = vpop.f32.mrb[0].mxu0
          %v2445 = vadd.f32 %v2049, %v2444
          %v2446 = vpop.f32.mrb[0].mxu0
          %2447 = vmatprep.mubr.f32.mxu0 0.0
          %2448 = vmatmul.mubr.f32.gmra.mrb[0].mxu0 %v2154
          %v2449 = vpop.f32.mrb[0].mxu0
          %v2450 = vadd.f32 %v2050, %v2449
          %v2451 = vpop.f32.mrb[0].mxu0
          %2452 = vmatprep.mubr.f32.mxu0 0.0
          %2453 = vmatmul.mubr.f32.gmra.mrb[0].mxu0 %v2157
          %v2454 = vpop.f32.mrb[0].mxu0
          %v2455 = vadd.f32 %v2051, %v2454
          %v2456 = vpop.f32.mrb[0].mxu0
          %2457 = vmatprep.mubr.f32.mxu0 0.0
          %2458 = vmatmul.mubr.f32.gmra.mrb[0].mxu0 %v2160
          %v2459 = vpop.f32.mrb[0].mxu0
          %v2460 = vadd.f32 %v2052, %v2459
          %v2461 = vpop.f32.mrb[0].mxu0
          %2462 = vmatprep.mubr.f32.mxu0 0.0
          %2463 = vmatmul.mubr.f32.gmra.mrb[0].mxu0 %v2163
          %v2464 = vpop.f32.mrb[0].mxu0
          %v2465 = vadd.f32 %v2053, %v2464
          %v2466 = vpop.f32.mrb[0].mxu0
          %2467 = vmatprep.mubr.f32.mxu0 0.0
          %2468 = vmatmul.mubr.f32.gmra.mrb[0].mxu0 %v2166
          %v2469 = vpop.f32.mrb[0].mxu0
          %v2470 = vadd.f32 %v2054, %v2469
          %v2471 = vpop.f32.mrb[0].mxu0
          %2472 = vmatprep.mubr.f32.mxu0 0.0
          %2473 = vmatmul.mubr.f32.gmra.mrb[0].mxu0 %v2169
          %v2474 = vpop.f32.mrb[0].mxu0
          %v2475 = vadd.f32 %v2055, %v2474
          %v2476 = vpop.f32.mrb[0].mxu0
          %2477 = vmatprep.mubr.f32.mxu0 0.0
          %2478 = vmatmul.mubr.f32.gmra.mrb[0].mxu0 %v2172
          %v2479 = vpop.f32.mrb[0].mxu0
          %v2480 = vadd.f32 %v2056, %v2479
          %v2481 = vpop.f32.mrb[0].mxu0
          %2482 = vmatprep.mubr.f32.mxu0 0.0
          %2483 = vmatmul.mubr.f32.gmra.mrb[0].mxu0 %v2175
          %v2484 = vpop.f32.mrb[0].mxu0
          %v2485 = vadd.f32 %v2057, %v2484
          %v2486 = vpop.f32.mrb[0].mxu0
          %2487 = vmatprep.mubr.f32.mxu0 0.0
          %2488 = vmatmul.mubr.f32.gmra.mrb[0].mxu0 %v2178
          %v2489 = vpop.f32.mrb[0].mxu0
          %v2490 = vadd.f32 %v2058, %v2489
          %v2491 = vpop.f32.mrb[0].mxu0
          %2492 = vmatprep.mubr.f32.mxu0 0.0
          %2493 = vmatmul.mubr.f32.gmra.mrb[0].mxu0 %v2181
          %v2494 = vpop.f32.mrb[0].mxu0
          %v2495 = vadd.f32 %v2059, %v2494
          %v2496 = vpop.f32.mrb[0].mxu0
          %2497 = vmatprep.mubr.f32.mxu0 0.0
          %2498 = vmatmul.mubr.f32.gmra.mrb[0].mxu0 %v2184
          %v2499 = vpop.f32.mrb[0].mxu0
          %v2500 = vadd.f32 %v2060, %v2499
          %v2501 = vpop.f32.mrb[0].mxu0
          %2502 = vmatprep.mubr.f32.mxu0 0.0
          %2503 = vmatmul.mubr.f32.gmra.mrb[0].mxu0 %v2187
          %v2504 = vpop.f32.mrb[0].mxu0
          %v2505 = vadd.f32 %v2061, %v2504
          %v2506 = vpop.f32.mrb[0].mxu0
          %2507 = vmatprep.mubr.f32.mxu0 0.0
          %2508 = vmatmul.mubr.f32.gmra.mrb[0].mxu0 %v2190
          %v2509 = vpop.f32.mrb[0].mxu0
          %v2510 = vadd.f32 %v2062, %v2509
          %v2511 = vpop.f32.mrb[0].mxu0
          %2512 = vmatprep.mubr.f32.mxu0 0.0
          %2513 = vmatmul.mubr.f32.gmra.mrb[0].mxu0 %v2193
          %v2514 = vpop.f32.mrb[0].mxu0
          %v2515 = vadd.f32 %v2063, %v2514
          %v2516 = vpop.f32.mrb[0].mxu0
          %2517 = vmatprep.mubr.f32.mxu0 0.0
          %2518 = vmatmul.mubr.f32.gmra.mrb[0].mxu0 %v2196
          %v2519 = vpop.f32.mrb[0].mxu0
          %v2520 = vadd.f32 %v2064, %v2519
          %v2521 = vpop.f32.mrb[0].mxu0
          %2522 = vmatprep.mubr.f32.mxu0 0.0
          %2523 = vmatmul.mubr.f32.gmra.mrb[0].mxu0 %v2199
          %v2524 = vpop.f32.mrb[0].mxu0
          %v2525 = vadd.f32 %v2065, %v2524
          %v2526 = vpop.f32.mrb[0].mxu0
          %2527 = vmatprep.mubr.f32.mxu0 0.0
          %2528 = vmatmul.mubr.f32.gmra.mrb[0].mxu0 %v2202
          %v2529 = vpop.f32.mrb[0].mxu0
          %v2530 = vadd.f32 %v2066, %v2529
          %v2531 = vpop.f32.mrb[0].mxu0
          %2532 = vmatprep.mubr.f32.mxu0 0.0
          %2533 = vmatmul.mubr.f32.gmra.mrb[0].mxu0 %v2205
          %v2534 = vpop.f32.mrb[0].mxu0
          %v2535 = vadd.f32 %v2067, %v2534
          %v2536 = vpop.f32.mrb[0].mxu0
          %2537 = vmatprep.mubr.f32.mxu0 0.0
          %2538 = vmatmul.mubr.f32.gmra.mrb[0].mxu0 %v2208
          %v2539 = vpop.f32.mrb[0].mxu0
          %v2540 = vadd.f32 %v2068, %v2539
          %v2541 = vpop.f32.mrb[0].mxu0
          %2542 = vmatprep.mubr.f32.mxu0 0.0
          %2543 = vmatmul.mubr.f32.gmra.mrb[0].mxu0 %v2211
          %v2544 = vpop.f32.mrb[0].mxu0
          %v2545 = vadd.f32 %v2069, %v2544
          %v2546 = vpop.f32.mrb[0].mxu0
          %2547 = vmatprep.mubr.f32.mxu0 0.0
          %2548 = vmatmul.mubr.f32.gmra.mrb[0].mxu0 %v2214
          %v2549 = vpop.f32.mrb[0].mxu0
          %v2550 = vadd.f32 %v2070, %v2549
          %v2551 = vpop.f32.mrb[0].mxu0
          %2552 = vmatprep.mubr.f32.mxu0 0.0
          %2553 = vmatmul.mubr.f32.gmra.mrb[0].mxu0 %v2217
          %v2554 = vpop.f32.mrb[0].mxu0
          %v2555 = vadd.f32 %v2071, %v2554
          %v2556 = vpop.f32.mrb[0].mxu0
          %2557 = vmatprep.mubr.f32.mxu0 0.0
          %2558 = vmatmul.mubr.f32.gmra.mrb[0].mxu0 %v2220
          %v2559 = vpop.f32.mrb[0].mxu0
          %v2560 = vadd.f32 %v2072, %v2559
          %v2561 = vpop.f32.mrb[0].mxu0
          %2562 = vmatprep.mubr.f32.mxu0 0.0
          %2563 = vmatmul.mubr.f32.gmra.mrb[0].mxu0 %v2223
          %v2564 = vpop.f32.mrb[0].mxu0
          %v2565 = vadd.f32 %v2073, %v2564
          %v2566 = vpop.f32.mrb[0].mxu0
          %2567 = vmatprep.mubr.f32.mxu0 0.0
          %2568 = vmatmul.mubr.f32.gmra.mrb[0].mxu0 %v2226
          %v2569 = vpop.f32.mrb[0].mxu0
          %v2570 = vadd.f32 %v2074, %v2569
          %v2571 = vpop.f32.mrb[0].mxu0
          %2572 = vmatprep.mubr.f32.mxu0 0.0
          %2573 = vmatmul.mubr.f32.gmra.mrb[0].mxu0 %v2229
          %v2574 = vpop.f32.mrb[0].mxu0
          %v2575 = vadd.f32 %v2075, %v2574
          %v2576 = vpop.f32.mrb[0].mxu0
          %2577 = vmatprep.mubr.f32.mxu0 0.0
          %2578 = vmatmul.mubr.f32.gmra.mrb[0].mxu0 %v2232
          %v2579 = vpop.f32.mrb[0].mxu0
          %v2580 = vadd.f32 %v2076, %v2579
          %v2581 = vpop.f32.mrb[0].mxu0
          %2582 = vmatprep.mubr.f32.mxu0 0.0
          %2583 = vmatmul.mubr.f32.gmra.mrb[0].mxu0 %v2235
          %v2584 = vpop.f32.mrb[0].mxu0
          %v2585 = vadd.f32 %v2077, %v2584
          %v2586 = vpop.f32.mrb[0].mxu0
          %2587 = vmatprep.mubr.f32.mxu0 0.0
          %2588 = vmatmul.mubr.f32.gmra.mrb[0].mxu0 %v2238
          %v2589 = vpop.f32.mrb[0].mxu0
          %v2590 = vadd.f32 %v2078, %v2589
          %v2591 = vpop.f32.mrb[0].mxu0
          %2592 = vmatprep.mubr.f32.mxu0 0.0
          %2593 = vmatmul.mubr.f32.gmra.mrb[0].mxu0 %v2241
          %v2594 = vpop.f32.mrb[0].mxu0
          %v2595 = vadd.f32 %v2079, %v2594
          %v2596 = vpop.f32.mrb[0].mxu0
          %2597 = vmatprep.mubr.f32.mxu0 0.0
          %2598 = vmatmul.mubr.f32.gmra.mrb[0].mxu0 %v2244
          %v2599 = vpop.f32.mrb[0].mxu0
          %v2600 = vadd.f32 %v2080, %v2599
          %v2601 = vpop.f32.mrb[0].mxu0
          %2602 = vmatprep.mubr.f32.mxu0 0.0
          %2603 = vmatmul.mubr.f32.gmra.mrb[0].mxu0 %v2247
          %v2604 = vpop.f32.mrb[0].mxu0
          %v2605 = vadd.f32 %v2081, %v2604
          %v2606 = vpop.f32.mrb[0].mxu0
          %2607 = vmatprep.mubr.f32.mxu0 0.0
          %2608 = vmatmul.mubr.f32.gmra.mrb[0].mxu0 %v2250
          %v2609 = vpop.f32.mrb[0].mxu0
          %v2610 = vadd.f32 %v2082, %v2609
          %v2611 = vpop.f32.mrb[0].mxu0
          %2612 = vmatprep.mubr.f32.mxu0 0.0
          %2613 = vmatmul.mubr.f32.gmra.mrb[0].mxu0 %v2253
          %v2614 = vpop.f32.mrb[0].mxu0
          %v2615 = vadd.f32 %v2083, %v2614
          %v2616 = vpop.f32.mrb[0].mxu0
          %2617 = vmatprep.mubr.f32.mxu0 0.0
          %2618 = vmatmul.mubr.f32.gmra.mrb[0].mxu0 %v2256
          %v2619 = vpop.f32.mrb[0].mxu0
          %v2620 = vadd.f32 %v2084, %v2619
          %v2621 = vpop.f32.mrb[0].mxu0
          %2622 = vmatprep.mubr.f32.mxu0 0.0
          %2623 = vmatmul.mubr.f32.gmra.mrb[0].mxu0 %v2259
          %v2624 = vpop.f32.mrb[0].mxu0
          %v2625 = vadd.f32 %v2085, %v2624
          %v2626 = vpop.f32.mrb[0].mxu0
          %2627 = vmatprep.mubr.f32.mxu0 0.0
          %2628 = vmatmul.mubr.f32.gmra.mrb[0].mxu0 %v2262
          %v2629 = vpop.f32.mrb[0].mxu0
          %v2630 = vadd.f32 %v2086, %v2629
          %v2631 = vpop.f32.mrb[0].mxu0
          %2632 = vmatprep.mubr.f32.mxu0 0.0
          %2633 = vmatmul.mubr.f32.gmra.mrb[0].mxu0 %v2265
          %v2634 = vpop.f32.mrb[0].mxu0
          %v2635 = vadd.f32 %v2087, %v2634
          %v2636 = vpop.f32.mrb[0].mxu0
          %2637 = vmatprep.mubr.f32.mxu0 0.0
          %2638 = vmatmul.mubr.f32.gmra.mrb[0].mxu0 %v2268
          %v2639 = vpop.f32.mrb[0].mxu0
          %v2640 = vadd.f32 %v2088, %v2639
          %v2641 = vpop.f32.mrb[0].mxu0
          %2642 = vmatprep.mubr.f32.mxu0 0.0
          %2643 = vmatmul.mubr.f32.gmra.mrb[0].mxu0 %v2271
          %v2644 = vpop.f32.mrb[0].mxu0
          %v2645 = vadd.f32 %v2089, %v2644
          %v2646 = vpop.f32.mrb[0].mxu0
          %2647 = vmatprep.mubr.f32.mxu0 0.0
          %2648 = vmatmul.mubr.f32.gmra.mrb[0].mxu0 %v2274
          %v2649 = vpop.f32.mrb[0].mxu0
          %v2650 = vadd.f32 %v2090, %v2649
          %v2651 = vpop.f32.mrb[0].mxu0
          %2652 = vmatprep.mubr.f32.mxu0 0.0
          %2653 = vmatmul.mubr.f32.gmra.mrb[0].mxu0 %v2277
          %v2654 = vpop.f32.mrb[0].mxu0
          %v2655 = vadd.f32 %v2091, %v2654
          %v2656 = vpop.f32.mrb[0].mxu0
          %2657 = vmatprep.mubr.f32.mxu0 0.0
          %2658 = vmatmul.mubr.f32.gmra.mrb[0].mxu0 %v2280
          %v2659 = vpop.f32.mrb[0].mxu0
          %v2660 = vadd.f32 %v2092, %v2659
          %v2661 = vpop.f32.mrb[0].mxu0
          %2662 = vmatprep.mubr.f32.mxu0 0.0
          %2663 = vmatmul.mubr.f32.gmra.mrb[0].mxu0 %v2283
          %v2664 = vpop.f32.mrb[0].mxu0
          %v2665 = vadd.f32 %v2093, %v2664
          %v2666 = vpop.f32.mrb[0].mxu0
          %2667 = vmatprep.mubr.f32.mxu0 0.0
          %2668 = vmatmul.mubr.f32.gmra.mrb[0].mxu0 %v2286
          %v2669 = vpop.f32.mrb[0].mxu0
          %v2670 = vadd.f32 %v2094, %v2669
          %v2671 = vpop.f32.mrb[0].mxu0
          %2672 = vdwg.mxu0
          %vm2673 = vcmask 130048
          %2674 = vst.msk [vmem:[#allocation2] sm:$0xff] %vm2673, %v2355
          %2675 = vst.msk [vmem:[#allocation2 + $0x8] sm:$0xff] %vm2673, %v2360
          %2676 = vst.msk [vmem:[#allocation2 + $0x10] sm:$0xff] %vm2673, %v2365
          %2677 = vst.msk [vmem:[#allocation2 + $0x18] sm:$0xff] %vm2673, %v2370
          %2678 = vst.msk [vmem:[#allocation2 + $0x20] sm:$0xff] %vm2673, %v2375
          %2679 = vst.msk [vmem:[#allocation2 + $0x28] sm:$0xff] %vm2673, %v2380
          %2680 = vst.msk [vmem:[#allocation2 + $0x30] sm:$0xff] %vm2673, %v2385
          %2681 = vst.msk [vmem:[#allocation2 + $0x38] sm:$0xff] %vm2673, %v2390
          %2682 = vst.msk [vmem:[#allocation2 + $0x40] sm:$0xff] %vm2673, %v2395
          %2683 = vst.msk [vmem:[#allocation2 + $0x48] sm:$0xff] %vm2673, %v2400
          %2684 = vst.msk [vmem:[#allocation2 + $0x50] sm:$0xff] %vm2673, %v2405
          %2685 = vst.msk [vmem:[#allocation2 + $0x58] sm:$0xff] %vm2673, %v2410
          %2686 = vst.msk [vmem:[#allocation2 + $0x60] sm:$0xff] %vm2673, %v2415
          %2687 = vst.msk [vmem:[#allocation2 + $0x68] sm:$0xff] %vm2673, %v2420
          %2688 = vst.msk [vmem:[#allocation2 + $0x70] sm:$0xff] %vm2673, %v2425
          %2689 = vst.msk [vmem:[#allocation2 + $0x78] sm:$0xff] %vm2673, %v2430
          %2690 = vst.msk [vmem:[#allocation2 + $0x80] sm:$0xff] %vm2673, %v2435
          %2691 = vst.msk [vmem:[#allocation2 + $0x88] sm:$0xff] %vm2673, %v2440
          %2692 = vst.msk [vmem:[#allocation2 + $0x90] sm:$0xff] %vm2673, %v2445
          %2693 = vst.msk [vmem:[#allocation2 + $0x98] sm:$0xff] %vm2673, %v2450
          %2694 = vst.msk [vmem:[#allocation2 + $0xa0] sm:$0xff] %vm2673, %v2455
          %2695 = vst.msk [vmem:[#allocation2 + $0xa8] sm:$0xff] %vm2673, %v2460
          %2696 = vst.msk [vmem:[#allocation2 + $0xb0] sm:$0xff] %vm2673, %v2465
          %2697 = vst.msk [vmem:[#allocation2 + $0xb8] sm:$0xff] %vm2673, %v2470
          %2698 = vst.msk [vmem:[#allocation2 + $0xc0] sm:$0xff] %vm2673, %v2475
          %2699 = vst.msk [vmem:[#allocation2 + $0xc8] sm:$0xff] %vm2673, %v2480
          %2700 = vst.msk [vmem:[#allocation2 + $0xd0] sm:$0xff] %vm2673, %v2485
          %2701 = vst.msk [vmem:[#allocation2 + $0xd8] sm:$0xff] %vm2673, %v2490
          %2702 = vst.msk [vmem:[#allocation2 + $0xe0] sm:$0xff] %vm2673, %v2495
          %2703 = vst.msk [vmem:[#allocation2 + $0xe8] sm:$0xff] %vm2673, %v2500
          %2704 = vst.msk [vmem:[#allocation2 + $0xf0] sm:$0xff] %vm2673, %v2505
          %2705 = vst.msk [vmem:[#allocation2 + $0xf8] sm:$0xff] %vm2673, %v2510
          %2706 = vst.msk [vmem:[#allocation2 + $0x100] sm:$0xff] %vm2673, %v2515
          %2707 = vst.msk [vmem:[#allocation2 + $0x108] sm:$0xff] %vm2673, %v2520
          %2708 = vst.msk [vmem:[#allocation2 + $0x110] sm:$0xff] %vm2673, %v2525
          %2709 = vst.msk [vmem:[#allocation2 + $0x118] sm:$0xff] %vm2673, %v2530
          %2710 = vst.msk [vmem:[#allocation2 + $0x120] sm:$0xff] %vm2673, %v2535
          %2711 = vst.msk [vmem:[#allocation2 + $0x128] sm:$0xff] %vm2673, %v2540
          %2712 = vst.msk [vmem:[#allocation2 + $0x130] sm:$0xff] %vm2673, %v2545
          %2713 = vst.msk [vmem:[#allocation2 + $0x138] sm:$0xff] %vm2673, %v2550
          %2714 = vst.msk [vmem:[#allocation2 + $0x140] sm:$0xff] %vm2673, %v2555
          %2715 = vst.msk [vmem:[#allocation2 + $0x148] sm:$0xff] %vm2673, %v2560
          %2716 = vst.msk [vmem:[#allocation2 + $0x150] sm:$0xff] %vm2673, %v2565
          %2717 = vst.msk [vmem:[#allocation2 + $0x158] sm:$0xff] %vm2673, %v2570
          %2718 = vst.msk [vmem:[#allocation2 + $0x160] sm:$0xff] %vm2673, %v2575
          %2719 = vst.msk [vmem:[#allocation2 + $0x168] sm:$0xff] %vm2673, %v2580
          %2720 = vst.msk [vmem:[#allocation2 + $0x170] sm:$0xff] %vm2673, %v2585
          %2721 = vst.msk [vmem:[#allocation2 + $0x178] sm:$0xff] %vm2673, %v2590
          %2722 = vst.msk [vmem:[#allocation2 + $0x180] sm:$0xff] %vm2673, %v2595
          %2723 = vst.msk [vmem:[#allocation2 + $0x188] sm:$0xff] %vm2673, %v2600
          %2724 = vst.msk [vmem:[#allocation2 + $0x190] sm:$0xff] %vm2673, %v2605
          %2725 = vst.msk [vmem:[#allocation2 + $0x198] sm:$0xff] %vm2673, %v2610
          %2726 = vst.msk [vmem:[#allocation2 + $0x1a0] sm:$0xff] %vm2673, %v2615
          %2727 = vst.msk [vmem:[#allocation2 + $0x1a8] sm:$0xff] %vm2673, %v2620
          %2728 = vst.msk [vmem:[#allocation2 + $0x1b0] sm:$0xff] %vm2673, %v2625
          %2729 = vst.msk [vmem:[#allocation2 + $0x1b8] sm:$0xff] %vm2673, %v2630
          %2730 = vst.msk [vmem:[#allocation2 + $0x1c0] sm:$0xff] %vm2673, %v2635
          %2731 = vst.msk [vmem:[#allocation2 + $0x1c8] sm:$0xff] %vm2673, %v2640
          %2732 = vst.msk [vmem:[#allocation2 + $0x1d0] sm:$0xff] %vm2673, %v2645
          %2733 = vst.msk [vmem:[#allocation2 + $0x1d8] sm:$0xff] %vm2673, %v2650
          %2734 = vst.msk [vmem:[#allocation2 + $0x1e0] sm:$0xff] %vm2673, %v2655
          %2735 = vst.msk [vmem:[#allocation2 + $0x1e8] sm:$0xff] %vm2673, %v2660
          %2736 = vst.msk [vmem:[#allocation2 + $0x1f0] sm:$0xff] %vm2673, %v2665
          %2737 = vst.msk [vmem:[#allocation2 + $0x1f8] sm:$0xff] %vm2673, %v2670
          %v2738 = vld [vmem:[%s15] sm:$0xff]
          %v2739 = vld [vmem:[%s15 + $0x8] sm:$0xff]
          %v2740 = vld [vmem:[%s15 + $0x10] sm:$0xff]
          %v2741 = vld [vmem:[%s15 + $0x18] sm:$0xff]
          %v2742 = vld [vmem:[%s15 + $0x20] sm:$0xff]
          %v2743 = vld [vmem:[%s15 + $0x28] sm:$0xff]
          %v2744 = vld [vmem:[%s15 + $0x30] sm:$0xff]
          %v2745 = vld [vmem:[%s15 + $0x38] sm:$0xff]
          %v2746 = vld [vmem:[%s15 + $0x40] sm:$0xff]
          %v2747 = vld [vmem:[%s15 + $0x48] sm:$0xff]
          %v2748 = vld [vmem:[%s15 + $0x50] sm:$0xff]
          %v2749 = vld [vmem:[%s15 + $0x58] sm:$0xff]
          %v2750 = vld [vmem:[%s15 + $0x60] sm:$0xff]
          %v2751 = vld [vmem:[%s15 + $0x68] sm:$0xff]
          %v2752 = vld [vmem:[%s15 + $0x70] sm:$0xff]
          %v2753 = vld [vmem:[%s15 + $0x78] sm:$0xff]
          %v2754 = vunpack.c.l.bf16 %v2738
          %v2755 = vunpack.c.h.bf16 %v2738
          %v2756 = vunpack.c.l.bf16 %v2739
          %v2757 = vunpack.c.h.bf16 %v2739
          %v2758 = vunpack.c.l.bf16 %v2740
          %v2759 = vunpack.c.h.bf16 %v2740
          %v2760 = vunpack.c.l.bf16 %v2741
          %v2761 = vunpack.c.h.bf16 %v2741
          %v2762 = vunpack.c.l.bf16 %v2742
          %v2763 = vunpack.c.h.bf16 %v2742
          %v2764 = vunpack.c.l.bf16 %v2743
          %v2765 = vunpack.c.h.bf16 %v2743
          %v2766 = vunpack.c.l.bf16 %v2744
          %v2767 = vunpack.c.h.bf16 %v2744
          %v2768 = vunpack.c.l.bf16 %v2745
          %v2769 = vunpack.c.h.bf16 %v2745
          %v2770 = vunpack.c.l.bf16 %v2746
          %v2771 = vunpack.c.h.bf16 %v2746
          %v2772 = vunpack.c.l.bf16 %v2747
          %v2773 = vunpack.c.h.bf16 %v2747
          %v2774 = vunpack.c.l.bf16 %v2748
          %v2775 = vunpack.c.h.bf16 %v2748
          %v2776 = vunpack.c.l.bf16 %v2749
          %v2777 = vunpack.c.h.bf16 %v2749
          %v2778 = vunpack.c.l.bf16 %v2750
          %v2779 = vunpack.c.h.bf16 %v2750
          %v2780 = vunpack.c.l.bf16 %v2751
          %v2781 = vunpack.c.h.bf16 %v2751
          %v2782 = vunpack.c.l.bf16 %v2752
          %v2783 = vunpack.c.h.bf16 %v2752
          %v2784 = vunpack.c.l.bf16 %v2753
          %v2785 = vunpack.c.h.bf16 %v2753
          %v2787 = vsel %vm759, %v1036, 0
          %v2790 = vsel %vm759, %v1041, 0
          %v2793 = vsel %vm759, %v1046, 0
          %v2796 = vsel %vm759, %v1051, 0
          %2798 = vmatprep.subr.mxu0 %v2755
          %2799 = vmatpush1.msra.mxu0 %v2754
          %2800 = vmatprep.subr.mxu0 %v2759
          %2801 = vmatpush1.msra.mxu0 %v2758
          %2802 = vmatprep.subr.mxu0 %v2763
          %2803 = vmatpush1.msra.mxu0 %v2762
          %2804 = vmatprep.subr.mxu0 %v2767
          %2805 = vmatpush1.msra.mxu0 %v2766
          %2806 = vmatprep.subr.mxu0 %v2771
          %2807 = vmatpush1.msra.mxu0 %v2770
          %2808 = vmatprep.subr.mxu0 %v2775
          %2809 = vmatpush1.msra.mxu0 %v2774
          %2810 = vmatprep.subr.mxu0 %v2779
          %2811 = vmatpush1.msra.mxu0 %v2778
          %2812 = vmatprep.subr.mxu0 %v2783
          %2813 = vmatpush1.msra.mxu0 %v2782
          %2814 = vmatprep.subr.mxu0 0.0
          %2815 = vmatpush1.msra.mxu0 0.0
          %2816 = vmatprep.subr.mxu0 0.0
          %2817 = vmatpush1.msra.mxu0 0.0
          %2818 = vmatprep.subr.mxu0 0.0
          %2819 = vmatpush1.msra.mxu0 0.0
          %2820 = vmatprep.subr.mxu0 0.0
          %2821 = vmatpush1.msra.mxu0 0.0
          %2822 = vmatprep.subr.mxu0 0.0
          %2823 = vmatpush1.msra.mxu0 0.0
          %2824 = vmatprep.subr.mxu0 0.0
          %2825 = vmatpush1.msra.mxu0 0.0
          %2826 = vmatprep.subr.mxu0 0.0
          %2827 = vmatpush1.msra.mxu0 0.0
          %2828 = vmatprep.subr.mxu0 0.0
          %2829 = vmatpush1.msra.mxu0 0.0
          %2830 = vmatprep.subr.mxu0 0.0
          %2831 = vmatpush1.msra.mxu0 0.0
          %2832 = vmatprep.subr.mxu0 0.0
          %2833 = vmatpush1.msra.mxu0 0.0
          %2834 = vmatprep.subr.mxu0 0.0
          %2835 = vmatpush1.msra.mxu0 0.0
          %2836 = vmatprep.subr.mxu0 0.0
          %2837 = vmatpush1.msra.mxu0 0.0
          %2838 = vmatprep.subr.mxu0 0.0
          %2839 = vmatpush1.msra.mxu0 0.0
          %2840 = vmatprep.subr.mxu0 0.0
          %2841 = vmatpush1.msra.mxu0 0.0
          %2842 = vmatprep.subr.mxu0 0.0
          %2843 = vmatpush1.msra.mxu0 0.0
          %2844 = vmatprep.subr.mxu0 0.0
          %2845 = vmatpush1.msra.mxu0 0.0
          %2846 = vmatprep.subr.mxu0 0.0
          %2847 = vmatpush1.msra.mxu0 0.0
          %2848 = vmatprep.subr.mxu0 0.0
          %2849 = vmatpush1.msra.mxu0 0.0
          %2850 = vmatprep.subr.mxu0 0.0
          %2851 = vmatpush1.msra.mxu0 0.0
          %2852 = vmatprep.subr.mxu0 0.0
          %2853 = vmatpush1.msra.mxu0 0.0
          %2854 = vmatprep.subr.mxu0 0.0
          %2855 = vmatpush1.msra.mxu0 0.0
          %2856 = vmatprep.subr.mxu0 0.0
          %2857 = vmatpush1.msra.mxu0 0.0
          %2858 = vmatprep.subr.mxu0 0.0
          %2859 = vmatpush1.msra.mxu0 0.0
          %2860 = vmatprep.subr.mxu0 0.0
          %2861 = vmatpush1.msra.mxu0 0.0
          %2862 = vmatprep.mubr.f32.mxu0 0.0
          %2863 = vmatmul.mubr.f32.gmra.mrb[0].mxu0 %v2787
          %v2864 = vpop.f32.mrb[0].mxu0
          %v2865 = vadd.f32 0.0, %v2864
          %v2866 = vpop.f32.mrb[0].mxu0
          %v2867 = vadd.f32 0.0, %v2866
          %2868 = vmatprep.mubr.f32.mxu0 0.0
          %2869 = vmatmul.mubr.f32.gmra.mrb[0].mxu0 %v2790
          %v2870 = vpop.f32.mrb[0].mxu0
          %v2871 = vadd.f32 0.0, %v2870
          %v2872 = vpop.f32.mrb[0].mxu0
          %v2873 = vadd.f32 0.0, %v2872
          %2874 = vmatprep.mubr.f32.mxu0 0.0
          %2875 = vmatmul.mubr.f32.gmra.mrb[0].mxu0 %v2793
          %v2876 = vpop.f32.mrb[0].mxu0
          %v2877 = vadd.f32 0.0, %v2876
          %v2878 = vpop.f32.mrb[0].mxu0
          %v2879 = vadd.f32 0.0, %v2878
          %2880 = vmatprep.mubr.f32.mxu0 0.0
          %2881 = vmatmul.mubr.f32.gmra.mrb[0].mxu0 %v2796
          %v2882 = vpop.f32.mrb[0].mxu0
          %v2883 = vadd.f32 0.0, %v2882
          %v2884 = vpop.f32.mrb[0].mxu0
          %v2885 = vadd.f32 0.0, %v2884
          %2886 = vdwg.mxu0
          %2887 = vmatprep.subr.mxu0 %v2757
          %2888 = vmatpush1.msra.mxu0 %v2756
          %2889 = vmatprep.subr.mxu0 %v2761
          %2890 = vmatpush1.msra.mxu0 %v2760
          %2891 = vmatprep.subr.mxu0 %v2765
          %2892 = vmatpush1.msra.mxu0 %v2764
          %2893 = vmatprep.subr.mxu0 %v2769
          %2894 = vmatpush1.msra.mxu0 %v2768
          %2895 = vmatprep.subr.mxu0 %v2773
          %2896 = vmatpush1.msra.mxu0 %v2772
          %2897 = vmatprep.subr.mxu0 %v2777
          %2898 = vmatpush1.msra.mxu0 %v2776
          %2899 = vmatprep.subr.mxu0 %v2781
          %2900 = vmatpush1.msra.mxu0 %v2780
          %2901 = vmatprep.subr.mxu0 %v2785
          %2902 = vmatpush1.msra.mxu0 %v2784
          %2903 = vmatprep.subr.mxu0 0.0
          %2904 = vmatpush1.msra.mxu0 0.0
          %2905 = vmatprep.subr.mxu0 0.0
          %2906 = vmatpush1.msra.mxu0 0.0
          %2907 = vmatprep.subr.mxu0 0.0
          %2908 = vmatpush1.msra.mxu0 0.0
          %2909 = vmatprep.subr.mxu0 0.0
          %2910 = vmatpush1.msra.mxu0 0.0
          %2911 = vmatprep.subr.mxu0 0.0
          %2912 = vmatpush1.msra.mxu0 0.0
          %2913 = vmatprep.subr.mxu0 0.0
          %2914 = vmatpush1.msra.mxu0 0.0
          %2915 = vmatprep.subr.mxu0 0.0
          %2916 = vmatpush1.msra.mxu0 0.0
          %2917 = vmatprep.subr.mxu0 0.0
          %2918 = vmatpush1.msra.mxu0 0.0
          %2919 = vmatprep.subr.mxu0 0.0
          %2920 = vmatpush1.msra.mxu0 0.0
          %2921 = vmatprep.subr.mxu0 0.0
          %2922 = vmatpush1.msra.mxu0 0.0
          %2923 = vmatprep.subr.mxu0 0.0
          %2924 = vmatpush1.msra.mxu0 0.0
          %2925 = vmatprep.subr.mxu0 0.0
          %2926 = vmatpush1.msra.mxu0 0.0
          %2927 = vmatprep.subr.mxu0 0.0
          %2928 = vmatpush1.msra.mxu0 0.0
          %2929 = vmatprep.subr.mxu0 0.0
          %2930 = vmatpush1.msra.mxu0 0.0
          %2931 = vmatprep.subr.mxu0 0.0
          %2932 = vmatpush1.msra.mxu0 0.0
          %2933 = vmatprep.subr.mxu0 0.0
          %2934 = vmatpush1.msra.mxu0 0.0
          %2935 = vmatprep.subr.mxu0 0.0
          %2936 = vmatpush1.msra.mxu0 0.0
          %2937 = vmatprep.subr.mxu0 0.0
          %2938 = vmatpush1.msra.mxu0 0.0
          %2939 = vmatprep.subr.mxu0 0.0
          %2940 = vmatpush1.msra.mxu0 0.0
          %2941 = vmatprep.subr.mxu0 0.0
          %2942 = vmatpush1.msra.mxu0 0.0
          %2943 = vmatprep.subr.mxu0 0.0
          %2944 = vmatpush1.msra.mxu0 0.0
          %2945 = vmatprep.subr.mxu0 0.0
          %2946 = vmatpush1.msra.mxu0 0.0
          %2947 = vmatprep.subr.mxu0 0.0
          %2948 = vmatpush1.msra.mxu0 0.0
          %2949 = vmatprep.subr.mxu0 0.0
          %2950 = vmatpush1.msra.mxu0 0.0
          %2951 = vmatprep.mubr.f32.mxu0 0.0
          %2952 = vmatmul.mubr.f32.gmra.mrb[0].mxu0 %v2787
          %v2953 = vpop.f32.mrb[0].mxu0
          %v2954 = vadd.f32 0.0, %v2953
          %v2955 = vpop.f32.mrb[0].mxu0
          %v2956 = vadd.f32 0.0, %v2955
          %2957 = vmatprep.mubr.f32.mxu0 0.0
          %2958 = vmatmul.mubr.f32.gmra.mrb[0].mxu0 %v2790
          %v2959 = vpop.f32.mrb[0].mxu0
          %v2960 = vadd.f32 0.0, %v2959
          %v2961 = vpop.f32.mrb[0].mxu0
          %v2962 = vadd.f32 0.0, %v2961
          %2963 = vmatprep.mubr.f32.mxu0 0.0
          %2964 = vmatmul.mubr.f32.gmra.mrb[0].mxu0 %v2793
          %v2965 = vpop.f32.mrb[0].mxu0
          %v2966 = vadd.f32 0.0, %v2965
          %v2967 = vpop.f32.mrb[0].mxu0
          %v2968 = vadd.f32 0.0, %v2967
          %2969 = vmatprep.mubr.f32.mxu0 0.0
          %2970 = vmatmul.mubr.f32.gmra.mrb[0].mxu0 %v2796
          %v2971 = vpop.f32.mrb[0].mxu0
          %v2972 = vadd.f32 0.0, %v2971
          %v2973 = vpop.f32.mrb[0].mxu0
          %v2974 = vadd.f32 0.0, %v2973
          %2975 = vdwg.mxu0
          %v2976 = vld [vmem:[%s13] sm:$0xff]
          %v2977 = vld [vmem:[%s13 + $0x8] sm:$0xff]
          %v2978 = vld [vmem:[%s13 + $0x10] sm:$0xff]
          %v2979 = vld [vmem:[%s13 + $0x18] sm:$0xff]
          %v2980 = vld [vmem:[%s13 + $0x20] sm:$0xff]
          %v2981 = vld [vmem:[%s13 + $0x28] sm:$0xff]
          %v2982 = vld [vmem:[%s13 + $0x30] sm:$0xff]
          %v2983 = vld [vmem:[%s13 + $0x38] sm:$0xff]
          %v2984 = vunpack.c.l.bf16 %v2976
          %v2985 = vunpack.c.h.bf16 %v2976
          %v2986 = vunpack.c.l.bf16 %v2977
          %v2987 = vunpack.c.h.bf16 %v2977
          %v2988 = vunpack.c.l.bf16 %v2978
          %v2989 = vunpack.c.h.bf16 %v2978
          %v2990 = vunpack.c.l.bf16 %v2979
          %v2991 = vunpack.c.h.bf16 %v2979
          %v2992 = vunpack.c.l.bf16 %v2980
          %v2993 = vunpack.c.h.bf16 %v2980
          %v2994 = vunpack.c.l.bf16 %v2981
          %v2995 = vunpack.c.h.bf16 %v2981
          %v2996 = vunpack.c.l.bf16 %v2982
          %v2997 = vunpack.c.h.bf16 %v2982
          %v2998 = vunpack.c.l.bf16 %v2983
          %v2999 = vunpack.c.h.bf16 %v2983
          %v3000 = vmul.f32 %v2865, %v2984
          %v3001 = vmul.f32 %v2867, %v2985
          %v3002 = vmul.f32 %v2954, %v2986
          %v3003 = vmul.f32 %v2956, %v2987
          %v3004 = vmul.f32 %v2871, %v2988
          %v3005 = vmul.f32 %v2873, %v2989
          %v3006 = vmul.f32 %v2960, %v2990
          %v3007 = vmul.f32 %v2962, %v2991
          %v3008 = vmul.f32 %v2877, %v2992
          %v3009 = vmul.f32 %v2879, %v2993
          %v3010 = vmul.f32 %v2966, %v2994
          %v3011 = vmul.f32 %v2968, %v2995
          %v3012 = vmul.f32 %v2883, %v2996
          %v3013 = vmul.f32 %v2885, %v2997
          %v3014 = vmul.f32 %v2972, %v2998
          %v3015 = vmul.f32 %v2974, %v2999
          %v3016 = vld [vmem:[%s8] sm:$0xff]
          %v3017 = vld [vmem:[%s8 + $0x8] sm:$0xff]
          %v3018 = vld [vmem:[%s8 + $0x10] sm:$0xff]
          %v3019 = vld [vmem:[%s8 + $0x18] sm:$0xff]
          %v3021 = vsel %vm661, %v3016, 0
          %v3024 = vsel %vm661, %v3017, 0
          %v3027 = vsel %vm661, %v3018, 0
          %v3030 = vsel %vm661, %v3019, 0
          %3032 = vmatprep.subr.mxu0 %v3001
          %3033 = vmatpush1.msra.mxu0 %v3000
          %3034 = vmatprep.subr.mxu0 %v3005
          %3035 = vmatpush1.msra.mxu0 %v3004
          %3036 = vmatprep.subr.mxu0 %v3009
          %3037 = vmatpush1.msra.mxu0 %v3008
          %3038 = vmatprep.subr.mxu0 %v3013
          %3039 = vmatpush1.msra.mxu0 %v3012
          %3040 = vmatprep.subr.mxu0 0.0
          %3041 = vmatpush1.msra.mxu0 0.0
          %3042 = vmatprep.subr.mxu0 0.0
          %3043 = vmatpush1.msra.mxu0 0.0
          %3044 = vmatprep.subr.mxu0 0.0
          %3045 = vmatpush1.msra.mxu0 0.0
          %3046 = vmatprep.subr.mxu0 0.0
          %3047 = vmatpush1.msra.mxu0 0.0
          %3048 = vmatprep.subr.mxu0 0.0
          %3049 = vmatpush1.msra.mxu0 0.0
          %3050 = vmatprep.subr.mxu0 0.0
          %3051 = vmatpush1.msra.mxu0 0.0
          %3052 = vmatprep.subr.mxu0 0.0
          %3053 = vmatpush1.msra.mxu0 0.0
          %3054 = vmatprep.subr.mxu0 0.0
          %3055 = vmatpush1.msra.mxu0 0.0
          %3056 = vmatprep.subr.mxu0 0.0
          %3057 = vmatpush1.msra.mxu0 0.0
          %3058 = vmatprep.subr.mxu0 0.0
          %3059 = vmatpush1.msra.mxu0 0.0
          %3060 = vmatprep.subr.mxu0 0.0
          %3061 = vmatpush1.msra.mxu0 0.0
          %3062 = vmatprep.subr.mxu0 0.0
          %3063 = vmatpush1.msra.mxu0 0.0
          %3064 = vmatprep.subr.mxu0 0.0
          %3065 = vmatpush1.msra.mxu0 0.0
          %3066 = vmatprep.subr.mxu0 0.0
          %3067 = vmatpush1.msra.mxu0 0.0
          %3068 = vmatprep.subr.mxu0 0.0
          %3069 = vmatpush1.msra.mxu0 0.0
          %3070 = vmatprep.subr.mxu0 0.0
          %3071 = vmatpush1.msra.mxu0 0.0
          %3072 = vmatprep.subr.mxu0 0.0
          %3073 = vmatpush1.msra.mxu0 0.0
          %3074 = vmatprep.subr.mxu0 0.0
          %3075 = vmatpush1.msra.mxu0 0.0
          %3076 = vmatprep.subr.mxu0 0.0
          %3077 = vmatpush1.msra.mxu0 0.0
          %3078 = vmatprep.subr.mxu0 0.0
          %3079 = vmatpush1.msra.mxu0 0.0
          %3080 = vmatprep.subr.mxu0 0.0
          %3081 = vmatpush1.msra.mxu0 0.0
          %3082 = vmatprep.subr.mxu0 0.0
          %3083 = vmatpush1.msra.mxu0 0.0
          %3084 = vmatprep.subr.mxu0 0.0
          %3085 = vmatpush1.msra.mxu0 0.0
          %3086 = vmatprep.subr.mxu0 0.0
          %3087 = vmatpush1.msra.mxu0 0.0
          %3088 = vmatprep.subr.mxu0 0.0
          %3089 = vmatpush1.msra.mxu0 0.0
          %3090 = vmatprep.subr.mxu0 0.0
          %3091 = vmatpush1.msra.mxu0 0.0
          %3092 = vmatprep.subr.mxu0 0.0
          %3093 = vmatpush1.msra.mxu0 0.0
          %3094 = vmatprep.subr.mxu0 0.0
          %3095 = vmatpush1.msra.mxu0 0.0
          %3096 = vmatprep.mubr.f32.mxu0 0.0
          %3097 = vmatmul.mubr.f32.gmra.mrb[0].mxu0 %v3021
          %v3098 = vpop.f32.mrb[0].mxu0
          %v3099 = vadd.f32 0.0, %v3098
          %v3100 = vpop.f32.mrb[0].mxu0
          %v3101 = vadd.f32 0.0, %v3100
          %3102 = vmatprep.mubr.f32.mxu0 0.0
          %3103 = vmatmul.mubr.f32.gmra.mrb[0].mxu0 %v3024
          %v3104 = vpop.f32.mrb[0].mxu0
          %v3105 = vadd.f32 0.0, %v3104
          %v3106 = vpop.f32.mrb[0].mxu0
          %v3107 = vadd.f32 0.0, %v3106
          %3108 = vmatprep.mubr.f32.mxu0 0.0
          %3109 = vmatmul.mubr.f32.gmra.mrb[0].mxu0 %v3027
          %v3110 = vpop.f32.mrb[0].mxu0
          %v3111 = vadd.f32 0.0, %v3110
          %v3112 = vpop.f32.mrb[0].mxu0
          %v3113 = vadd.f32 0.0, %v3112
          %3114 = vmatprep.mubr.f32.mxu0 0.0
          %3115 = vmatmul.mubr.f32.gmra.mrb[0].mxu0 %v3030
          %v3116 = vpop.f32.mrb[0].mxu0
          %v3117 = vadd.f32 0.0, %v3116
          %v3118 = vpop.f32.mrb[0].mxu0
          %v3119 = vadd.f32 0.0, %v3118
          %3120 = vdwg.mxu0
          %3121 = vmatprep.subr.mxu0 %v3003
          %3122 = vmatpush1.msra.mxu0 %v3002
          %3123 = vmatprep.subr.mxu0 %v3007
          %3124 = vmatpush1.msra.mxu0 %v3006
          %3125 = vmatprep.subr.mxu0 %v3011
          %3126 = vmatpush1.msra.mxu0 %v3010
          %3127 = vmatprep.subr.mxu0 %v3015
          %3128 = vmatpush1.msra.mxu0 %v3014
          %3129 = vmatprep.subr.mxu0 0.0
          %3130 = vmatpush1.msra.mxu0 0.0
          %3131 = vmatprep.subr.mxu0 0.0
          %3132 = vmatpush1.msra.mxu0 0.0
          %3133 = vmatprep.subr.mxu0 0.0
          %3134 = vmatpush1.msra.mxu0 0.0
          %3135 = vmatprep.subr.mxu0 0.0
          %3136 = vmatpush1.msra.mxu0 0.0
          %3137 = vmatprep.subr.mxu0 0.0
          %3138 = vmatpush1.msra.mxu0 0.0
          %3139 = vmatprep.subr.mxu0 0.0
          %3140 = vmatpush1.msra.mxu0 0.0
          %3141 = vmatprep.subr.mxu0 0.0
          %3142 = vmatpush1.msra.mxu0 0.0
          %3143 = vmatprep.subr.mxu0 0.0
          %3144 = vmatpush1.msra.mxu0 0.0
          %3145 = vmatprep.subr.mxu0 0.0
          %3146 = vmatpush1.msra.mxu0 0.0
          %3147 = vmatprep.subr.mxu0 0.0
          %3148 = vmatpush1.msra.mxu0 0.0
          %3149 = vmatprep.subr.mxu0 0.0
          %3150 = vmatpush1.msra.mxu0 0.0
          %3151 = vmatprep.subr.mxu0 0.0
          %3152 = vmatpush1.msra.mxu0 0.0
          %3153 = vmatprep.subr.mxu0 0.0
          %3154 = vmatpush1.msra.mxu0 0.0
          %3155 = vmatprep.subr.mxu0 0.0
          %3156 = vmatpush1.msra.mxu0 0.0
          %3157 = vmatprep.subr.mxu0 0.0
          %3158 = vmatpush1.msra.mxu0 0.0
          %3159 = vmatprep.subr.mxu0 0.0
          %3160 = vmatpush1.msra.mxu0 0.0
          %3161 = vmatprep.subr.mxu0 0.0
          %3162 = vmatpush1.msra.mxu0 0.0
          %3163 = vmatprep.subr.mxu0 0.0
          %3164 = vmatpush1.msra.mxu0 0.0
          %3165 = vmatprep.subr.mxu0 0.0
          %3166 = vmatpush1.msra.mxu0 0.0
          %3167 = vmatprep.subr.mxu0 0.0
          %3168 = vmatpush1.msra.mxu0 0.0
          %3169 = vmatprep.subr.mxu0 0.0
          %3170 = vmatpush1.msra.mxu0 0.0
          %3171 = vmatprep.subr.mxu0 0.0
          %3172 = vmatpush1.msra.mxu0 0.0
          %3173 = vmatprep.subr.mxu0 0.0
          %3174 = vmatpush1.msra.mxu0 0.0
          %3175 = vmatprep.subr.mxu0 0.0
          %3176 = vmatpush1.msra.mxu0 0.0
          %3177 = vmatprep.subr.mxu0 0.0
          %3178 = vmatpush1.msra.mxu0 0.0
          %3179 = vmatprep.subr.mxu0 0.0
          %3180 = vmatpush1.msra.mxu0 0.0
          %3181 = vmatprep.subr.mxu0 0.0
          %3182 = vmatpush1.msra.mxu0 0.0
          %3183 = vmatprep.subr.mxu0 0.0
          %3184 = vmatpush1.msra.mxu0 0.0
          %3185 = vmatprep.mubr.f32.mxu0 0.0
          %3186 = vmatmul.mubr.f32.gmra.mrb[0].mxu0 %v3021
          %v3187 = vpop.f32.mrb[0].mxu0
          %v3188 = vadd.f32 0.0, %v3187
          %v3189 = vpop.f32.mrb[0].mxu0
          %v3190 = vadd.f32 0.0, %v3189
          %3191 = vmatprep.mubr.f32.mxu0 0.0
          %3192 = vmatmul.mubr.f32.gmra.mrb[0].mxu0 %v3024
          %v3193 = vpop.f32.mrb[0].mxu0
          %v3194 = vadd.f32 0.0, %v3193
          %v3195 = vpop.f32.mrb[0].mxu0
          %v3196 = vadd.f32 0.0, %v3195
          %3197 = vmatprep.mubr.f32.mxu0 0.0
          %3198 = vmatmul.mubr.f32.gmra.mrb[0].mxu0 %v3027
          %v3199 = vpop.f32.mrb[0].mxu0
          %v3200 = vadd.f32 0.0, %v3199
          %v3201 = vpop.f32.mrb[0].mxu0
          %v3202 = vadd.f32 0.0, %v3201
          %3203 = vmatprep.mubr.f32.mxu0 0.0
          %3204 = vmatmul.mubr.f32.gmra.mrb[0].mxu0 %v3030
          %v3205 = vpop.f32.mrb[0].mxu0
          %v3206 = vadd.f32 0.0, %v3205
          %v3207 = vpop.f32.mrb[0].mxu0
          %v3208 = vadd.f32 0.0, %v3207
          %3209 = vdwg.mxu0
          %3210 = vst [vmem:[#allocation3] sm:$0xff] %v3099
          %3211 = vst [vmem:[#allocation3 + $0x8] sm:$0xff] %v3101
          %3212 = vst [vmem:[#allocation3 + $0x10] sm:$0xff] %v3188
          %3213 = vst [vmem:[#allocation3 + $0x18] sm:$0xff] %v3190
          %3214 = vst [vmem:[#allocation3 + $0x20] sm:$0xff] %v3105
          %3215 = vst [vmem:[#allocation3 + $0x28] sm:$0xff] %v3107
          %3216 = vst [vmem:[#allocation3 + $0x30] sm:$0xff] %v3194
          %3217 = vst [vmem:[#allocation3 + $0x38] sm:$0xff] %v3196
          %3218 = vst [vmem:[#allocation3 + $0x40] sm:$0xff] %v3111
          %3219 = vst [vmem:[#allocation3 + $0x48] sm:$0xff] %v3113
          %3220 = vst [vmem:[#allocation3 + $0x50] sm:$0xff] %v3200
          %3221 = vst [vmem:[#allocation3 + $0x58] sm:$0xff] %v3202
          %3222 = vst [vmem:[#allocation3 + $0x60] sm:$0xff] %v3117
          %3223 = vst [vmem:[#allocation3 + $0x68] sm:$0xff] %v3119
          %3224 = vst [vmem:[#allocation3 + $0x70] sm:$0xff] %v3206
          %3225 = vst [vmem:[#allocation3 + $0x78] sm:$0xff] %v3208
        $region96: #{tpu_custom_call.1} parent=91 // pred_fallthru
          _
        %v3226 = vld [vmem:[%s622] sm:$0xff]
        %v3227 = vld [vmem:[%s622 + $0x8] sm:$0xff]
        %v3228 = vld [vmem:[%s622 + $0x10] sm:$0xff]
        %v3229 = vld [vmem:[%s622 + $0x18] sm:$0xff]
        %v3230 = vld [vmem:[%s622 + $0x20] sm:$0xff]
        %v3231 = vld [vmem:[%s622 + $0x28] sm:$0xff]
        %v3232 = vld [vmem:[%s622 + $0x30] sm:$0xff]
        %v3233 = vld [vmem:[%s622 + $0x38] sm:$0xff]
        %v3234 = vld [vmem:[%s9] sm:$0xff]
        %v3235 = vld [vmem:[%s9 + $0x8] sm:$0xff]
        %vm3236 = vcmask 261120
        %v3238 = vsel %vm3236, %v3234, 0
        %v3241 = vsel %vm3236, %v3235, 0
        %3243 = vmatprep.subr.mxu0 %v3227
        %3244 = vmatpush1.msra.mxu0 %v3226
        %3245 = vmatprep.subr.mxu0 %v3229
        %3246 = vmatpush1.msra.mxu0 %v3228
        %3247 = vmatprep.subr.mxu0 %v3231
        %3248 = vmatpush1.msra.mxu0 %v3230
        %3249 = vmatprep.subr.mxu0 %v3233
        %3250 = vmatpush1.msra.mxu0 %v3232
        %3251 = vmatprep.subr.mxu0 0.0
        %3252 = vmatpush1.msra.mxu0 0.0
        %3253 = vmatprep.subr.mxu0 0.0
        %3254 = vmatpush1.msra.mxu0 0.0
        %3255 = vmatprep.subr.mxu0 0.0
        %3256 = vmatpush1.msra.mxu0 0.0
        %3257 = vmatprep.subr.mxu0 0.0
        %3258 = vmatpush1.msra.mxu0 0.0
        %3259 = vmatprep.subr.mxu0 0.0
        %3260 = vmatpush1.msra.mxu0 0.0
        %3261 = vmatprep.subr.mxu0 0.0
        %3262 = vmatpush1.msra.mxu0 0.0
        %3263 = vmatprep.subr.mxu0 0.0
        %3264 = vmatpush1.msra.mxu0 0.0
        %3265 = vmatprep.subr.mxu0 0.0
        %3266 = vmatpush1.msra.mxu0 0.0
        %3267 = vmatprep.subr.mxu0 0.0
        %3268 = vmatpush1.msra.mxu0 0.0
        %3269 = vmatprep.subr.mxu0 0.0
        %3270 = vmatpush1.msra.mxu0 0.0
        %3271 = vmatprep.subr.mxu0 0.0
        %3272 = vmatpush1.msra.mxu0 0.0
        %3273 = vmatprep.subr.mxu0 0.0
        %3274 = vmatpush1.msra.mxu0 0.0
        %3275 = vmatprep.subr.mxu0 0.0
        %3276 = vmatpush1.msra.mxu0 0.0
        %3277 = vmatprep.subr.mxu0 0.0
        %3278 = vmatpush1.msra.mxu0 0.0
        %3279 = vmatprep.subr.mxu0 0.0
        %3280 = vmatpush1.msra.mxu0 0.0
        %3281 = vmatprep.subr.mxu0 0.0
        %3282 = vmatpush1.msra.mxu0 0.0
        %3283 = vmatprep.subr.mxu0 0.0
        %3284 = vmatpush1.msra.mxu0 0.0
        %3285 = vmatprep.subr.mxu0 0.0
        %3286 = vmatpush1.msra.mxu0 0.0
        %3287 = vmatprep.subr.mxu0 0.0
        %3288 = vmatpush1.msra.mxu0 0.0
        %3289 = vmatprep.subr.mxu0 0.0
        %3290 = vmatpush1.msra.mxu0 0.0
        %3291 = vmatprep.subr.mxu0 0.0
        %3292 = vmatpush1.msra.mxu0 0.0
        %3293 = vmatprep.subr.mxu0 0.0
        %3294 = vmatpush1.msra.mxu0 0.0
        %3295 = vmatprep.subr.mxu0 0.0
        %3296 = vmatpush1.msra.mxu0 0.0
        %3297 = vmatprep.subr.mxu0 0.0
        %3298 = vmatpush1.msra.mxu0 0.0
        %3299 = vmatprep.subr.mxu0 0.0
        %3300 = vmatpush1.msra.mxu0 0.0
        %3301 = vmatprep.subr.mxu0 0.0
        %3302 = vmatpush1.msra.mxu0 0.0
        %3303 = vmatprep.subr.mxu0 0.0
        %3304 = vmatpush1.msra.mxu0 0.0
        %3305 = vmatprep.subr.mxu0 0.0
        %3306 = vmatpush1.msra.mxu0 0.0
        %3307 = vmatprep.mubr.f32.mxu0 0.0
        %3308 = vmatmul.mubr.f32.gmra.mrb[0].mxu0 %v3238
        %v3309 = vpop.f32.mrb[0].mxu0
        %v3310 = vadd.f32 0.0, %v3309
        %v3311 = vpop.f32.mrb[0].mxu0
        %v3312 = vadd.f32 0.0, %v3311
        %3313 = vmatprep.mubr.f32.mxu0 0.0
        %3314 = vmatmul.mubr.f32.gmra.mrb[0].mxu0 %v3241
        %v3315 = vpop.f32.mrb[0].mxu0
        %v3316 = vadd.f32 0.0, %v3315
        %v3317 = vpop.f32.mrb[0].mxu0
        %v3318 = vadd.f32 0.0, %v3317
        %3319 = vdwg.mxu0
        %vm3320 = vcmp.ge.f32.partialorder %v3310, 0.0
        %vm3321 = vcmp.ge.f32.partialorder %v3312, 0.0
        %vm3322 = vcmp.ge.f32.partialorder %v3316, 0.0
        %vm3323 = vcmp.ge.f32.partialorder %v3318, 0.0
        %v3324 = vld [vmem:[#allocation4] sm:$0xff]
        %v3325 = vld [vmem:[#allocation4 + $0x8] sm:$0xff]
        %3327 = vset.pattern.permute.xlu0 0
        %3328 = vperm.xlu0 %3327, %v3324
        %v3329 = vpop.permute.xlu0 %3328
        %3332 = vset.pattern.permute.xlu0 0
        %3333 = vperm.xlu0 %3332, %v3325
        %v3334 = vpop.permute.xlu0 %3333
        %v3336 = vmul.f32 %v3310, %v3329
        %v3337 = vmul.f32 %v3312, %v3329
        %v3338 = vmul.f32 %v3316, %v3334
        %v3339 = vmul.f32 %v3318, %v3334
        %v3340 = vld [vmem:[#allocation5] sm:$0xff]
        %v3341 = vld [vmem:[#allocation5 + $0x8] sm:$0xff]
        %3343 = vset.pattern.permute.xlu0 0
        %3344 = vperm.xlu0 %3343, %v3340
        %v3345 = vpop.permute.xlu0 %3344
        %3348 = vset.pattern.permute.xlu0 0
        %3349 = vperm.xlu0 %3348, %v3341
        %v3350 = vpop.permute.xlu0 %3349
        %v3352 = vmul.f32 %v3310, %v3345
        %v3353 = vmul.f32 %v3312, %v3345
        %v3354 = vmul.f32 %v3316, %v3350
        %v3355 = vmul.f32 %v3318, %v3350
        %v3356 = vsel %vm3320, %v3336, %v3352
        %v3357 = vsel %vm3321, %v3337, %v3353
        %v3358 = vsel %vm3322, %v3338, %v3354
        %v3359 = vsel %vm3323, %v3339, %v3355
        %v3360 = vld [vmem:[#allocation2] sm:$0xff]
        %v3361 = vld [vmem:[#allocation2 + $0x8] sm:$0xff]
        %v3362 = vld [vmem:[#allocation2 + $0x10] sm:$0xff]
        %v3363 = vld [vmem:[#allocation2 + $0x18] sm:$0xff]
        %v3364 = vld [vmem:[#allocation2 + $0x20] sm:$0xff]
        %v3365 = vld [vmem:[#allocation2 + $0x28] sm:$0xff]
        %v3366 = vld [vmem:[#allocation2 + $0x30] sm:$0xff]
        %v3367 = vld [vmem:[#allocation2 + $0x38] sm:$0xff]
        %v3368 = vld [vmem:[#allocation2 + $0x40] sm:$0xff]
        %v3369 = vld [vmem:[#allocation2 + $0x48] sm:$0xff]
        %v3370 = vld [vmem:[#allocation2 + $0x50] sm:$0xff]
        %v3371 = vld [vmem:[#allocation2 + $0x58] sm:$0xff]
        %v3372 = vld [vmem:[#allocation2 + $0x60] sm:$0xff]
        %v3373 = vld [vmem:[#allocation2 + $0x68] sm:$0xff]
        %v3374 = vld [vmem:[#allocation2 + $0x70] sm:$0xff]
        %v3375 = vld [vmem:[#allocation2 + $0x78] sm:$0xff]
        %v3376 = vld [vmem:[#allocation2 + $0x80] sm:$0xff]
        %v3377 = vld [vmem:[#allocation2 + $0x88] sm:$0xff]
        %v3378 = vld [vmem:[#allocation2 + $0x90] sm:$0xff]
        %v3379 = vld [vmem:[#allocation2 + $0x98] sm:$0xff]
        %v3380 = vld [vmem:[#allocation2 + $0xa0] sm:$0xff]
        %v3381 = vld [vmem:[#allocation2 + $0xa8] sm:$0xff]
        %v3382 = vld [vmem:[#allocation2 + $0xb0] sm:$0xff]
        %v3383 = vld [vmem:[#allocation2 + $0xb8] sm:$0xff]
        %v3384 = vld [vmem:[#allocation2 + $0xc0] sm:$0xff]
        %v3385 = vld [vmem:[#allocation2 + $0xc8] sm:$0xff]
        %v3386 = vld [vmem:[#allocation2 + $0xd0] sm:$0xff]
        %v3387 = vld [vmem:[#allocation2 + $0xd8] sm:$0xff]
        %v3388 = vld [vmem:[#allocation2 + $0xe0] sm:$0xff]
        %v3389 = vld [vmem:[#allocation2 + $0xe8] sm:$0xff]
        %v3390 = vld [vmem:[#allocation2 + $0xf0] sm:$0xff]
        %v3391 = vld [vmem:[#allocation2 + $0xf8] sm:$0xff]
        %v3392 = vld [vmem:[#allocation2 + $0x100] sm:$0xff]
        %v3393 = vld [vmem:[#allocation2 + $0x108] sm:$0xff]
        %v3394 = vld [vmem:[#allocation2 + $0x110] sm:$0xff]
        %v3395 = vld [vmem:[#allocation2 + $0x118] sm:$0xff]
        %v3396 = vld [vmem:[#allocation2 + $0x120] sm:$0xff]
        %v3397 = vld [vmem:[#allocation2 + $0x128] sm:$0xff]
        %v3398 = vld [vmem:[#allocation2 + $0x130] sm:$0xff]
        %v3399 = vld [vmem:[#allocation2 + $0x138] sm:$0xff]
        %v3400 = vld [vmem:[#allocation2 + $0x140] sm:$0xff]
        %v3401 = vld [vmem:[#allocation2 + $0x148] sm:$0xff]
        %v3402 = vld [vmem:[#allocation2 + $0x150] sm:$0xff]
        %v3403 = vld [vmem:[#allocation2 + $0x158] sm:$0xff]
        %v3404 = vld [vmem:[#allocation2 + $0x160] sm:$0xff]
        %v3405 = vld [vmem:[#allocation2 + $0x168] sm:$0xff]
        %v3406 = vld [vmem:[#allocation2 + $0x170] sm:$0xff]
        %v3407 = vld [vmem:[#allocation2 + $0x178] sm:$0xff]
        %v3408 = vld [vmem:[#allocation2 + $0x180] sm:$0xff]
        %v3409 = vld [vmem:[#allocation2 + $0x188] sm:$0xff]
        %v3410 = vld [vmem:[#allocation2 + $0x190] sm:$0xff]
        %v3411 = vld [vmem:[#allocation2 + $0x198] sm:$0xff]
        %v3412 = vld [vmem:[#allocation2 + $0x1a0] sm:$0xff]
        %v3413 = vld [vmem:[#allocation2 + $0x1a8] sm:$0xff]
        %v3414 = vld [vmem:[#allocation2 + $0x1b0] sm:$0xff]
        %v3415 = vld [vmem:[#allocation2 + $0x1b8] sm:$0xff]
        %v3416 = vld [vmem:[#allocation2 + $0x1c0] sm:$0xff]
        %v3417 = vld [vmem:[#allocation2 + $0x1c8] sm:$0xff]
        %v3418 = vld [vmem:[#allocation2 + $0x1d0] sm:$0xff]
        %v3419 = vld [vmem:[#allocation2 + $0x1d8] sm:$0xff]
        %v3420 = vld [vmem:[#allocation2 + $0x1e0] sm:$0xff]
        %v3421 = vld [vmem:[#allocation2 + $0x1e8] sm:$0xff]
        %v3422 = vld [vmem:[#allocation2 + $0x1f0] sm:$0xff]
        %v3423 = vld [vmem:[#allocation2 + $0x1f8] sm:$0xff]
        %vm3424 = vcmask 130048
        %v3426 = vsel %vm3424, %v3360, 0
        %v3429 = vsel %vm3424, %v3361, 0
        %v3432 = vsel %vm3424, %v3362, 0
        %v3435 = vsel %vm3424, %v3363, 0
        %v3438 = vsel %vm3424, %v3364, 0
        %v3441 = vsel %vm3424, %v3365, 0
        %v3444 = vsel %vm3424, %v3366, 0
        %v3447 = vsel %vm3424, %v3367, 0
        %v3450 = vsel %vm3424, %v3368, 0
        %v3453 = vsel %vm3424, %v3369, 0
        %v3456 = vsel %vm3424, %v3370, 0
        %v3459 = vsel %vm3424, %v3371, 0
        %v3462 = vsel %vm3424, %v3372, 0
        %v3465 = vsel %vm3424, %v3373, 0
        %v3468 = vsel %vm3424, %v3374, 0
        %v3471 = vsel %vm3424, %v3375, 0
        %v3474 = vsel %vm3424, %v3376, 0
        %v3477 = vsel %vm3424, %v3377, 0
        %v3480 = vsel %vm3424, %v3378, 0
        %v3483 = vsel %vm3424, %v3379, 0
        %v3486 = vsel %vm3424, %v3380, 0
        %v3489 = vsel %vm3424, %v3381, 0
        %v3492 = vsel %vm3424, %v3382, 0
        %v3495 = vsel %vm3424, %v3383, 0
        %v3498 = vsel %vm3424, %v3384, 0
        %v3501 = vsel %vm3424, %v3385, 0
        %v3504 = vsel %vm3424, %v3386, 0
        %v3507 = vsel %vm3424, %v3387, 0
        %v3510 = vsel %vm3424, %v3388, 0
        %v3513 = vsel %vm3424, %v3389, 0
        %v3516 = vsel %vm3424, %v3390, 0
        %v3519 = vsel %vm3424, %v3391, 0
        %v3522 = vsel %vm3424, %v3392, 0
        %v3525 = vsel %vm3424, %v3393, 0
        %v3528 = vsel %vm3424, %v3394, 0
        %v3531 = vsel %vm3424, %v3395, 0
        %v3534 = vsel %vm3424, %v3396, 0
        %v3537 = vsel %vm3424, %v3397, 0
        %v3540 = vsel %vm3424, %v3398, 0
        %v3543 = vsel %vm3424, %v3399, 0
        %v3546 = vsel %vm3424, %v3400, 0
        %v3549 = vsel %vm3424, %v3401, 0
        %v3552 = vsel %vm3424, %v3402, 0
        %v3555 = vsel %vm3424, %v3403, 0
        %v3558 = vsel %vm3424, %v3404, 0
        %v3561 = vsel %vm3424, %v3405, 0
        %v3564 = vsel %vm3424, %v3406, 0
        %v3567 = vsel %vm3424, %v3407, 0
        %v3570 = vsel %vm3424, %v3408, 0
        %v3573 = vsel %vm3424, %v3409, 0
        %v3576 = vsel %vm3424, %v3410, 0
        %v3579 = vsel %vm3424, %v3411, 0
        %v3582 = vsel %vm3424, %v3412, 0
        %v3585 = vsel %vm3424, %v3413, 0
        %v3588 = vsel %vm3424, %v3414, 0
        %v3591 = vsel %vm3424, %v3415, 0
        %v3594 = vsel %vm3424, %v3416, 0
        %v3597 = vsel %vm3424, %v3417, 0
        %v3600 = vsel %vm3424, %v3418, 0
        %v3603 = vsel %vm3424, %v3419, 0
        %v3606 = vsel %vm3424, %v3420, 0
        %v3609 = vsel %vm3424, %v3421, 0
        %v3612 = vsel %vm3424, %v3422, 0
        %v3615 = vsel %vm3424, %v3423, 0
        %3617 = vmatprep.subr.mxu0 %v3357
        %3618 = vmatpush1.msra.mxu0 %v3356
        %3619 = vmatprep.subr.mxu0 %v3359
        %3620 = vmatpush1.msra.mxu0 %v3358
        %3621 = vmatprep.subr.mxu0 0.0
        %3622 = vmatpush1.msra.mxu0 0.0
        %3623 = vmatprep.subr.mxu0 0.0
        %3624 = vmatpush1.msra.mxu0 0.0
        %3625 = vmatprep.subr.mxu0 0.0
        %3626 = vmatpush1.msra.mxu0 0.0
        %3627 = vmatprep.subr.mxu0 0.0
        %3628 = vmatpush1.msra.mxu0 0.0
        %3629 = vmatprep.subr.mxu0 0.0
        %3630 = vmatpush1.msra.mxu0 0.0
        %3631 = vmatprep.subr.mxu0 0.0
        %3632 = vmatpush1.msra.mxu0 0.0
        %3633 = vmatprep.subr.mxu0 0.0
        %3634 = vmatpush1.msra.mxu0 0.0
        %3635 = vmatprep.subr.mxu0 0.0
        %3636 = vmatpush1.msra.mxu0 0.0
        %3637 = vmatprep.subr.mxu0 0.0
        %3638 = vmatpush1.msra.mxu0 0.0
        %3639 = vmatprep.subr.mxu0 0.0
        %3640 = vmatpush1.msra.mxu0 0.0
        %3641 = vmatprep.subr.mxu0 0.0
        %3642 = vmatpush1.msra.mxu0 0.0
        %3643 = vmatprep.subr.mxu0 0.0
        %3644 = vmatpush1.msra.mxu0 0.0
        %3645 = vmatprep.subr.mxu0 0.0
        %3646 = vmatpush1.msra.mxu0 0.0
        %3647 = vmatprep.subr.mxu0 0.0
        %3648 = vmatpush1.msra.mxu0 0.0
        %3649 = vmatprep.subr.mxu0 0.0
        %3650 = vmatpush1.msra.mxu0 0.0
        %3651 = vmatprep.subr.mxu0 0.0
        %3652 = vmatpush1.msra.mxu0 0.0
        %3653 = vmatprep.subr.mxu0 0.0
        %3654 = vmatpush1.msra.mxu0 0.0
        %3655 = vmatprep.subr.mxu0 0.0
        %3656 = vmatpush1.msra.mxu0 0.0
        %3657 = vmatprep.subr.mxu0 0.0
        %3658 = vmatpush1.msra.mxu0 0.0
        %3659 = vmatprep.subr.mxu0 0.0
        %3660 = vmatpush1.msra.mxu0 0.0
        %3661 = vmatprep.subr.mxu0 0.0
        %3662 = vmatpush1.msra.mxu0 0.0
        %3663 = vmatprep.subr.mxu0 0.0
        %3664 = vmatpush1.msra.mxu0 0.0
        %3665 = vmatprep.subr.mxu0 0.0
        %3666 = vmatpush1.msra.mxu0 0.0
        %3667 = vmatprep.subr.mxu0 0.0
        %3668 = vmatpush1.msra.mxu0 0.0
        %3669 = vmatprep.subr.mxu0 0.0
        %3670 = vmatpush1.msra.mxu0 0.0
        %3671 = vmatprep.subr.mxu0 0.0
        %3672 = vmatpush1.msra.mxu0 0.0
        %3673 = vmatprep.subr.mxu0 0.0
        %3674 = vmatpush1.msra.mxu0 0.0
        %3675 = vmatprep.subr.mxu0 0.0
        %3676 = vmatpush1.msra.mxu0 0.0
        %3677 = vmatprep.subr.mxu0 0.0
        %3678 = vmatpush1.msra.mxu0 0.0
        %3679 = vmatprep.subr.mxu0 0.0
        %3680 = vmatpush1.msra.mxu0 0.0
        %3681 = vmatprep.mubr.f32.mxu0 0.0
        %3682 = vmatmul.mubr.f32.gmra.mrb[0].mxu0 %v3426
        %v3683 = vpop.f32.mrb[0].mxu0
        %v3684 = vadd.f32 0.0, %v3683
        %v3685 = vpop.f32.mrb[0].mxu0
        %v3686 = vadd.f32 0.0, %v3685
        %3687 = vmatprep.mubr.f32.mxu0 0.0
        %3688 = vmatmul.mubr.f32.gmra.mrb[0].mxu0 %v3429
        %v3689 = vpop.f32.mrb[0].mxu0
        %v3690 = vadd.f32 0.0, %v3689
        %v3691 = vpop.f32.mrb[0].mxu0
        %v3692 = vadd.f32 0.0, %v3691
        %3693 = vmatprep.mubr.f32.mxu0 0.0
        %3694 = vmatmul.mubr.f32.gmra.mrb[0].mxu0 %v3432
        %v3695 = vpop.f32.mrb[0].mxu0
        %v3696 = vadd.f32 0.0, %v3695
        %v3697 = vpop.f32.mrb[0].mxu0
        %v3698 = vadd.f32 0.0, %v3697
        %3699 = vmatprep.mubr.f32.mxu0 0.0
        %3700 = vmatmul.mubr.f32.gmra.mrb[0].mxu0 %v3435
        %v3701 = vpop.f32.mrb[0].mxu0
        %v3702 = vadd.f32 0.0, %v3701
        %v3703 = vpop.f32.mrb[0].mxu0
        %v3704 = vadd.f32 0.0, %v3703
        %3705 = vmatprep.mubr.f32.mxu0 0.0
        %3706 = vmatmul.mubr.f32.gmra.mrb[0].mxu0 %v3438
        %v3707 = vpop.f32.mrb[0].mxu0
        %v3708 = vadd.f32 0.0, %v3707
        %v3709 = vpop.f32.mrb[0].mxu0
        %v3710 = vadd.f32 0.0, %v3709
        %3711 = vmatprep.mubr.f32.mxu0 0.0
        %3712 = vmatmul.mubr.f32.gmra.mrb[0].mxu0 %v3441
        %v3713 = vpop.f32.mrb[0].mxu0
        %v3714 = vadd.f32 0.0, %v3713
        %v3715 = vpop.f32.mrb[0].mxu0
        %v3716 = vadd.f32 0.0, %v3715
        %3717 = vmatprep.mubr.f32.mxu0 0.0
        %3718 = vmatmul.mubr.f32.gmra.mrb[0].mxu0 %v3444
        %v3719 = vpop.f32.mrb[0].mxu0
        %v3720 = vadd.f32 0.0, %v3719
        %v3721 = vpop.f32.mrb[0].mxu0
        %v3722 = vadd.f32 0.0, %v3721
        %3723 = vmatprep.mubr.f32.mxu0 0.0
        %3724 = vmatmul.mubr.f32.gmra.mrb[0].mxu0 %v3447
        %v3725 = vpop.f32.mrb[0].mxu0
        %v3726 = vadd.f32 0.0, %v3725
        %v3727 = vpop.f32.mrb[0].mxu0
        %v3728 = vadd.f32 0.0, %v3727
        %3729 = vmatprep.mubr.f32.mxu0 0.0
        %3730 = vmatmul.mubr.f32.gmra.mrb[0].mxu0 %v3450
        %v3731 = vpop.f32.mrb[0].mxu0
        %v3732 = vadd.f32 0.0, %v3731
        %v3733 = vpop.f32.mrb[0].mxu0
        %v3734 = vadd.f32 0.0, %v3733
        %3735 = vmatprep.mubr.f32.mxu0 0.0
        %3736 = vmatmul.mubr.f32.gmra.mrb[0].mxu0 %v3453
        %v3737 = vpop.f32.mrb[0].mxu0
        %v3738 = vadd.f32 0.0, %v3737
        %v3739 = vpop.f32.mrb[0].mxu0
        %v3740 = vadd.f32 0.0, %v3739
        %3741 = vmatprep.mubr.f32.mxu0 0.0
        %3742 = vmatmul.mubr.f32.gmra.mrb[0].mxu0 %v3456
        %v3743 = vpop.f32.mrb[0].mxu0
        %v3744 = vadd.f32 0.0, %v3743
        %v3745 = vpop.f32.mrb[0].mxu0
        %v3746 = vadd.f32 0.0, %v3745
        %3747 = vmatprep.mubr.f32.mxu0 0.0
        %3748 = vmatmul.mubr.f32.gmra.mrb[0].mxu0 %v3459
        %v3749 = vpop.f32.mrb[0].mxu0
        %v3750 = vadd.f32 0.0, %v3749
        %v3751 = vpop.f32.mrb[0].mxu0
        %v3752 = vadd.f32 0.0, %v3751
        %3753 = vmatprep.mubr.f32.mxu0 0.0
        %3754 = vmatmul.mubr.f32.gmra.mrb[0].mxu0 %v3462
        %v3755 = vpop.f32.mrb[0].mxu0
        %v3756 = vadd.f32 0.0, %v3755
        %v3757 = vpop.f32.mrb[0].mxu0
        %v3758 = vadd.f32 0.0, %v3757
        %3759 = vmatprep.mubr.f32.mxu0 0.0
        %3760 = vmatmul.mubr.f32.gmra.mrb[0].mxu0 %v3465
        %v3761 = vpop.f32.mrb[0].mxu0
        %v3762 = vadd.f32 0.0, %v3761
        %v3763 = vpop.f32.mrb[0].mxu0
        %v3764 = vadd.f32 0.0, %v3763
        %3765 = vmatprep.mubr.f32.mxu0 0.0
        %3766 = vmatmul.mubr.f32.gmra.mrb[0].mxu0 %v3468
        %v3767 = vpop.f32.mrb[0].mxu0
        %v3768 = vadd.f32 0.0, %v3767
        %v3769 = vpop.f32.mrb[0].mxu0
        %v3770 = vadd.f32 0.0, %v3769
        %3771 = vmatprep.mubr.f32.mxu0 0.0
        %3772 = vmatmul.mubr.f32.gmra.mrb[0].mxu0 %v3471
        %v3773 = vpop.f32.mrb[0].mxu0
        %v3774 = vadd.f32 0.0, %v3773
        %v3775 = vpop.f32.mrb[0].mxu0
        %v3776 = vadd.f32 0.0, %v3775
        %3777 = vmatprep.mubr.f32.mxu0 0.0
        %3778 = vmatmul.mubr.f32.gmra.mrb[0].mxu0 %v3474
        %v3779 = vpop.f32.mrb[0].mxu0
        %v3780 = vadd.f32 0.0, %v3779
        %v3781 = vpop.f32.mrb[0].mxu0
        %v3782 = vadd.f32 0.0, %v3781
        %3783 = vmatprep.mubr.f32.mxu0 0.0
        %3784 = vmatmul.mubr.f32.gmra.mrb[0].mxu0 %v3477
        %v3785 = vpop.f32.mrb[0].mxu0
        %v3786 = vadd.f32 0.0, %v3785
        %v3787 = vpop.f32.mrb[0].mxu0
        %v3788 = vadd.f32 0.0, %v3787
        %3789 = vmatprep.mubr.f32.mxu0 0.0
        %3790 = vmatmul.mubr.f32.gmra.mrb[0].mxu0 %v3480
        %v3791 = vpop.f32.mrb[0].mxu0
        %v3792 = vadd.f32 0.0, %v3791
        %v3793 = vpop.f32.mrb[0].mxu0
        %v3794 = vadd.f32 0.0, %v3793
        %3795 = vmatprep.mubr.f32.mxu0 0.0
        %3796 = vmatmul.mubr.f32.gmra.mrb[0].mxu0 %v3483
        %v3797 = vpop.f32.mrb[0].mxu0
        %v3798 = vadd.f32 0.0, %v3797
        %v3799 = vpop.f32.mrb[0].mxu0
        %v3800 = vadd.f32 0.0, %v3799
        %3801 = vmatprep.mubr.f32.mxu0 0.0
        %3802 = vmatmul.mubr.f32.gmra.mrb[0].mxu0 %v3486
        %v3803 = vpop.f32.mrb[0].mxu0
        %v3804 = vadd.f32 0.0, %v3803
        %v3805 = vpop.f32.mrb[0].mxu0
        %v3806 = vadd.f32 0.0, %v3805
        %3807 = vmatprep.mubr.f32.mxu0 0.0
        %3808 = vmatmul.mubr.f32.gmra.mrb[0].mxu0 %v3489
        %v3809 = vpop.f32.mrb[0].mxu0
        %v3810 = vadd.f32 0.0, %v3809
        %v3811 = vpop.f32.mrb[0].mxu0
        %v3812 = vadd.f32 0.0, %v3811
        %3813 = vmatprep.mubr.f32.mxu0 0.0
        %3814 = vmatmul.mubr.f32.gmra.mrb[0].mxu0 %v3492
        %v3815 = vpop.f32.mrb[0].mxu0
        %v3816 = vadd.f32 0.0, %v3815
        %v3817 = vpop.f32.mrb[0].mxu0
        %v3818 = vadd.f32 0.0, %v3817
        %3819 = vmatprep.mubr.f32.mxu0 0.0
        %3820 = vmatmul.mubr.f32.gmra.mrb[0].mxu0 %v3495
        %v3821 = vpop.f32.mrb[0].mxu0
        %v3822 = vadd.f32 0.0, %v3821
        %v3823 = vpop.f32.mrb[0].mxu0
        %v3824 = vadd.f32 0.0, %v3823
        %3825 = vmatprep.mubr.f32.mxu0 0.0
        %3826 = vmatmul.mubr.f32.gmra.mrb[0].mxu0 %v3498
        %v3827 = vpop.f32.mrb[0].mxu0
        %v3828 = vadd.f32 0.0, %v3827
        %v3829 = vpop.f32.mrb[0].mxu0
        %v3830 = vadd.f32 0.0, %v3829
        %3831 = vmatprep.mubr.f32.mxu0 0.0
        %3832 = vmatmul.mubr.f32.gmra.mrb[0].mxu0 %v3501
        %v3833 = vpop.f32.mrb[0].mxu0
        %v3834 = vadd.f32 0.0, %v3833
        %v3835 = vpop.f32.mrb[0].mxu0
        %v3836 = vadd.f32 0.0, %v3835
        %3837 = vmatprep.mubr.f32.mxu0 0.0
        %3838 = vmatmul.mubr.f32.gmra.mrb[0].mxu0 %v3504
        %v3839 = vpop.f32.mrb[0].mxu0
        %v3840 = vadd.f32 0.0, %v3839
        %v3841 = vpop.f32.mrb[0].mxu0
        %v3842 = vadd.f32 0.0, %v3841
        %3843 = vmatprep.mubr.f32.mxu0 0.0
        %3844 = vmatmul.mubr.f32.gmra.mrb[0].mxu0 %v3507
        %v3845 = vpop.f32.mrb[0].mxu0
        %v3846 = vadd.f32 0.0, %v3845
        %v3847 = vpop.f32.mrb[0].mxu0
        %v3848 = vadd.f32 0.0, %v3847
        %3849 = vmatprep.mubr.f32.mxu0 0.0
        %3850 = vmatmul.mubr.f32.gmra.mrb[0].mxu0 %v3510
        %v3851 = vpop.f32.mrb[0].mxu0
        %v3852 = vadd.f32 0.0, %v3851
        %v3853 = vpop.f32.mrb[0].mxu0
        %v3854 = vadd.f32 0.0, %v3853
        %3855 = vmatprep.mubr.f32.mxu0 0.0
        %3856 = vmatmul.mubr.f32.gmra.mrb[0].mxu0 %v3513
        %v3857 = vpop.f32.mrb[0].mxu0
        %v3858 = vadd.f32 0.0, %v3857
        %v3859 = vpop.f32.mrb[0].mxu0
        %v3860 = vadd.f32 0.0, %v3859
        %3861 = vmatprep.mubr.f32.mxu0 0.0
        %3862 = vmatmul.mubr.f32.gmra.mrb[0].mxu0 %v3516
        %v3863 = vpop.f32.mrb[0].mxu0
        %v3864 = vadd.f32 0.0, %v3863
        %v3865 = vpop.f32.mrb[0].mxu0
        %v3866 = vadd.f32 0.0, %v3865
        %3867 = vmatprep.mubr.f32.mxu0 0.0
        %3868 = vmatmul.mubr.f32.gmra.mrb[0].mxu0 %v3519
        %v3869 = vpop.f32.mrb[0].mxu0
        %v3870 = vadd.f32 0.0, %v3869
        %v3871 = vpop.f32.mrb[0].mxu0
        %v3872 = vadd.f32 0.0, %v3871
        %3873 = vmatprep.mubr.f32.mxu0 0.0
        %3874 = vmatmul.mubr.f32.gmra.mrb[0].mxu0 %v3522
        %v3875 = vpop.f32.mrb[0].mxu0
        %v3876 = vadd.f32 0.0, %v3875
        %v3877 = vpop.f32.mrb[0].mxu0
        %v3878 = vadd.f32 0.0, %v3877
        %3879 = vmatprep.mubr.f32.mxu0 0.0
        %3880 = vmatmul.mubr.f32.gmra.mrb[0].mxu0 %v3525
        %v3881 = vpop.f32.mrb[0].mxu0
        %v3882 = vadd.f32 0.0, %v3881
        %v3883 = vpop.f32.mrb[0].mxu0
        %v3884 = vadd.f32 0.0, %v3883
        %3885 = vmatprep.mubr.f32.mxu0 0.0
        %3886 = vmatmul.mubr.f32.gmra.mrb[0].mxu0 %v3528
        %v3887 = vpop.f32.mrb[0].mxu0
        %v3888 = vadd.f32 0.0, %v3887
        %v3889 = vpop.f32.mrb[0].mxu0
        %v3890 = vadd.f32 0.0, %v3889
        %3891 = vmatprep.mubr.f32.mxu0 0.0
        %3892 = vmatmul.mubr.f32.gmra.mrb[0].mxu0 %v3531
        %v3893 = vpop.f32.mrb[0].mxu0
        %v3894 = vadd.f32 0.0, %v3893
        %v3895 = vpop.f32.mrb[0].mxu0
        %v3896 = vadd.f32 0.0, %v3895
        %3897 = vmatprep.mubr.f32.mxu0 0.0
        %3898 = vmatmul.mubr.f32.gmra.mrb[0].mxu0 %v3534
        %v3899 = vpop.f32.mrb[0].mxu0
        %v3900 = vadd.f32 0.0, %v3899
        %v3901 = vpop.f32.mrb[0].mxu0
        %v3902 = vadd.f32 0.0, %v3901
        %3903 = vmatprep.mubr.f32.mxu0 0.0
        %3904 = vmatmul.mubr.f32.gmra.mrb[0].mxu0 %v3537
        %v3905 = vpop.f32.mrb[0].mxu0
        %v3906 = vadd.f32 0.0, %v3905
        %v3907 = vpop.f32.mrb[0].mxu0
        %v3908 = vadd.f32 0.0, %v3907
        %3909 = vmatprep.mubr.f32.mxu0 0.0
        %3910 = vmatmul.mubr.f32.gmra.mrb[0].mxu0 %v3540
        %v3911 = vpop.f32.mrb[0].mxu0
        %v3912 = vadd.f32 0.0, %v3911
        %v3913 = vpop.f32.mrb[0].mxu0
        %v3914 = vadd.f32 0.0, %v3913
        %3915 = vmatprep.mubr.f32.mxu0 0.0
        %3916 = vmatmul.mubr.f32.gmra.mrb[0].mxu0 %v3543
        %v3917 = vpop.f32.mrb[0].mxu0
        %v3918 = vadd.f32 0.0, %v3917
        %v3919 = vpop.f32.mrb[0].mxu0
        %v3920 = vadd.f32 0.0, %v3919
        %3921 = vmatprep.mubr.f32.mxu0 0.0
        %3922 = vmatmul.mubr.f32.gmra.mrb[0].mxu0 %v3546
        %v3923 = vpop.f32.mrb[0].mxu0
        %v3924 = vadd.f32 0.0, %v3923
        %v3925 = vpop.f32.mrb[0].mxu0
        %v3926 = vadd.f32 0.0, %v3925
        %3927 = vmatprep.mubr.f32.mxu0 0.0
        %3928 = vmatmul.mubr.f32.gmra.mrb[0].mxu0 %v3549
        %v3929 = vpop.f32.mrb[0].mxu0
        %v3930 = vadd.f32 0.0, %v3929
        %v3931 = vpop.f32.mrb[0].mxu0
        %v3932 = vadd.f32 0.0, %v3931
        %3933 = vmatprep.mubr.f32.mxu0 0.0
        %3934 = vmatmul.mubr.f32.gmra.mrb[0].mxu0 %v3552
        %v3935 = vpop.f32.mrb[0].mxu0
        %v3936 = vadd.f32 0.0, %v3935
        %v3937 = vpop.f32.mrb[0].mxu0
        %v3938 = vadd.f32 0.0, %v3937
        %3939 = vmatprep.mubr.f32.mxu0 0.0
        %3940 = vmatmul.mubr.f32.gmra.mrb[0].mxu0 %v3555
        %v3941 = vpop.f32.mrb[0].mxu0
        %v3942 = vadd.f32 0.0, %v3941
        %v3943 = vpop.f32.mrb[0].mxu0
        %v3944 = vadd.f32 0.0, %v3943
        %3945 = vmatprep.mubr.f32.mxu0 0.0
        %3946 = vmatmul.mubr.f32.gmra.mrb[0].mxu0 %v3558
        %v3947 = vpop.f32.mrb[0].mxu0
        %v3948 = vadd.f32 0.0, %v3947
        %v3949 = vpop.f32.mrb[0].mxu0
        %v3950 = vadd.f32 0.0, %v3949
        %3951 = vmatprep.mubr.f32.mxu0 0.0
        %3952 = vmatmul.mubr.f32.gmra.mrb[0].mxu0 %v3561
        %v3953 = vpop.f32.mrb[0].mxu0
        %v3954 = vadd.f32 0.0, %v3953
        %v3955 = vpop.f32.mrb[0].mxu0
        %v3956 = vadd.f32 0.0, %v3955
        %3957 = vmatprep.mubr.f32.mxu0 0.0
        %3958 = vmatmul.mubr.f32.gmra.mrb[0].mxu0 %v3564
        %v3959 = vpop.f32.mrb[0].mxu0
        %v3960 = vadd.f32 0.0, %v3959
        %v3961 = vpop.f32.mrb[0].mxu0
        %v3962 = vadd.f32 0.0, %v3961
        %3963 = vmatprep.mubr.f32.mxu0 0.0
        %3964 = vmatmul.mubr.f32.gmra.mrb[0].mxu0 %v3567
        %v3965 = vpop.f32.mrb[0].mxu0
        %v3966 = vadd.f32 0.0, %v3965
        %v3967 = vpop.f32.mrb[0].mxu0
        %v3968 = vadd.f32 0.0, %v3967
        %3969 = vmatprep.mubr.f32.mxu0 0.0
        %3970 = vmatmul.mubr.f32.gmra.mrb[0].mxu0 %v3570
        %v3971 = vpop.f32.mrb[0].mxu0
        %v3972 = vadd.f32 0.0, %v3971
        %v3973 = vpop.f32.mrb[0].mxu0
        %v3974 = vadd.f32 0.0, %v3973
        %3975 = vmatprep.mubr.f32.mxu0 0.0
        %3976 = vmatmul.mubr.f32.gmra.mrb[0].mxu0 %v3573
        %v3977 = vpop.f32.mrb[0].mxu0
        %v3978 = vadd.f32 0.0, %v3977
        %v3979 = vpop.f32.mrb[0].mxu0
        %v3980 = vadd.f32 0.0, %v3979
        %3981 = vmatprep.mubr.f32.mxu0 0.0
        %3982 = vmatmul.mubr.f32.gmra.mrb[0].mxu0 %v3576
        %v3983 = vpop.f32.mrb[0].mxu0
        %v3984 = vadd.f32 0.0, %v3983
        %v3985 = vpop.f32.mrb[0].mxu0
        %v3986 = vadd.f32 0.0, %v3985
        %3987 = vmatprep.mubr.f32.mxu0 0.0
        %3988 = vmatmul.mubr.f32.gmra.mrb[0].mxu0 %v3579
        %v3989 = vpop.f32.mrb[0].mxu0
        %v3990 = vadd.f32 0.0, %v3989
        %v3991 = vpop.f32.mrb[0].mxu0
        %v3992 = vadd.f32 0.0, %v3991
        %3993 = vmatprep.mubr.f32.mxu0 0.0
        %3994 = vmatmul.mubr.f32.gmra.mrb[0].mxu0 %v3582
        %v3995 = vpop.f32.mrb[0].mxu0
        %v3996 = vadd.f32 0.0, %v3995
        %v3997 = vpop.f32.mrb[0].mxu0
        %v3998 = vadd.f32 0.0, %v3997
        %3999 = vmatprep.mubr.f32.mxu0 0.0
        %4000 = vmatmul.mubr.f32.gmra.mrb[0].mxu0 %v3585
        %v4001 = vpop.f32.mrb[0].mxu0
        %v4002 = vadd.f32 0.0, %v4001
        %v4003 = vpop.f32.mrb[0].mxu0
        %v4004 = vadd.f32 0.0, %v4003
        %4005 = vmatprep.mubr.f32.mxu0 0.0
        %4006 = vmatmul.mubr.f32.gmra.mrb[0].mxu0 %v3588
        %v4007 = vpop.f32.mrb[0].mxu0
        %v4008 = vadd.f32 0.0, %v4007
        %v4009 = vpop.f32.mrb[0].mxu0
        %v4010 = vadd.f32 0.0, %v4009
        %4011 = vmatprep.mubr.f32.mxu0 0.0
        %4012 = vmatmul.mubr.f32.gmra.mrb[0].mxu0 %v3591
        %v4013 = vpop.f32.mrb[0].mxu0
        %v4014 = vadd.f32 0.0, %v4013
        %v4015 = vpop.f32.mrb[0].mxu0
        %v4016 = vadd.f32 0.0, %v4015
        %4017 = vmatprep.mubr.f32.mxu0 0.0
        %4018 = vmatmul.mubr.f32.gmra.mrb[0].mxu0 %v3594
        %v4019 = vpop.f32.mrb[0].mxu0
        %v4020 = vadd.f32 0.0, %v4019
        %v4021 = vpop.f32.mrb[0].mxu0
        %v4022 = vadd.f32 0.0, %v4021
        %4023 = vmatprep.mubr.f32.mxu0 0.0
        %4024 = vmatmul.mubr.f32.gmra.mrb[0].mxu0 %v3597
        %v4025 = vpop.f32.mrb[0].mxu0
        %v4026 = vadd.f32 0.0, %v4025
        %v4027 = vpop.f32.mrb[0].mxu0
        %v4028 = vadd.f32 0.0, %v4027
        %4029 = vmatprep.mubr.f32.mxu0 0.0
        %4030 = vmatmul.mubr.f32.gmra.mrb[0].mxu0 %v3600
        %v4031 = vpop.f32.mrb[0].mxu0
        %v4032 = vadd.f32 0.0, %v4031
        %v4033 = vpop.f32.mrb[0].mxu0
        %v4034 = vadd.f32 0.0, %v4033
        %4035 = vmatprep.mubr.f32.mxu0 0.0
        %4036 = vmatmul.mubr.f32.gmra.mrb[0].mxu0 %v3603
        %v4037 = vpop.f32.mrb[0].mxu0
        %v4038 = vadd.f32 0.0, %v4037
        %v4039 = vpop.f32.mrb[0].mxu0
        %v4040 = vadd.f32 0.0, %v4039
        %4041 = vmatprep.mubr.f32.mxu0 0.0
        %4042 = vmatmul.mubr.f32.gmra.mrb[0].mxu0 %v3606
        %v4043 = vpop.f32.mrb[0].mxu0
        %v4044 = vadd.f32 0.0, %v4043
        %v4045 = vpop.f32.mrb[0].mxu0
        %v4046 = vadd.f32 0.0, %v4045
        %4047 = vmatprep.mubr.f32.mxu0 0.0
        %4048 = vmatmul.mubr.f32.gmra.mrb[0].mxu0 %v3609
        %v4049 = vpop.f32.mrb[0].mxu0
        %v4050 = vadd.f32 0.0, %v4049
        %v4051 = vpop.f32.mrb[0].mxu0
        %v4052 = vadd.f32 0.0, %v4051
        %4053 = vmatprep.mubr.f32.mxu0 0.0
        %4054 = vmatmul.mubr.f32.gmra.mrb[0].mxu0 %v3612
        %v4055 = vpop.f32.mrb[0].mxu0
        %v4056 = vadd.f32 0.0, %v4055
        %v4057 = vpop.f32.mrb[0].mxu0
        %v4058 = vadd.f32 0.0, %v4057
        %4059 = vmatprep.mubr.f32.mxu0 0.0
        %4060 = vmatmul.mubr.f32.gmra.mrb[0].mxu0 %v3615
        %v4061 = vpop.f32.mrb[0].mxu0
        %v4062 = vadd.f32 0.0, %v4061
        %v4063 = vpop.f32.mrb[0].mxu0
        %v4064 = vadd.f32 0.0, %v4063
        %4065 = vdwg.mxu0
        %v4066 = vmul.f32 %v3684, 1.442695
        %v4067 = vpow.pop %v4066
        %v4068 = vmul.f32 %v3686, 1.442695
        %v4069 = vpow.pop %v4068
        %v4070 = vmul.f32 %v3690, 1.442695
        %v4071 = vpow.pop %v4070
        %v4072 = vmul.f32 %v3692, 1.442695
        %v4073 = vpow.pop %v4072
        %v4074 = vmul.f32 %v3696, 1.442695
        %v4075 = vpow.pop %v4074
        %v4076 = vmul.f32 %v3698, 1.442695
        %v4077 = vpow.pop %v4076
        %v4078 = vmul.f32 %v3702, 1.442695
        %v4079 = vpow.pop %v4078
        %v4080 = vmul.f32 %v3704, 1.442695
        %v4081 = vpow.pop %v4080
        %v4082 = vmul.f32 %v3708, 1.442695
        %v4083 = vpow.pop %v4082
        %v4084 = vmul.f32 %v3710, 1.442695
        %v4085 = vpow.pop %v4084
        %v4086 = vmul.f32 %v3714, 1.442695
        %v4087 = vpow.pop %v4086
        %v4088 = vmul.f32 %v3716, 1.442695
        %v4089 = vpow.pop %v4088
        %v4090 = vmul.f32 %v3720, 1.442695
        %v4091 = vpow.pop %v4090
        %v4092 = vmul.f32 %v3722, 1.442695
        %v4093 = vpow.pop %v4092
        %v4094 = vmul.f32 %v3726, 1.442695
        %v4095 = vpow.pop %v4094
        %v4096 = vmul.f32 %v3728, 1.442695
        %v4097 = vpow.pop %v4096
        %v4098 = vmul.f32 %v3732, 1.442695
        %v4099 = vpow.pop %v4098
        %v4100 = vmul.f32 %v3734, 1.442695
        %v4101 = vpow.pop %v4100
        %v4102 = vmul.f32 %v3738, 1.442695
        %v4103 = vpow.pop %v4102
        %v4104 = vmul.f32 %v3740, 1.442695
        %v4105 = vpow.pop %v4104
        %v4106 = vmul.f32 %v3744, 1.442695
        %v4107 = vpow.pop %v4106
        %v4108 = vmul.f32 %v3746, 1.442695
        %v4109 = vpow.pop %v4108
        %v4110 = vmul.f32 %v3750, 1.442695
        %v4111 = vpow.pop %v4110
        %v4112 = vmul.f32 %v3752, 1.442695
        %v4113 = vpow.pop %v4112
        %v4114 = vmul.f32 %v3756, 1.442695
        %v4115 = vpow.pop %v4114
        %v4116 = vmul.f32 %v3758, 1.442695
        %v4117 = vpow.pop %v4116
        %v4118 = vmul.f32 %v3762, 1.442695
        %v4119 = vpow.pop %v4118
        %v4120 = vmul.f32 %v3764, 1.442695
        %v4121 = vpow.pop %v4120
        %v4122 = vmul.f32 %v3768, 1.442695
        %v4123 = vpow.pop %v4122
        %v4124 = vmul.f32 %v3770, 1.442695
        %v4125 = vpow.pop %v4124
        %v4126 = vmul.f32 %v3774, 1.442695
        %v4127 = vpow.pop %v4126
        %v4128 = vmul.f32 %v3776, 1.442695
        %v4129 = vpow.pop %v4128
        %v4130 = vmul.f32 %v3780, 1.442695
        %v4131 = vpow.pop %v4130
        %v4132 = vmul.f32 %v3782, 1.442695
        %v4133 = vpow.pop %v4132
        %v4134 = vmul.f32 %v3786, 1.442695
        %v4135 = vpow.pop %v4134
        %v4136 = vmul.f32 %v3788, 1.442695
        %v4137 = vpow.pop %v4136
        %v4138 = vmul.f32 %v3792, 1.442695
        %v4139 = vpow.pop %v4138
        %v4140 = vmul.f32 %v3794, 1.442695
        %v4141 = vpow.pop %v4140
        %v4142 = vmul.f32 %v3798, 1.442695
        %v4143 = vpow.pop %v4142
        %v4144 = vmul.f32 %v3800, 1.442695
        %v4145 = vpow.pop %v4144
        %v4146 = vmul.f32 %v3804, 1.442695
        %v4147 = vpow.pop %v4146
        %v4148 = vmul.f32 %v3806, 1.442695
        %v4149 = vpow.pop %v4148
        %v4150 = vmul.f32 %v3810, 1.442695
        %v4151 = vpow.pop %v4150
        %v4152 = vmul.f32 %v3812, 1.442695
        %v4153 = vpow.pop %v4152
        %v4154 = vmul.f32 %v3816, 1.442695
        %v4155 = vpow.pop %v4154
        %v4156 = vmul.f32 %v3818, 1.442695
        %v4157 = vpow.pop %v4156
        %v4158 = vmul.f32 %v3822, 1.442695
        %v4159 = vpow.pop %v4158
        %v4160 = vmul.f32 %v3824, 1.442695
        %v4161 = vpow.pop %v4160
        %v4162 = vmul.f32 %v3828, 1.442695
        %v4163 = vpow.pop %v4162
        %v4164 = vmul.f32 %v3830, 1.442695
        %v4165 = vpow.pop %v4164
        %v4166 = vmul.f32 %v3834, 1.442695
        %v4167 = vpow.pop %v4166
        %v4168 = vmul.f32 %v3836, 1.442695
        %v4169 = vpow.pop %v4168
        %v4170 = vmul.f32 %v3840, 1.442695
        %v4171 = vpow.pop %v4170
        %v4172 = vmul.f32 %v3842, 1.442695
        %v4173 = vpow.pop %v4172
        %v4174 = vmul.f32 %v3846, 1.442695
        %v4175 = vpow.pop %v4174
        %v4176 = vmul.f32 %v3848, 1.442695
        %v4177 = vpow.pop %v4176
        %v4178 = vmul.f32 %v3852, 1.442695
        %v4179 = vpow.pop %v4178
        %v4180 = vmul.f32 %v3854, 1.442695
        %v4181 = vpow.pop %v4180
        %v4182 = vmul.f32 %v3858, 1.442695
        %v4183 = vpow.pop %v4182
        %v4184 = vmul.f32 %v3860, 1.442695
        %v4185 = vpow.pop %v4184
        %v4186 = vmul.f32 %v3864, 1.442695
        %v4187 = vpow.pop %v4186
        %v4188 = vmul.f32 %v3866, 1.442695
        %v4189 = vpow.pop %v4188
        %v4190 = vmul.f32 %v3870, 1.442695
        %v4191 = vpow.pop %v4190
        %v4192 = vmul.f32 %v3872, 1.442695
        %v4193 = vpow.pop %v4192
        %v4194 = vmul.f32 %v3876, 1.442695
        %v4195 = vpow.pop %v4194
        %v4196 = vmul.f32 %v3878, 1.442695
        %v4197 = vpow.pop %v4196
        %v4198 = vmul.f32 %v3882, 1.442695
        %v4199 = vpow.pop %v4198
        %v4200 = vmul.f32 %v3884, 1.442695
        %v4201 = vpow.pop %v4200
        %v4202 = vmul.f32 %v3888, 1.442695
        %v4203 = vpow.pop %v4202
        %v4204 = vmul.f32 %v3890, 1.442695
        %v4205 = vpow.pop %v4204
        %v4206 = vmul.f32 %v3894, 1.442695
        %v4207 = vpow.pop %v4206
        %v4208 = vmul.f32 %v3896, 1.442695
        %v4209 = vpow.pop %v4208
        %v4210 = vmul.f32 %v3900, 1.442695
        %v4211 = vpow.pop %v4210
        %v4212 = vmul.f32 %v3902, 1.442695
        %v4213 = vpow.pop %v4212
        %v4214 = vmul.f32 %v3906, 1.442695
        %v4215 = vpow.pop %v4214
        %v4216 = vmul.f32 %v3908, 1.442695
        %v4217 = vpow.pop %v4216
        %v4218 = vmul.f32 %v3912, 1.442695
        %v4219 = vpow.pop %v4218
        %v4220 = vmul.f32 %v3914, 1.442695
        %v4221 = vpow.pop %v4220
        %v4222 = vmul.f32 %v3918, 1.442695
        %v4223 = vpow.pop %v4222
        %v4224 = vmul.f32 %v3920, 1.442695
        %v4225 = vpow.pop %v4224
        %v4226 = vmul.f32 %v3924, 1.442695
        %v4227 = vpow.pop %v4226
        %v4228 = vmul.f32 %v3926, 1.442695
        %v4229 = vpow.pop %v4228
        %v4230 = vmul.f32 %v3930, 1.442695
        %v4231 = vpow.pop %v4230
        %v4232 = vmul.f32 %v3932, 1.442695
        %v4233 = vpow.pop %v4232
        %v4234 = vmul.f32 %v3936, 1.442695
        %v4235 = vpow.pop %v4234
        %v4236 = vmul.f32 %v3938, 1.442695
        %v4237 = vpow.pop %v4236
        %v4238 = vmul.f32 %v3942, 1.442695
        %v4239 = vpow.pop %v4238
        %v4240 = vmul.f32 %v3944, 1.442695
        %v4241 = vpow.pop %v4240
        %v4242 = vmul.f32 %v3948, 1.442695
        %v4243 = vpow.pop %v4242
        %v4244 = vmul.f32 %v3950, 1.442695
        %v4245 = vpow.pop %v4244
        %v4246 = vmul.f32 %v3954, 1.442695
        %v4247 = vpow.pop %v4246
        %v4248 = vmul.f32 %v3956, 1.442695
        %v4249 = vpow.pop %v4248
        %v4250 = vmul.f32 %v3960, 1.442695
        %v4251 = vpow.pop %v4250
        %v4252 = vmul.f32 %v3962, 1.442695
        %v4253 = vpow.pop %v4252
        %v4254 = vmul.f32 %v3966, 1.442695
        %v4255 = vpow.pop %v4254
        %v4256 = vmul.f32 %v3968, 1.442695
        %v4257 = vpow.pop %v4256
        %v4258 = vmul.f32 %v3972, 1.442695
        %v4259 = vpow.pop %v4258
        %v4260 = vmul.f32 %v3974, 1.442695
        %v4261 = vpow.pop %v4260
        %v4262 = vmul.f32 %v3978, 1.442695
        %v4263 = vpow.pop %v4262
        %v4264 = vmul.f32 %v3980, 1.442695
        %v4265 = vpow.pop %v4264
        %v4266 = vmul.f32 %v3984, 1.442695
        %v4267 = vpow.pop %v4266
        %v4268 = vmul.f32 %v3986, 1.442695
        %v4269 = vpow.pop %v4268
        %v4270 = vmul.f32 %v3990, 1.442695
        %v4271 = vpow.pop %v4270
        %v4272 = vmul.f32 %v3992, 1.442695
        %v4273 = vpow.pop %v4272
        %v4274 = vmul.f32 %v3996, 1.442695
        %v4275 = vpow.pop %v4274
        %v4276 = vmul.f32 %v3998, 1.442695
        %v4277 = vpow.pop %v4276
        %v4278 = vmul.f32 %v4002, 1.442695
        %v4279 = vpow.pop %v4278
        %v4280 = vmul.f32 %v4004, 1.442695
        %v4281 = vpow.pop %v4280
        %v4282 = vmul.f32 %v4008, 1.442695
        %v4283 = vpow.pop %v4282
        %v4284 = vmul.f32 %v4010, 1.442695
        %v4285 = vpow.pop %v4284
        %v4286 = vmul.f32 %v4014, 1.442695
        %v4287 = vpow.pop %v4286
        %v4288 = vmul.f32 %v4016, 1.442695
        %v4289 = vpow.pop %v4288
        %v4290 = vmul.f32 %v4020, 1.442695
        %v4291 = vpow.pop %v4290
        %v4292 = vmul.f32 %v4022, 1.442695
        %v4293 = vpow.pop %v4292
        %v4294 = vmul.f32 %v4026, 1.442695
        %v4295 = vpow.pop %v4294
        %v4296 = vmul.f32 %v4028, 1.442695
        %v4297 = vpow.pop %v4296
        %v4298 = vmul.f32 %v4032, 1.442695
        %v4299 = vpow.pop %v4298
        %v4300 = vmul.f32 %v4034, 1.442695
        %v4301 = vpow.pop %v4300
        %v4302 = vmul.f32 %v4038, 1.442695
        %v4303 = vpow.pop %v4302
        %v4304 = vmul.f32 %v4040, 1.442695
        %v4305 = vpow.pop %v4304
        %v4306 = vmul.f32 %v4044, 1.442695
        %v4307 = vpow.pop %v4306
        %v4308 = vmul.f32 %v4046, 1.442695
        %v4309 = vpow.pop %v4308
        %v4310 = vmul.f32 %v4050, 1.442695
        %v4311 = vpow.pop %v4310
        %v4312 = vmul.f32 %v4052, 1.442695
        %v4313 = vpow.pop %v4312
        %v4314 = vmul.f32 %v4056, 1.442695
        %v4315 = vpow.pop %v4314
        %v4316 = vmul.f32 %v4058, 1.442695
        %v4317 = vpow.pop %v4316
        %v4318 = vmul.f32 %v4062, 1.442695
        %v4319 = vpow.pop %v4318
        %v4320 = vmul.f32 %v4064, 1.442695
        %v4321 = vpow.pop %v4320
        %v4322 = vld [vmem:[%s12] sm:$0xff]
        %v4323 = vld [vmem:[%s12 + $0x8] sm:$0xff]
        %v4324 = vunpack.c.l.bf16 %v4322
        %v4325 = vunpack.c.h.bf16 %v4322
        %v4326 = vunpack.c.l.bf16 %v4323
        %v4327 = vunpack.c.h.bf16 %v4323
        %4328 = vmatprep.subr.mxu0 %v4069
        %4329 = vmatpush1.msra.mxu0 %v4067
        %4330 = vmatprep.subr.mxu0 %v4073
        %4331 = vmatpush1.msra.mxu0 %v4071
        %4332 = vmatprep.subr.mxu0 %v4077
        %4333 = vmatpush1.msra.mxu0 %v4075
        %4334 = vmatprep.subr.mxu0 %v4081
        %4335 = vmatpush1.msra.mxu0 %v4079
        %4336 = vmatprep.subr.mxu0 %v4085
        %4337 = vmatpush1.msra.mxu0 %v4083
        %4338 = vmatprep.subr.mxu0 %v4089
        %4339 = vmatpush1.msra.mxu0 %v4087
        %4340 = vmatprep.subr.mxu0 %v4093
        %4341 = vmatpush1.msra.mxu0 %v4091
        %4342 = vmatprep.subr.mxu0 %v4097
        %4343 = vmatpush1.msra.mxu0 %v4095
        %4344 = vmatprep.subr.mxu0 %v4101
        %4345 = vmatpush1.msra.mxu0 %v4099
        %4346 = vmatprep.subr.mxu0 %v4105
        %4347 = vmatpush1.msra.mxu0 %v4103
        %4348 = vmatprep.subr.mxu0 %v4109
        %4349 = vmatpush1.msra.mxu0 %v4107
        %4350 = vmatprep.subr.mxu0 %v4113
        %4351 = vmatpush1.msra.mxu0 %v4111
        %4352 = vmatprep.subr.mxu0 %v4117
        %4353 = vmatpush1.msra.mxu0 %v4115
        %4354 = vmatprep.subr.mxu0 %v4121
        %4355 = vmatpush1.msra.mxu0 %v4119
        %4356 = vmatprep.subr.mxu0 %v4125
        %4357 = vmatpush1.msra.mxu0 %v4123
        %4358 = vmatprep.subr.mxu0 %v4129
        %4359 = vmatpush1.msra.mxu0 %v4127
        %4360 = vmatprep.subr.mxu0 %v4133
        %4361 = vmatpush1.msra.mxu0 %v4131
        %4362 = vmatprep.subr.mxu0 %v4137
        %4363 = vmatpush1.msra.mxu0 %v4135
        %4364 = vmatprep.subr.mxu0 %v4141
        %4365 = vmatpush1.msra.mxu0 %v4139
        %4366 = vmatprep.subr.mxu0 %v4145
        %4367 = vmatpush1.msra.mxu0 %v4143
        %4368 = vmatprep.subr.mxu0 %v4149
        %4369 = vmatpush1.msra.mxu0 %v4147
        %4370 = vmatprep.subr.mxu0 %v4153
        %4371 = vmatpush1.msra.mxu0 %v4151
        %4372 = vmatprep.subr.mxu0 %v4157
        %4373 = vmatpush1.msra.mxu0 %v4155
        %4374 = vmatprep.subr.mxu0 %v4161
        %4375 = vmatpush1.msra.mxu0 %v4159
        %4376 = vmatprep.subr.mxu0 %v4165
        %4377 = vmatpush1.msra.mxu0 %v4163
        %4378 = vmatprep.subr.mxu0 %v4169
        %4379 = vmatpush1.msra.mxu0 %v4167
        %4380 = vmatprep.subr.mxu0 %v4173
        %4381 = vmatpush1.msra.mxu0 %v4171
        %4382 = vmatprep.subr.mxu0 %v4177
        %4383 = vmatpush1.msra.mxu0 %v4175
        %4384 = vmatprep.subr.mxu0 %v4181
        %4385 = vmatpush1.msra.mxu0 %v4179
        %4386 = vmatprep.subr.mxu0 %v4185
        %4387 = vmatpush1.msra.mxu0 %v4183
        %4388 = vmatprep.subr.mxu0 %v4189
        %4389 = vmatpush1.msra.mxu0 %v4187
        %4390 = vmatprep.subr.mxu0 %v4193
        %4391 = vmatpush1.msra.mxu0 %v4191
        %4392 = vmatprep.mubr.f32.mxu0 %v4325
        %4393 = vmatmul.mubr.f32.gmra.mrb[0].mxu0 %v4324
        %v4394 = vpop.f32.mrb[0].mxu0
        %v4395 = vadd.f32 0.0, %v4394
        %v4396 = vpop.f32.mrb[0].mxu0
        %v4397 = vadd.f32 0.0, %v4396
        %4398 = vdwg.mxu0
        %4399 = vmatprep.subr.mxu0 %v4197
        %4400 = vmatpush1.msra.mxu0 %v4195
        %4401 = vmatprep.subr.mxu0 %v4201
        %4402 = vmatpush1.msra.mxu0 %v4199
        %4403 = vmatprep.subr.mxu0 %v4205
        %4404 = vmatpush1.msra.mxu0 %v4203
        %4405 = vmatprep.subr.mxu0 %v4209
        %4406 = vmatpush1.msra.mxu0 %v4207
        %4407 = vmatprep.subr.mxu0 %v4213
        %4408 = vmatpush1.msra.mxu0 %v4211
        %4409 = vmatprep.subr.mxu0 %v4217
        %4410 = vmatpush1.msra.mxu0 %v4215
        %4411 = vmatprep.subr.mxu0 %v4221
        %4412 = vmatpush1.msra.mxu0 %v4219
        %4413 = vmatprep.subr.mxu0 %v4225
        %4414 = vmatpush1.msra.mxu0 %v4223
        %4415 = vmatprep.subr.mxu0 %v4229
        %4416 = vmatpush1.msra.mxu0 %v4227
        %4417 = vmatprep.subr.mxu0 %v4233
        %4418 = vmatpush1.msra.mxu0 %v4231
        %4419 = vmatprep.subr.mxu0 %v4237
        %4420 = vmatpush1.msra.mxu0 %v4235
        %4421 = vmatprep.subr.mxu0 %v4241
        %4422 = vmatpush1.msra.mxu0 %v4239
        %4423 = vmatprep.subr.mxu0 %v4245
        %4424 = vmatpush1.msra.mxu0 %v4243
        %4425 = vmatprep.subr.mxu0 %v4249
        %4426 = vmatpush1.msra.mxu0 %v4247
        %4427 = vmatprep.subr.mxu0 %v4253
        %4428 = vmatpush1.msra.mxu0 %v4251
        %4429 = vmatprep.subr.mxu0 %v4257
        %4430 = vmatpush1.msra.mxu0 %v4255
        %4431 = vmatprep.subr.mxu0 %v4261
        %4432 = vmatpush1.msra.mxu0 %v4259
        %4433 = vmatprep.subr.mxu0 %v4265
        %4434 = vmatpush1.msra.mxu0 %v4263
        %4435 = vmatprep.subr.mxu0 %v4269
        %4436 = vmatpush1.msra.mxu0 %v4267
        %4437 = vmatprep.subr.mxu0 %v4273
        %4438 = vmatpush1.msra.mxu0 %v4271
        %4439 = vmatprep.subr.mxu0 %v4277
        %4440 = vmatpush1.msra.mxu0 %v4275
        %4441 = vmatprep.subr.mxu0 %v4281
        %4442 = vmatpush1.msra.mxu0 %v4279
        %4443 = vmatprep.subr.mxu0 %v4285
        %4444 = vmatpush1.msra.mxu0 %v4283
        %4445 = vmatprep.subr.mxu0 %v4289
        %4446 = vmatpush1.msra.mxu0 %v4287
        %4447 = vmatprep.subr.mxu0 %v4293
        %4448 = vmatpush1.msra.mxu0 %v4291
        %4449 = vmatprep.subr.mxu0 %v4297
        %4450 = vmatpush1.msra.mxu0 %v4295
        %4451 = vmatprep.subr.mxu0 %v4301
        %4452 = vmatpush1.msra.mxu0 %v4299
        %4453 = vmatprep.subr.mxu0 %v4305
        %4454 = vmatpush1.msra.mxu0 %v4303
        %4455 = vmatprep.subr.mxu0 %v4309
        %4456 = vmatpush1.msra.mxu0 %v4307
        %4457 = vmatprep.subr.mxu0 %v4313
        %4458 = vmatpush1.msra.mxu0 %v4311
        %4459 = vmatprep.subr.mxu0 %v4317
        %4460 = vmatpush1.msra.mxu0 %v4315
        %4461 = vmatprep.subr.mxu0 %v4321
        %4462 = vmatpush1.msra.mxu0 %v4319
        %4463 = vmatprep.mubr.f32.mxu0 %v4327
        %4464 = vmatmul.mubr.f32.gmra.mrb[0].mxu0 %v4326
        %v4465 = vpop.f32.mrb[0].mxu0
        %v4466 = vadd.f32 %v4395, %v4465
        %v4467 = vpop.f32.mrb[0].mxu0
        %v4468 = vadd.f32 %v4397, %v4467
        %4469 = vdwg.mxu0
        %v4470 = vrcp.pop %v4466
        %v4471 = vrcp.pop %v4468
        %v4472 = vld [vmem:[%s11] sm:$0xf]
        %v4473 = vld [vmem:[%s11 + $0x4] sm:$0xf]
        %v4474 = vld [vmem:[%s11 + $0x8] sm:$0xf]
        %v4475 = vld [vmem:[%s11 + $0xc] sm:$0xf]
        %v4476 = vld [vmem:[%s11 + $0x10] sm:$0xf]
        %v4477 = vld [vmem:[%s11 + $0x14] sm:$0xf]
        %v4478 = vld [vmem:[%s11 + $0x18] sm:$0xf]
        %v4479 = vld [vmem:[%s11 + $0x1c] sm:$0xf]
        %v4480 = vld [vmem:[%s11 + $0x20] sm:$0xf]
        %v4481 = vld [vmem:[%s11 + $0x24] sm:$0xf]
        %v4482 = vld [vmem:[%s11 + $0x28] sm:$0xf]
        %v4483 = vld [vmem:[%s11 + $0x2c] sm:$0xf]
        %v4484 = vld [vmem:[%s11 + $0x30] sm:$0xf]
        %v4485 = vld [vmem:[%s11 + $0x34] sm:$0xf]
        %v4486 = vld [vmem:[%s11 + $0x38] sm:$0xf]
        %v4487 = vld [vmem:[%s11 + $0x3c] sm:$0xf]
        %v4488 = vld [vmem:[%s11 + $0x40] sm:$0xf]
        %v4489 = vld [vmem:[%s11 + $0x44] sm:$0xf]
        %v4490 = vld [vmem:[%s11 + $0x48] sm:$0xf]
        %v4491 = vld [vmem:[%s11 + $0x4c] sm:$0xf]
        %v4492 = vld [vmem:[%s11 + $0x50] sm:$0xf]
        %v4493 = vld [vmem:[%s11 + $0x54] sm:$0xf]
        %v4494 = vld [vmem:[%s11 + $0x58] sm:$0xf]
        %v4495 = vld [vmem:[%s11 + $0x5c] sm:$0xf]
        %v4496 = vld [vmem:[%s11 + $0x60] sm:$0xf]
        %v4497 = vld [vmem:[%s11 + $0x64] sm:$0xf]
        %v4498 = vld [vmem:[%s11 + $0x68] sm:$0xf]
        %v4499 = vld [vmem:[%s11 + $0x6c] sm:$0xf]
        %v4500 = vld [vmem:[%s11 + $0x70] sm:$0xf]
        %v4501 = vld [vmem:[%s11 + $0x74] sm:$0xf]
        %v4502 = vld [vmem:[%s11 + $0x78] sm:$0xf]
        %v4503 = vld [vmem:[%s11 + $0x7c] sm:$0xf]
        %v4504 = vld [vmem:[%s11 + $0x80] sm:$0xf]
        %v4505 = vld [vmem:[%s11 + $0x84] sm:$0xf]
        %v4506 = vld [vmem:[%s11 + $0x88] sm:$0xf]
        %v4507 = vld [vmem:[%s11 + $0x8c] sm:$0xf]
        %v4508 = vld [vmem:[%s11 + $0x90] sm:$0xf]
        %v4509 = vld [vmem:[%s11 + $0x94] sm:$0xf]
        %v4510 = vld [vmem:[%s11 + $0x98] sm:$0xf]
        %v4511 = vld [vmem:[%s11 + $0x9c] sm:$0xf]
        %v4512 = vld [vmem:[%s11 + $0xa0] sm:$0xf]
        %v4513 = vld [vmem:[%s11 + $0xa4] sm:$0xf]
        %v4514 = vld [vmem:[%s11 + $0xa8] sm:$0xf]
        %v4515 = vld [vmem:[%s11 + $0xac] sm:$0xf]
        %v4516 = vld [vmem:[%s11 + $0xb0] sm:$0xf]
        %v4517 = vld [vmem:[%s11 + $0xb4] sm:$0xf]
        %v4518 = vld [vmem:[%s11 + $0xb8] sm:$0xf]
        %v4519 = vld [vmem:[%s11 + $0xbc] sm:$0xf]
        %v4520 = vld [vmem:[%s11 + $0xc0] sm:$0xf]
        %v4521 = vld [vmem:[%s11 + $0xc4] sm:$0xf]
        %v4522 = vld [vmem:[%s11 + $0xc8] sm:$0xf]
        %v4523 = vld [vmem:[%s11 + $0xcc] sm:$0xf]
        %v4524 = vld [vmem:[%s11 + $0xd0] sm:$0xf]
        %v4525 = vld [vmem:[%s11 + $0xd4] sm:$0xf]
        %v4526 = vld [vmem:[%s11 + $0xd8] sm:$0xf]
        %v4527 = vld [vmem:[%s11 + $0xdc] sm:$0xf]
        %v4528 = vld [vmem:[%s11 + $0xe0] sm:$0xf]
        %v4529 = vld [vmem:[%s11 + $0xe4] sm:$0xf]
        %v4530 = vld [vmem:[%s11 + $0xe8] sm:$0xf]
        %v4531 = vld [vmem:[%s11 + $0xec] sm:$0xf]
        %v4532 = vld [vmem:[%s11 + $0xf0] sm:$0xf]
        %v4533 = vld [vmem:[%s11 + $0xf4] sm:$0xf]
        %v4534 = vld [vmem:[%s11 + $0xf8] sm:$0xf]
        %v4535 = vld [vmem:[%s11 + $0xfc] sm:$0xf]
        %v4536 = vunpack.c.l.bf16 %v4472
        %v4537 = vunpack.c.l.bf16 %v4473
        %v4538 = vunpack.c.l.bf16 %v4474
        %v4539 = vunpack.c.l.bf16 %v4475
        %v4540 = vunpack.c.l.bf16 %v4476
        %v4541 = vunpack.c.l.bf16 %v4477
        %v4542 = vunpack.c.l.bf16 %v4478
        %v4543 = vunpack.c.l.bf16 %v4479
        %v4544 = vunpack.c.l.bf16 %v4480
        %v4545 = vunpack.c.l.bf16 %v4481
        %v4546 = vunpack.c.l.bf16 %v4482
        %v4547 = vunpack.c.l.bf16 %v4483
        %v4548 = vunpack.c.l.bf16 %v4484
        %v4549 = vunpack.c.l.bf16 %v4485
        %v4550 = vunpack.c.l.bf16 %v4486
        %v4551 = vunpack.c.l.bf16 %v4487
        %v4552 = vunpack.c.l.bf16 %v4488
        %v4553 = vunpack.c.l.bf16 %v4489
        %v4554 = vunpack.c.l.bf16 %v4490
        %v4555 = vunpack.c.l.bf16 %v4491
        %v4556 = vunpack.c.l.bf16 %v4492
        %v4557 = vunpack.c.l.bf16 %v4493
        %v4558 = vunpack.c.l.bf16 %v4494
        %v4559 = vunpack.c.l.bf16 %v4495
        %v4560 = vunpack.c.l.bf16 %v4496
        %v4561 = vunpack.c.l.bf16 %v4497
        %v4562 = vunpack.c.l.bf16 %v4498
        %v4563 = vunpack.c.l.bf16 %v4499
        %v4564 = vunpack.c.l.bf16 %v4500
        %v4565 = vunpack.c.l.bf16 %v4501
        %v4566 = vunpack.c.l.bf16 %v4502
        %v4567 = vunpack.c.l.bf16 %v4503
        %v4568 = vunpack.c.l.bf16 %v4504
        %v4569 = vunpack.c.l.bf16 %v4505
        %v4570 = vunpack.c.l.bf16 %v4506
        %v4571 = vunpack.c.l.bf16 %v4507
        %v4572 = vunpack.c.l.bf16 %v4508
        %v4573 = vunpack.c.l.bf16 %v4509
        %v4574 = vunpack.c.l.bf16 %v4510
        %v4575 = vunpack.c.l.bf16 %v4511
        %v4576 = vunpack.c.l.bf16 %v4512
        %v4577 = vunpack.c.l.bf16 %v4513
        %v4578 = vunpack.c.l.bf16 %v4514
        %v4579 = vunpack.c.l.bf16 %v4515
        %v4580 = vunpack.c.l.bf16 %v4516
        %v4581 = vunpack.c.l.bf16 %v4517
        %v4582 = vunpack.c.l.bf16 %v4518
        %v4583 = vunpack.c.l.bf16 %v4519
        %v4584 = vunpack.c.l.bf16 %v4520
        %v4585 = vunpack.c.l.bf16 %v4521
        %v4586 = vunpack.c.l.bf16 %v4522
        %v4587 = vunpack.c.l.bf16 %v4523
        %v4588 = vunpack.c.l.bf16 %v4524
        %v4589 = vunpack.c.l.bf16 %v4525
        %v4590 = vunpack.c.l.bf16 %v4526
        %v4591 = vunpack.c.l.bf16 %v4527
        %v4592 = vunpack.c.l.bf16 %v4528
        %v4593 = vunpack.c.l.bf16 %v4529
        %v4594 = vunpack.c.l.bf16 %v4530
        %v4595 = vunpack.c.l.bf16 %v4531
        %v4596 = vunpack.c.l.bf16 %v4532
        %v4597 = vunpack.c.l.bf16 %v4533
        %v4598 = vunpack.c.l.bf16 %v4534
        %v4599 = vunpack.c.l.bf16 %v4535
        %vm4600 = vcmask 64512
        %v4602 = vsel %vm4600, %v4536, 0
        %v4605 = vsel %vm4600, %v4537, 0
        %v4608 = vsel %vm4600, %v4538, 0
        %v4611 = vsel %vm4600, %v4539, 0
        %v4614 = vsel %vm4600, %v4540, 0
        %v4617 = vsel %vm4600, %v4541, 0
        %v4620 = vsel %vm4600, %v4542, 0
        %v4623 = vsel %vm4600, %v4543, 0
        %v4626 = vsel %vm4600, %v4544, 0
        %v4629 = vsel %vm4600, %v4545, 0
        %v4632 = vsel %vm4600, %v4546, 0
        %v4635 = vsel %vm4600, %v4547, 0
        %v4638 = vsel %vm4600, %v4548, 0
        %v4641 = vsel %vm4600, %v4549, 0
        %v4644 = vsel %vm4600, %v4550, 0
        %v4647 = vsel %vm4600, %v4551, 0
        %v4650 = vsel %vm4600, %v4552, 0
        %v4653 = vsel %vm4600, %v4553, 0
        %v4656 = vsel %vm4600, %v4554, 0
        %v4659 = vsel %vm4600, %v4555, 0
        %v4662 = vsel %vm4600, %v4556, 0
        %v4665 = vsel %vm4600, %v4557, 0
        %v4668 = vsel %vm4600, %v4558, 0
        %v4671 = vsel %vm4600, %v4559, 0
        %v4674 = vsel %vm4600, %v4560, 0
        %v4677 = vsel %vm4600, %v4561, 0
        %v4680 = vsel %vm4600, %v4562, 0
        %v4683 = vsel %vm4600, %v4563, 0
        %v4686 = vsel %vm4600, %v4564, 0
        %v4689 = vsel %vm4600, %v4565, 0
        %v4692 = vsel %vm4600, %v4566, 0
        %v4695 = vsel %vm4600, %v4567, 0
        %v4698 = vsel %vm4600, %v4568, 0
        %v4701 = vsel %vm4600, %v4569, 0
        %v4704 = vsel %vm4600, %v4570, 0
        %v4707 = vsel %vm4600, %v4571, 0
        %v4710 = vsel %vm4600, %v4572, 0
        %v4713 = vsel %vm4600, %v4573, 0
        %v4716 = vsel %vm4600, %v4574, 0
        %v4719 = vsel %vm4600, %v4575, 0
        %v4722 = vsel %vm4600, %v4576, 0
        %v4725 = vsel %vm4600, %v4577, 0
        %v4728 = vsel %vm4600, %v4578, 0
        %v4731 = vsel %vm4600, %v4579, 0
        %v4734 = vsel %vm4600, %v4580, 0
        %v4737 = vsel %vm4600, %v4581, 0
        %v4740 = vsel %vm4600, %v4582, 0
        %v4743 = vsel %vm4600, %v4583, 0
        %v4746 = vsel %vm4600, %v4584, 0
        %v4749 = vsel %vm4600, %v4585, 0
        %v4752 = vsel %vm4600, %v4586, 0
        %v4755 = vsel %vm4600, %v4587, 0
        %v4758 = vsel %vm4600, %v4588, 0
        %v4761 = vsel %vm4600, %v4589, 0
        %v4764 = vsel %vm4600, %v4590, 0
        %v4767 = vsel %vm4600, %v4591, 0
        %v4770 = vsel %vm4600, %v4592, 0
        %v4773 = vsel %vm4600, %v4593, 0
        %v4776 = vsel %vm4600, %v4594, 0
        %v4779 = vsel %vm4600, %v4595, 0
        %v4782 = vsel %vm4600, %v4596, 0
        %v4785 = vsel %vm4600, %v4597, 0
        %v4788 = vsel %vm4600, %v4598, 0
        %v4791 = vsel %vm4600, %v4599, 0
        %4793 = vmatprep.subr.mxu0 %v4471
        %4794 = vmatpush1.msra.mxu0 %v4470
        %4795 = vmatprep.subr.mxu0 0.0
        %4796 = vmatpush1.msra.mxu0 0.0
        %4797 = vmatprep.subr.mxu0 0.0
        %4798 = vmatpush1.msra.mxu0 0.0
        %4799 = vmatprep.subr.mxu0 0.0
        %4800 = vmatpush1.msra.mxu0 0.0
        %4801 = vmatprep.subr.mxu0 0.0
        %4802 = vmatpush1.msra.mxu0 0.0
        %4803 = vmatprep.subr.mxu0 0.0
        %4804 = vmatpush1.msra.mxu0 0.0
        %4805 = vmatprep.subr.mxu0 0.0
        %4806 = vmatpush1.msra.mxu0 0.0
        %4807 = vmatprep.subr.mxu0 0.0
        %4808 = vmatpush1.msra.mxu0 0.0
        %4809 = vmatprep.subr.mxu0 0.0
        %4810 = vmatpush1.msra.mxu0 0.0
        %4811 = vmatprep.subr.mxu0 0.0
        %4812 = vmatpush1.msra.mxu0 0.0
        %4813 = vmatprep.subr.mxu0 0.0
        %4814 = vmatpush1.msra.mxu0 0.0
        %4815 = vmatprep.subr.mxu0 0.0
        %4816 = vmatpush1.msra.mxu0 0.0
        %4817 = vmatprep.subr.mxu0 0.0
        %4818 = vmatpush1.msra.mxu0 0.0
        %4819 = vmatprep.subr.mxu0 0.0
        %4820 = vmatpush1.msra.mxu0 0.0
        %4821 = vmatprep.subr.mxu0 0.0
        %4822 = vmatpush1.msra.mxu0 0.0
        %4823 = vmatprep.subr.mxu0 0.0
        %4824 = vmatpush1.msra.mxu0 0.0
        %4825 = vmatprep.subr.mxu0 0.0
        %4826 = vmatpush1.msra.mxu0 0.0
        %4827 = vmatprep.subr.mxu0 0.0
        %4828 = vmatpush1.msra.mxu0 0.0
        %4829 = vmatprep.subr.mxu0 0.0
        %4830 = vmatpush1.msra.mxu0 0.0
        %4831 = vmatprep.subr.mxu0 0.0
        %4832 = vmatpush1.msra.mxu0 0.0
        %4833 = vmatprep.subr.mxu0 0.0
        %4834 = vmatpush1.msra.mxu0 0.0
        %4835 = vmatprep.subr.mxu0 0.0
        %4836 = vmatpush1.msra.mxu0 0.0
        %4837 = vmatprep.subr.mxu0 0.0
        %4838 = vmatpush1.msra.mxu0 0.0
        %4839 = vmatprep.subr.mxu0 0.0
        %4840 = vmatpush1.msra.mxu0 0.0
        %4841 = vmatprep.subr.mxu0 0.0
        %4842 = vmatpush1.msra.mxu0 0.0
        %4843 = vmatprep.subr.mxu0 0.0
        %4844 = vmatpush1.msra.mxu0 0.0
        %4845 = vmatprep.subr.mxu0 0.0
        %4846 = vmatpush1.msra.mxu0 0.0
        %4847 = vmatprep.subr.mxu0 0.0
        %4848 = vmatpush1.msra.mxu0 0.0
        %4849 = vmatprep.subr.mxu0 0.0
        %4850 = vmatpush1.msra.mxu0 0.0
        %4851 = vmatprep.subr.mxu0 0.0
        %4852 = vmatpush1.msra.mxu0 0.0
        %4853 = vmatprep.subr.mxu0 0.0
        %4854 = vmatpush1.msra.mxu0 0.0
        %4855 = vmatprep.subr.mxu0 0.0
        %4856 = vmatpush1.msra.mxu0 0.0
        %4857 = vmatprep.mubr.f32.mxu0 0.0
        %4858 = vmatmul.mubr.f32.gmra.mrb[0].mxu0 %v4602
        %v4859 = vpop.f32.mrb[0].mxu0
        %v4860 = vadd.f32 0.0, %v4859
        %v4861 = vpop.f32.mrb[0].mxu0
        %v4862 = vadd.f32 0.0, %v4861
        %4863 = vmatprep.mubr.f32.mxu0 0.0
        %4864 = vmatmul.mubr.f32.gmra.mrb[0].mxu0 %v4605
        %v4865 = vpop.f32.mrb[0].mxu0
        %v4866 = vadd.f32 0.0, %v4865
        %v4867 = vpop.f32.mrb[0].mxu0
        %v4868 = vadd.f32 0.0, %v4867
        %4869 = vmatprep.mubr.f32.mxu0 0.0
        %4870 = vmatmul.mubr.f32.gmra.mrb[0].mxu0 %v4608
        %v4871 = vpop.f32.mrb[0].mxu0
        %v4872 = vadd.f32 0.0, %v4871
        %v4873 = vpop.f32.mrb[0].mxu0
        %v4874 = vadd.f32 0.0, %v4873
        %4875 = vmatprep.mubr.f32.mxu0 0.0
        %4876 = vmatmul.mubr.f32.gmra.mrb[0].mxu0 %v4611
        %v4877 = vpop.f32.mrb[0].mxu0
        %v4878 = vadd.f32 0.0, %v4877
        %v4879 = vpop.f32.mrb[0].mxu0
        %v4880 = vadd.f32 0.0, %v4879
        %4881 = vmatprep.mubr.f32.mxu0 0.0
        %4882 = vmatmul.mubr.f32.gmra.mrb[0].mxu0 %v4614
        %v4883 = vpop.f32.mrb[0].mxu0
        %v4884 = vadd.f32 0.0, %v4883
        %v4885 = vpop.f32.mrb[0].mxu0
        %v4886 = vadd.f32 0.0, %v4885
        %4887 = vmatprep.mubr.f32.mxu0 0.0
        %4888 = vmatmul.mubr.f32.gmra.mrb[0].mxu0 %v4617
        %v4889 = vpop.f32.mrb[0].mxu0
        %v4890 = vadd.f32 0.0, %v4889
        %v4891 = vpop.f32.mrb[0].mxu0
        %v4892 = vadd.f32 0.0, %v4891
        %4893 = vmatprep.mubr.f32.mxu0 0.0
        %4894 = vmatmul.mubr.f32.gmra.mrb[0].mxu0 %v4620
        %v4895 = vpop.f32.mrb[0].mxu0
        %v4896 = vadd.f32 0.0, %v4895
        %v4897 = vpop.f32.mrb[0].mxu0
        %v4898 = vadd.f32 0.0, %v4897
        %4899 = vmatprep.mubr.f32.mxu0 0.0
        %4900 = vmatmul.mubr.f32.gmra.mrb[0].mxu0 %v4623
        %v4901 = vpop.f32.mrb[0].mxu0
        %v4902 = vadd.f32 0.0, %v4901
        %v4903 = vpop.f32.mrb[0].mxu0
        %v4904 = vadd.f32 0.0, %v4903
        %4905 = vmatprep.mubr.f32.mxu0 0.0
        %4906 = vmatmul.mubr.f32.gmra.mrb[0].mxu0 %v4626
        %v4907 = vpop.f32.mrb[0].mxu0
        %v4908 = vadd.f32 0.0, %v4907
        %v4909 = vpop.f32.mrb[0].mxu0
        %v4910 = vadd.f32 0.0, %v4909
        %4911 = vmatprep.mubr.f32.mxu0 0.0
        %4912 = vmatmul.mubr.f32.gmra.mrb[0].mxu0 %v4629
        %v4913 = vpop.f32.mrb[0].mxu0
        %v4914 = vadd.f32 0.0, %v4913
        %v4915 = vpop.f32.mrb[0].mxu0
        %v4916 = vadd.f32 0.0, %v4915
        %4917 = vmatprep.mubr.f32.mxu0 0.0
        %4918 = vmatmul.mubr.f32.gmra.mrb[0].mxu0 %v4632
        %v4919 = vpop.f32.mrb[0].mxu0
        %v4920 = vadd.f32 0.0, %v4919
        %v4921 = vpop.f32.mrb[0].mxu0
        %v4922 = vadd.f32 0.0, %v4921
        %4923 = vmatprep.mubr.f32.mxu0 0.0
        %4924 = vmatmul.mubr.f32.gmra.mrb[0].mxu0 %v4635
        %v4925 = vpop.f32.mrb[0].mxu0
        %v4926 = vadd.f32 0.0, %v4925
        %v4927 = vpop.f32.mrb[0].mxu0
        %v4928 = vadd.f32 0.0, %v4927
        %4929 = vmatprep.mubr.f32.mxu0 0.0
        %4930 = vmatmul.mubr.f32.gmra.mrb[0].mxu0 %v4638
        %v4931 = vpop.f32.mrb[0].mxu0
        %v4932 = vadd.f32 0.0, %v4931
        %v4933 = vpop.f32.mrb[0].mxu0
        %v4934 = vadd.f32 0.0, %v4933
        %4935 = vmatprep.mubr.f32.mxu0 0.0
        %4936 = vmatmul.mubr.f32.gmra.mrb[0].mxu0 %v4641
        %v4937 = vpop.f32.mrb[0].mxu0
        %v4938 = vadd.f32 0.0, %v4937
        %v4939 = vpop.f32.mrb[0].mxu0
        %v4940 = vadd.f32 0.0, %v4939
        %4941 = vmatprep.mubr.f32.mxu0 0.0
        %4942 = vmatmul.mubr.f32.gmra.mrb[0].mxu0 %v4644
        %v4943 = vpop.f32.mrb[0].mxu0
        %v4944 = vadd.f32 0.0, %v4943
        %v4945 = vpop.f32.mrb[0].mxu0
        %v4946 = vadd.f32 0.0, %v4945
        %4947 = vmatprep.mubr.f32.mxu0 0.0
        %4948 = vmatmul.mubr.f32.gmra.mrb[0].mxu0 %v4647
        %v4949 = vpop.f32.mrb[0].mxu0
        %v4950 = vadd.f32 0.0, %v4949
        %v4951 = vpop.f32.mrb[0].mxu0
        %v4952 = vadd.f32 0.0, %v4951
        %4953 = vmatprep.mubr.f32.mxu0 0.0
        %4954 = vmatmul.mubr.f32.gmra.mrb[0].mxu0 %v4650
        %v4955 = vpop.f32.mrb[0].mxu0
        %v4956 = vadd.f32 0.0, %v4955
        %v4957 = vpop.f32.mrb[0].mxu0
        %v4958 = vadd.f32 0.0, %v4957
        %4959 = vmatprep.mubr.f32.mxu0 0.0
        %4960 = vmatmul.mubr.f32.gmra.mrb[0].mxu0 %v4653
        %v4961 = vpop.f32.mrb[0].mxu0
        %v4962 = vadd.f32 0.0, %v4961
        %v4963 = vpop.f32.mrb[0].mxu0
        %v4964 = vadd.f32 0.0, %v4963
        %4965 = vmatprep.mubr.f32.mxu0 0.0
        %4966 = vmatmul.mubr.f32.gmra.mrb[0].mxu0 %v4656
        %v4967 = vpop.f32.mrb[0].mxu0
        %v4968 = vadd.f32 0.0, %v4967
        %v4969 = vpop.f32.mrb[0].mxu0
        %v4970 = vadd.f32 0.0, %v4969
        %4971 = vmatprep.mubr.f32.mxu0 0.0
        %4972 = vmatmul.mubr.f32.gmra.mrb[0].mxu0 %v4659
        %v4973 = vpop.f32.mrb[0].mxu0
        %v4974 = vadd.f32 0.0, %v4973
        %v4975 = vpop.f32.mrb[0].mxu0
        %v4976 = vadd.f32 0.0, %v4975
        %4977 = vmatprep.mubr.f32.mxu0 0.0
        %4978 = vmatmul.mubr.f32.gmra.mrb[0].mxu0 %v4662
        %v4979 = vpop.f32.mrb[0].mxu0
        %v4980 = vadd.f32 0.0, %v4979
        %v4981 = vpop.f32.mrb[0].mxu0
        %v4982 = vadd.f32 0.0, %v4981
        %4983 = vmatprep.mubr.f32.mxu0 0.0
        %4984 = vmatmul.mubr.f32.gmra.mrb[0].mxu0 %v4665
        %v4985 = vpop.f32.mrb[0].mxu0
        %v4986 = vadd.f32 0.0, %v4985
        %v4987 = vpop.f32.mrb[0].mxu0
        %v4988 = vadd.f32 0.0, %v4987
        %4989 = vmatprep.mubr.f32.mxu0 0.0
        %4990 = vmatmul.mubr.f32.gmra.mrb[0].mxu0 %v4668
        %v4991 = vpop.f32.mrb[0].mxu0
        %v4992 = vadd.f32 0.0, %v4991
        %v4993 = vpop.f32.mrb[0].mxu0
        %v4994 = vadd.f32 0.0, %v4993
        %4995 = vmatprep.mubr.f32.mxu0 0.0
        %4996 = vmatmul.mubr.f32.gmra.mrb[0].mxu0 %v4671
        %v4997 = vpop.f32.mrb[0].mxu0
        %v4998 = vadd.f32 0.0, %v4997
        %v4999 = vpop.f32.mrb[0].mxu0
        %v5000 = vadd.f32 0.0, %v4999
        %5001 = vmatprep.mubr.f32.mxu0 0.0
        %5002 = vmatmul.mubr.f32.gmra.mrb[0].mxu0 %v4674
        %v5003 = vpop.f32.mrb[0].mxu0
        %v5004 = vadd.f32 0.0, %v5003
        %v5005 = vpop.f32.mrb[0].mxu0
        %v5006 = vadd.f32 0.0, %v5005
        %5007 = vmatprep.mubr.f32.mxu0 0.0
        %5008 = vmatmul.mubr.f32.gmra.mrb[0].mxu0 %v4677
        %v5009 = vpop.f32.mrb[0].mxu0
        %v5010 = vadd.f32 0.0, %v5009
        %v5011 = vpop.f32.mrb[0].mxu0
        %v5012 = vadd.f32 0.0, %v5011
        %5013 = vmatprep.mubr.f32.mxu0 0.0
        %5014 = vmatmul.mubr.f32.gmra.mrb[0].mxu0 %v4680
        %v5015 = vpop.f32.mrb[0].mxu0
        %v5016 = vadd.f32 0.0, %v5015
        %v5017 = vpop.f32.mrb[0].mxu0
        %v5018 = vadd.f32 0.0, %v5017
        %5019 = vmatprep.mubr.f32.mxu0 0.0
        %5020 = vmatmul.mubr.f32.gmra.mrb[0].mxu0 %v4683
        %v5021 = vpop.f32.mrb[0].mxu0
        %v5022 = vadd.f32 0.0, %v5021
        %v5023 = vpop.f32.mrb[0].mxu0
        %v5024 = vadd.f32 0.0, %v5023
        %5025 = vmatprep.mubr.f32.mxu0 0.0
        %5026 = vmatmul.mubr.f32.gmra.mrb[0].mxu0 %v4686
        %v5027 = vpop.f32.mrb[0].mxu0
        %v5028 = vadd.f32 0.0, %v5027
        %v5029 = vpop.f32.mrb[0].mxu0
        %v5030 = vadd.f32 0.0, %v5029
        %5031 = vmatprep.mubr.f32.mxu0 0.0
        %5032 = vmatmul.mubr.f32.gmra.mrb[0].mxu0 %v4689
        %v5033 = vpop.f32.mrb[0].mxu0
        %v5034 = vadd.f32 0.0, %v5033
        %v5035 = vpop.f32.mrb[0].mxu0
        %v5036 = vadd.f32 0.0, %v5035
        %5037 = vmatprep.mubr.f32.mxu0 0.0
        %5038 = vmatmul.mubr.f32.gmra.mrb[0].mxu0 %v4692
        %v5039 = vpop.f32.mrb[0].mxu0
        %v5040 = vadd.f32 0.0, %v5039
        %v5041 = vpop.f32.mrb[0].mxu0
        %v5042 = vadd.f32 0.0, %v5041
        %5043 = vmatprep.mubr.f32.mxu0 0.0
        %5044 = vmatmul.mubr.f32.gmra.mrb[0].mxu0 %v4695
        %v5045 = vpop.f32.mrb[0].mxu0
        %v5046 = vadd.f32 0.0, %v5045
        %v5047 = vpop.f32.mrb[0].mxu0
        %v5048 = vadd.f32 0.0, %v5047
        %5049 = vmatprep.mubr.f32.mxu0 0.0
        %5050 = vmatmul.mubr.f32.gmra.mrb[0].mxu0 %v4698
        %v5051 = vpop.f32.mrb[0].mxu0
        %v5052 = vadd.f32 0.0, %v5051
        %v5053 = vpop.f32.mrb[0].mxu0
        %v5054 = vadd.f32 0.0, %v5053
        %5055 = vmatprep.mubr.f32.mxu0 0.0
        %5056 = vmatmul.mubr.f32.gmra.mrb[0].mxu0 %v4701
        %v5057 = vpop.f32.mrb[0].mxu0
        %v5058 = vadd.f32 0.0, %v5057
        %v5059 = vpop.f32.mrb[0].mxu0
        %v5060 = vadd.f32 0.0, %v5059
        %5061 = vmatprep.mubr.f32.mxu0 0.0
        %5062 = vmatmul.mubr.f32.gmra.mrb[0].mxu0 %v4704
        %v5063 = vpop.f32.mrb[0].mxu0
        %v5064 = vadd.f32 0.0, %v5063
        %v5065 = vpop.f32.mrb[0].mxu0
        %v5066 = vadd.f32 0.0, %v5065
        %5067 = vmatprep.mubr.f32.mxu0 0.0
        %5068 = vmatmul.mubr.f32.gmra.mrb[0].mxu0 %v4707
        %v5069 = vpop.f32.mrb[0].mxu0
        %v5070 = vadd.f32 0.0, %v5069
        %v5071 = vpop.f32.mrb[0].mxu0
        %v5072 = vadd.f32 0.0, %v5071
        %5073 = vmatprep.mubr.f32.mxu0 0.0
        %5074 = vmatmul.mubr.f32.gmra.mrb[0].mxu0 %v4710
        %v5075 = vpop.f32.mrb[0].mxu0
        %v5076 = vadd.f32 0.0, %v5075
        %v5077 = vpop.f32.mrb[0].mxu0
        %v5078 = vadd.f32 0.0, %v5077
        %5079 = vmatprep.mubr.f32.mxu0 0.0
        %5080 = vmatmul.mubr.f32.gmra.mrb[0].mxu0 %v4713
        %v5081 = vpop.f32.mrb[0].mxu0
        %v5082 = vadd.f32 0.0, %v5081
        %v5083 = vpop.f32.mrb[0].mxu0
        %v5084 = vadd.f32 0.0, %v5083
        %5085 = vmatprep.mubr.f32.mxu0 0.0
        %5086 = vmatmul.mubr.f32.gmra.mrb[0].mxu0 %v4716
        %v5087 = vpop.f32.mrb[0].mxu0
        %v5088 = vadd.f32 0.0, %v5087
        %v5089 = vpop.f32.mrb[0].mxu0
        %v5090 = vadd.f32 0.0, %v5089
        %5091 = vmatprep.mubr.f32.mxu0 0.0
        %5092 = vmatmul.mubr.f32.gmra.mrb[0].mxu0 %v4719
        %v5093 = vpop.f32.mrb[0].mxu0
        %v5094 = vadd.f32 0.0, %v5093
        %v5095 = vpop.f32.mrb[0].mxu0
        %v5096 = vadd.f32 0.0, %v5095
        %5097 = vmatprep.mubr.f32.mxu0 0.0
        %5098 = vmatmul.mubr.f32.gmra.mrb[0].mxu0 %v4722
        %v5099 = vpop.f32.mrb[0].mxu0
        %v5100 = vadd.f32 0.0, %v5099
        %v5101 = vpop.f32.mrb[0].mxu0
        %v5102 = vadd.f32 0.0, %v5101
        %5103 = vmatprep.mubr.f32.mxu0 0.0
        %5104 = vmatmul.mubr.f32.gmra.mrb[0].mxu0 %v4725
        %v5105 = vpop.f32.mrb[0].mxu0
        %v5106 = vadd.f32 0.0, %v5105
        %v5107 = vpop.f32.mrb[0].mxu0
        %v5108 = vadd.f32 0.0, %v5107
        %5109 = vmatprep.mubr.f32.mxu0 0.0
        %5110 = vmatmul.mubr.f32.gmra.mrb[0].mxu0 %v4728
        %v5111 = vpop.f32.mrb[0].mxu0
        %v5112 = vadd.f32 0.0, %v5111
        %v5113 = vpop.f32.mrb[0].mxu0
        %v5114 = vadd.f32 0.0, %v5113
        %5115 = vmatprep.mubr.f32.mxu0 0.0
        %5116 = vmatmul.mubr.f32.gmra.mrb[0].mxu0 %v4731
        %v5117 = vpop.f32.mrb[0].mxu0
        %v5118 = vadd.f32 0.0, %v5117
        %v5119 = vpop.f32.mrb[0].mxu0
        %v5120 = vadd.f32 0.0, %v5119
        %5121 = vmatprep.mubr.f32.mxu0 0.0
        %5122 = vmatmul.mubr.f32.gmra.mrb[0].mxu0 %v4734
        %v5123 = vpop.f32.mrb[0].mxu0
        %v5124 = vadd.f32 0.0, %v5123
        %v5125 = vpop.f32.mrb[0].mxu0
        %v5126 = vadd.f32 0.0, %v5125
        %5127 = vmatprep.mubr.f32.mxu0 0.0
        %5128 = vmatmul.mubr.f32.gmra.mrb[0].mxu0 %v4737
        %v5129 = vpop.f32.mrb[0].mxu0
        %v5130 = vadd.f32 0.0, %v5129
        %v5131 = vpop.f32.mrb[0].mxu0
        %v5132 = vadd.f32 0.0, %v5131
        %5133 = vmatprep.mubr.f32.mxu0 0.0
        %5134 = vmatmul.mubr.f32.gmra.mrb[0].mxu0 %v4740
        %v5135 = vpop.f32.mrb[0].mxu0
        %v5136 = vadd.f32 0.0, %v5135
        %v5137 = vpop.f32.mrb[0].mxu0
        %v5138 = vadd.f32 0.0, %v5137
        %5139 = vmatprep.mubr.f32.mxu0 0.0
        %5140 = vmatmul.mubr.f32.gmra.mrb[0].mxu0 %v4743
        %v5141 = vpop.f32.mrb[0].mxu0
        %v5142 = vadd.f32 0.0, %v5141
        %v5143 = vpop.f32.mrb[0].mxu0
        %v5144 = vadd.f32 0.0, %v5143
        %5145 = vmatprep.mubr.f32.mxu0 0.0
        %5146 = vmatmul.mubr.f32.gmra.mrb[0].mxu0 %v4746
        %v5147 = vpop.f32.mrb[0].mxu0
        %v5148 = vadd.f32 0.0, %v5147
        %v5149 = vpop.f32.mrb[0].mxu0
        %v5150 = vadd.f32 0.0, %v5149
        %5151 = vmatprep.mubr.f32.mxu0 0.0
        %5152 = vmatmul.mubr.f32.gmra.mrb[0].mxu0 %v4749
        %v5153 = vpop.f32.mrb[0].mxu0
        %v5154 = vadd.f32 0.0, %v5153
        %v5155 = vpop.f32.mrb[0].mxu0
        %v5156 = vadd.f32 0.0, %v5155
        %5157 = vmatprep.mubr.f32.mxu0 0.0
        %5158 = vmatmul.mubr.f32.gmra.mrb[0].mxu0 %v4752
        %v5159 = vpop.f32.mrb[0].mxu0
        %v5160 = vadd.f32 0.0, %v5159
        %v5161 = vpop.f32.mrb[0].mxu0
        %v5162 = vadd.f32 0.0, %v5161
        %5163 = vmatprep.mubr.f32.mxu0 0.0
        %5164 = vmatmul.mubr.f32.gmra.mrb[0].mxu0 %v4755
        %v5165 = vpop.f32.mrb[0].mxu0
        %v5166 = vadd.f32 0.0, %v5165
        %v5167 = vpop.f32.mrb[0].mxu0
        %v5168 = vadd.f32 0.0, %v5167
        %5169 = vmatprep.mubr.f32.mxu0 0.0
        %5170 = vmatmul.mubr.f32.gmra.mrb[0].mxu0 %v4758
        %v5171 = vpop.f32.mrb[0].mxu0
        %v5172 = vadd.f32 0.0, %v5171
        %v5173 = vpop.f32.mrb[0].mxu0
        %v5174 = vadd.f32 0.0, %v5173
        %5175 = vmatprep.mubr.f32.mxu0 0.0
        %5176 = vmatmul.mubr.f32.gmra.mrb[0].mxu0 %v4761
        %v5177 = vpop.f32.mrb[0].mxu0
        %v5178 = vadd.f32 0.0, %v5177
        %v5179 = vpop.f32.mrb[0].mxu0
        %v5180 = vadd.f32 0.0, %v5179
        %5181 = vmatprep.mubr.f32.mxu0 0.0
        %5182 = vmatmul.mubr.f32.gmra.mrb[0].mxu0 %v4764
        %v5183 = vpop.f32.mrb[0].mxu0
        %v5184 = vadd.f32 0.0, %v5183
        %v5185 = vpop.f32.mrb[0].mxu0
        %v5186 = vadd.f32 0.0, %v5185
        %5187 = vmatprep.mubr.f32.mxu0 0.0
        %5188 = vmatmul.mubr.f32.gmra.mrb[0].mxu0 %v4767
        %v5189 = vpop.f32.mrb[0].mxu0
        %v5190 = vadd.f32 0.0, %v5189
        %v5191 = vpop.f32.mrb[0].mxu0
        %v5192 = vadd.f32 0.0, %v5191
        %5193 = vmatprep.mubr.f32.mxu0 0.0
        %5194 = vmatmul.mubr.f32.gmra.mrb[0].mxu0 %v4770
        %v5195 = vpop.f32.mrb[0].mxu0
        %v5196 = vadd.f32 0.0, %v5195
        %v5197 = vpop.f32.mrb[0].mxu0
        %v5198 = vadd.f32 0.0, %v5197
        %5199 = vmatprep.mubr.f32.mxu0 0.0
        %5200 = vmatmul.mubr.f32.gmra.mrb[0].mxu0 %v4773
        %v5201 = vpop.f32.mrb[0].mxu0
        %v5202 = vadd.f32 0.0, %v5201
        %v5203 = vpop.f32.mrb[0].mxu0
        %v5204 = vadd.f32 0.0, %v5203
        %5205 = vmatprep.mubr.f32.mxu0 0.0
        %5206 = vmatmul.mubr.f32.gmra.mrb[0].mxu0 %v4776
        %v5207 = vpop.f32.mrb[0].mxu0
        %v5208 = vadd.f32 0.0, %v5207
        %v5209 = vpop.f32.mrb[0].mxu0
        %v5210 = vadd.f32 0.0, %v5209
        %5211 = vmatprep.mubr.f32.mxu0 0.0
        %5212 = vmatmul.mubr.f32.gmra.mrb[0].mxu0 %v4779
        %v5213 = vpop.f32.mrb[0].mxu0
        %v5214 = vadd.f32 0.0, %v5213
        %v5215 = vpop.f32.mrb[0].mxu0
        %v5216 = vadd.f32 0.0, %v5215
        %5217 = vmatprep.mubr.f32.mxu0 0.0
        %5218 = vmatmul.mubr.f32.gmra.mrb[0].mxu0 %v4782
        %v5219 = vpop.f32.mrb[0].mxu0
        %v5220 = vadd.f32 0.0, %v5219
        %v5221 = vpop.f32.mrb[0].mxu0
        %v5222 = vadd.f32 0.0, %v5221
        %5223 = vmatprep.mubr.f32.mxu0 0.0
        %5224 = vmatmul.mubr.f32.gmra.mrb[0].mxu0 %v4785
        %v5225 = vpop.f32.mrb[0].mxu0
        %v5226 = vadd.f32 0.0, %v5225
        %v5227 = vpop.f32.mrb[0].mxu0
        %v5228 = vadd.f32 0.0, %v5227
        %5229 = vmatprep.mubr.f32.mxu0 0.0
        %5230 = vmatmul.mubr.f32.gmra.mrb[0].mxu0 %v4788
        %v5231 = vpop.f32.mrb[0].mxu0
        %v5232 = vadd.f32 0.0, %v5231
        %v5233 = vpop.f32.mrb[0].mxu0
        %v5234 = vadd.f32 0.0, %v5233
        %5235 = vmatprep.mubr.f32.mxu0 0.0
        %5236 = vmatmul.mubr.f32.gmra.mrb[0].mxu0 %v4791
        %v5237 = vpop.f32.mrb[0].mxu0
        %v5238 = vadd.f32 0.0, %v5237
        %v5239 = vpop.f32.mrb[0].mxu0
        %v5240 = vadd.f32 0.0, %v5239
        %5241 = vdwg.mxu0
        %v5242 = vmul.f32 %v4067, %v4860
        %v5243 = vmul.f32 %v4069, %v4862
        %v5244 = vmul.f32 %v4071, %v4866
        %v5245 = vmul.f32 %v4073, %v4868
        %v5246 = vmul.f32 %v4075, %v4872
        %v5247 = vmul.f32 %v4077, %v4874
        %v5248 = vmul.f32 %v4079, %v4878
        %v5249 = vmul.f32 %v4081, %v4880
        %v5250 = vmul.f32 %v4083, %v4884
        %v5251 = vmul.f32 %v4085, %v4886
        %v5252 = vmul.f32 %v4087, %v4890
        %v5253 = vmul.f32 %v4089, %v4892
        %v5254 = vmul.f32 %v4091, %v4896
        %v5255 = vmul.f32 %v4093, %v4898
        %v5256 = vmul.f32 %v4095, %v4902
        %v5257 = vmul.f32 %v4097, %v4904
        %v5258 = vmul.f32 %v4099, %v4908
        %v5259 = vmul.f32 %v4101, %v4910
        %v5260 = vmul.f32 %v4103, %v4914
        %v5261 = vmul.f32 %v4105, %v4916
        %v5262 = vmul.f32 %v4107, %v4920
        %v5263 = vmul.f32 %v4109, %v4922
        %v5264 = vmul.f32 %v4111, %v4926
        %v5265 = vmul.f32 %v4113, %v4928
        %v5266 = vmul.f32 %v4115, %v4932
        %v5267 = vmul.f32 %v4117, %v4934
        %v5268 = vmul.f32 %v4119, %v4938
        %v5269 = vmul.f32 %v4121, %v4940
        %v5270 = vmul.f32 %v4123, %v4944
        %v5271 = vmul.f32 %v4125, %v4946
        %v5272 = vmul.f32 %v4127, %v4950
        %v5273 = vmul.f32 %v4129, %v4952
        %v5274 = vmul.f32 %v4131, %v4956
        %v5275 = vmul.f32 %v4133, %v4958
        %v5276 = vmul.f32 %v4135, %v4962
        %v5277 = vmul.f32 %v4137, %v4964
        %v5278 = vmul.f32 %v4139, %v4968
        %v5279 = vmul.f32 %v4141, %v4970
        %v5280 = vmul.f32 %v4143, %v4974
        %v5281 = vmul.f32 %v4145, %v4976
        %v5282 = vmul.f32 %v4147, %v4980
        %v5283 = vmul.f32 %v4149, %v4982
        %v5284 = vmul.f32 %v4151, %v4986
        %v5285 = vmul.f32 %v4153, %v4988
        %v5286 = vmul.f32 %v4155, %v4992
        %v5287 = vmul.f32 %v4157, %v4994
        %v5288 = vmul.f32 %v4159, %v4998
        %v5289 = vmul.f32 %v4161, %v5000
        %v5290 = vmul.f32 %v4163, %v5004
        %v5291 = vmul.f32 %v4165, %v5006
        %v5292 = vmul.f32 %v4167, %v5010
        %v5293 = vmul.f32 %v4169, %v5012
        %v5294 = vmul.f32 %v4171, %v5016
        %v5295 = vmul.f32 %v4173, %v5018
        %v5296 = vmul.f32 %v4175, %v5022
        %v5297 = vmul.f32 %v4177, %v5024
        %v5298 = vmul.f32 %v4179, %v5028
        %v5299 = vmul.f32 %v4181, %v5030
        %v5300 = vmul.f32 %v4183, %v5034
        %v5301 = vmul.f32 %v4185, %v5036
        %v5302 = vmul.f32 %v4187, %v5040
        %v5303 = vmul.f32 %v4189, %v5042
        %v5304 = vmul.f32 %v4191, %v5046
        %v5305 = vmul.f32 %v4193, %v5048
        %v5306 = vmul.f32 %v4195, %v5052
        %v5307 = vmul.f32 %v4197, %v5054
        %v5308 = vmul.f32 %v4199, %v5058
        %v5309 = vmul.f32 %v4201, %v5060
        %v5310 = vmul.f32 %v4203, %v5064
        %v5311 = vmul.f32 %v4205, %v5066
        %v5312 = vmul.f32 %v4207, %v5070
        %v5313 = vmul.f32 %v4209, %v5072
        %v5314 = vmul.f32 %v4211, %v5076
        %v5315 = vmul.f32 %v4213, %v5078
        %v5316 = vmul.f32 %v4215, %v5082
        %v5317 = vmul.f32 %v4217, %v5084
        %v5318 = vmul.f32 %v4219, %v5088
        %v5319 = vmul.f32 %v4221, %v5090
        %v5320 = vmul.f32 %v4223, %v5094
        %v5321 = vmul.f32 %v4225, %v5096
        %v5322 = vmul.f32 %v4227, %v5100
        %v5323 = vmul.f32 %v4229, %v5102
        %v5324 = vmul.f32 %v4231, %v5106
        %v5325 = vmul.f32 %v4233, %v5108
        %v5326 = vmul.f32 %v4235, %v5112
        %v5327 = vmul.f32 %v4237, %v5114
        %v5328 = vmul.f32 %v4239, %v5118
        %v5329 = vmul.f32 %v4241, %v5120
        %v5330 = vmul.f32 %v4243, %v5124
        %v5331 = vmul.f32 %v4245, %v5126
        %v5332 = vmul.f32 %v4247, %v5130
        %v5333 = vmul.f32 %v4249, %v5132
        %v5334 = vmul.f32 %v4251, %v5136
        %v5335 = vmul.f32 %v4253, %v5138
        %v5336 = vmul.f32 %v4255, %v5142
        %v5337 = vmul.f32 %v4257, %v5144
        %v5338 = vmul.f32 %v4259, %v5148
        %v5339 = vmul.f32 %v4261, %v5150
        %v5340 = vmul.f32 %v4263, %v5154
        %v5341 = vmul.f32 %v4265, %v5156
        %v5342 = vmul.f32 %v4267, %v5160
        %v5343 = vmul.f32 %v4269, %v5162
        %v5344 = vmul.f32 %v4271, %v5166
        %v5345 = vmul.f32 %v4273, %v5168
        %v5346 = vmul.f32 %v4275, %v5172
        %v5347 = vmul.f32 %v4277, %v5174
        %v5348 = vmul.f32 %v4279, %v5178
        %v5349 = vmul.f32 %v4281, %v5180
        %v5350 = vmul.f32 %v4283, %v5184
        %v5351 = vmul.f32 %v4285, %v5186
        %v5352 = vmul.f32 %v4287, %v5190
        %v5353 = vmul.f32 %v4289, %v5192
        %v5354 = vmul.f32 %v4291, %v5196
        %v5355 = vmul.f32 %v4293, %v5198
        %v5356 = vmul.f32 %v4295, %v5202
        %v5357 = vmul.f32 %v4297, %v5204
        %v5358 = vmul.f32 %v4299, %v5208
        %v5359 = vmul.f32 %v4301, %v5210
        %v5360 = vmul.f32 %v4303, %v5214
        %v5361 = vmul.f32 %v4305, %v5216
        %v5362 = vmul.f32 %v4307, %v5220
        %v5363 = vmul.f32 %v4309, %v5222
        %v5364 = vmul.f32 %v4311, %v5226
        %v5365 = vmul.f32 %v4313, %v5228
        %v5366 = vmul.f32 %v4315, %v5232
        %v5367 = vmul.f32 %v4317, %v5234
        %v5368 = vmul.f32 %v4319, %v5238
        %v5369 = vmul.f32 %v4321, %v5240
        %v5370 = vld [vmem:[#allocation3] sm:$0xff]
        %v5371 = vld [vmem:[#allocation3 + $0x8] sm:$0xff]
        %v5372 = vld [vmem:[#allocation3 + $0x10] sm:$0xff]
        %v5373 = vld [vmem:[#allocation3 + $0x18] sm:$0xff]
        %v5374 = vld [vmem:[#allocation3 + $0x20] sm:$0xff]
        %v5375 = vld [vmem:[#allocation3 + $0x28] sm:$0xff]
        %v5376 = vld [vmem:[#allocation3 + $0x30] sm:$0xff]
        %v5377 = vld [vmem:[#allocation3 + $0x38] sm:$0xff]
        %v5378 = vld [vmem:[#allocation3 + $0x40] sm:$0xff]
        %v5379 = vld [vmem:[#allocation3 + $0x48] sm:$0xff]
        %v5380 = vld [vmem:[#allocation3 + $0x50] sm:$0xff]
        %v5381 = vld [vmem:[#allocation3 + $0x58] sm:$0xff]
        %v5382 = vld [vmem:[#allocation3 + $0x60] sm:$0xff]
        %v5383 = vld [vmem:[#allocation3 + $0x68] sm:$0xff]
        %v5384 = vld [vmem:[#allocation3 + $0x70] sm:$0xff]
        %v5385 = vld [vmem:[#allocation3 + $0x78] sm:$0xff]
        %v5386 = vld [vmem:[%s10] sm:$0xff]
        %v5387 = vld [vmem:[%s10 + $0x8] sm:$0xff]
        %v5388 = vld [vmem:[%s10 + $0x10] sm:$0xff]
        %v5389 = vld [vmem:[%s10 + $0x18] sm:$0xff]
        %5391 = vset.pattern.permute.xlu0 0
        %5392 = vperm.xlu0 %5391, %v5386
        %v5393 = vpop.permute.xlu0 %5392
        %5396 = vset.pattern.permute.xlu0 0
        %5397 = vperm.xlu0 %5396, %v5387
        %v5398 = vpop.permute.xlu0 %5397
        %5401 = vset.pattern.permute.xlu0 0
        %5402 = vperm.xlu0 %5401, %v5388
        %v5403 = vpop.permute.xlu0 %5402
        %5406 = vset.pattern.permute.xlu0 0
        %5407 = vperm.xlu0 %5406, %v5389
        %v5408 = vpop.permute.xlu0 %5407
        %5410 = vmatprep.subr.mxu0 %v5243
        %5411 = vmatpush1.msra.mxu0 %v5242
        %5412 = vmatprep.subr.mxu0 %v5245
        %5413 = vmatpush1.msra.mxu0 %v5244
        %5414 = vmatprep.subr.mxu0 %v5247
        %5415 = vmatpush1.msra.mxu0 %v5246
        %5416 = vmatprep.subr.mxu0 %v5249
        %5417 = vmatpush1.msra.mxu0 %v5248
        %5418 = vmatprep.subr.mxu0 %v5251
        %5419 = vmatpush1.msra.mxu0 %v5250
        %5420 = vmatprep.subr.mxu0 %v5253
        %5421 = vmatpush1.msra.mxu0 %v5252
        %5422 = vmatprep.subr.mxu0 %v5255
        %5423 = vmatpush1.msra.mxu0 %v5254
        %5424 = vmatprep.subr.mxu0 %v5257
        %5425 = vmatpush1.msra.mxu0 %v5256
        %5426 = vmatprep.subr.mxu0 %v5259
        %5427 = vmatpush1.msra.mxu0 %v5258
        %5428 = vmatprep.subr.mxu0 %v5261
        %5429 = vmatpush1.msra.mxu0 %v5260
        %5430 = vmatprep.subr.mxu0 %v5263
        %5431 = vmatpush1.msra.mxu0 %v5262
        %5432 = vmatprep.subr.mxu0 %v5265
        %5433 = vmatpush1.msra.mxu0 %v5264
        %5434 = vmatprep.subr.mxu0 %v5267
        %5435 = vmatpush1.msra.mxu0 %v5266
        %5436 = vmatprep.subr.mxu0 %v5269
        %5437 = vmatpush1.msra.mxu0 %v5268
        %5438 = vmatprep.subr.mxu0 %v5271
        %5439 = vmatpush1.msra.mxu0 %v5270
        %5440 = vmatprep.subr.mxu0 %v5273
        %5441 = vmatpush1.msra.mxu0 %v5272
        %5442 = vmatprep.subr.mxu0 %v5275
        %5443 = vmatpush1.msra.mxu0 %v5274
        %5444 = vmatprep.subr.mxu0 %v5277
        %5445 = vmatpush1.msra.mxu0 %v5276
        %5446 = vmatprep.subr.mxu0 %v5279
        %5447 = vmatpush1.msra.mxu0 %v5278
        %5448 = vmatprep.subr.mxu0 %v5281
        %5449 = vmatpush1.msra.mxu0 %v5280
        %5450 = vmatprep.subr.mxu0 %v5283
        %5451 = vmatpush1.msra.mxu0 %v5282
        %5452 = vmatprep.subr.mxu0 %v5285
        %5453 = vmatpush1.msra.mxu0 %v5284
        %5454 = vmatprep.subr.mxu0 %v5287
        %5455 = vmatpush1.msra.mxu0 %v5286
        %5456 = vmatprep.subr.mxu0 %v5289
        %5457 = vmatpush1.msra.mxu0 %v5288
        %5458 = vmatprep.subr.mxu0 %v5291
        %5459 = vmatpush1.msra.mxu0 %v5290
        %5460 = vmatprep.subr.mxu0 %v5293
        %5461 = vmatpush1.msra.mxu0 %v5292
        %5462 = vmatprep.subr.mxu0 %v5295
        %5463 = vmatpush1.msra.mxu0 %v5294
        %5464 = vmatprep.subr.mxu0 %v5297
        %5465 = vmatpush1.msra.mxu0 %v5296
        %5466 = vmatprep.subr.mxu0 %v5299
        %5467 = vmatpush1.msra.mxu0 %v5298
        %5468 = vmatprep.subr.mxu0 %v5301
        %5469 = vmatpush1.msra.mxu0 %v5300
        %5470 = vmatprep.subr.mxu0 %v5303
        %5471 = vmatpush1.msra.mxu0 %v5302
        %5472 = vmatprep.subr.mxu0 %v5305
        %5473 = vmatpush1.msra.mxu0 %v5304
        %5474 = vmatprep.mubr.f32.mxu0 %v5371
        %5475 = vmatmul.mubr.f32.gmra.mrb[0].mxu0 %v5370
        %v5476 = vpop.f32.mrb[0].mxu0
        %v5477 = vadd.f32 %v5393, %v5476
        %v5478 = vpop.f32.mrb[0].mxu0
        %v5479 = vadd.f32 %v5393, %v5478
        %5480 = vmatprep.mubr.f32.mxu0 %v5375
        %5481 = vmatmul.mubr.f32.gmra.mrb[0].mxu0 %v5374
        %v5482 = vpop.f32.mrb[0].mxu0
        %v5483 = vadd.f32 %v5398, %v5482
        %v5484 = vpop.f32.mrb[0].mxu0
        %v5485 = vadd.f32 %v5398, %v5484
        %5486 = vmatprep.mubr.f32.mxu0 %v5379
        %5487 = vmatmul.mubr.f32.gmra.mrb[0].mxu0 %v5378
        %v5488 = vpop.f32.mrb[0].mxu0
        %v5489 = vadd.f32 %v5403, %v5488
        %v5490 = vpop.f32.mrb[0].mxu0
        %v5491 = vadd.f32 %v5403, %v5490
        %5492 = vmatprep.mubr.f32.mxu0 %v5383
        %5493 = vmatmul.mubr.f32.gmra.mrb[0].mxu0 %v5382
        %v5494 = vpop.f32.mrb[0].mxu0
        %v5495 = vadd.f32 %v5408, %v5494
        %v5496 = vpop.f32.mrb[0].mxu0
        %v5497 = vadd.f32 %v5408, %v5496
        %5498 = vdwg.mxu0
        %5499 = vmatprep.subr.mxu0 %v5307
        %5500 = vmatpush1.msra.mxu0 %v5306
        %5501 = vmatprep.subr.mxu0 %v5309
        %5502 = vmatpush1.msra.mxu0 %v5308
        %5503 = vmatprep.subr.mxu0 %v5311
        %5504 = vmatpush1.msra.mxu0 %v5310
        %5505 = vmatprep.subr.mxu0 %v5313
        %5506 = vmatpush1.msra.mxu0 %v5312
        %5507 = vmatprep.subr.mxu0 %v5315
        %5508 = vmatpush1.msra.mxu0 %v5314
        %5509 = vmatprep.subr.mxu0 %v5317
        %5510 = vmatpush1.msra.mxu0 %v5316
        %5511 = vmatprep.subr.mxu0 %v5319
        %5512 = vmatpush1.msra.mxu0 %v5318
        %5513 = vmatprep.subr.mxu0 %v5321
        %5514 = vmatpush1.msra.mxu0 %v5320
        %5515 = vmatprep.subr.mxu0 %v5323
        %5516 = vmatpush1.msra.mxu0 %v5322
        %5517 = vmatprep.subr.mxu0 %v5325
        %5518 = vmatpush1.msra.mxu0 %v5324
        %5519 = vmatprep.subr.mxu0 %v5327
        %5520 = vmatpush1.msra.mxu0 %v5326
        %5521 = vmatprep.subr.mxu0 %v5329
        %5522 = vmatpush1.msra.mxu0 %v5328
        %5523 = vmatprep.subr.mxu0 %v5331
        %5524 = vmatpush1.msra.mxu0 %v5330
        %5525 = vmatprep.subr.mxu0 %v5333
        %5526 = vmatpush1.msra.mxu0 %v5332
        %5527 = vmatprep.subr.mxu0 %v5335
        %5528 = vmatpush1.msra.mxu0 %v5334
        %5529 = vmatprep.subr.mxu0 %v5337
        %5530 = vmatpush1.msra.mxu0 %v5336
        %5531 = vmatprep.subr.mxu0 %v5339
        %5532 = vmatpush1.msra.mxu0 %v5338
        %5533 = vmatprep.subr.mxu0 %v5341
        %5534 = vmatpush1.msra.mxu0 %v5340
        %5535 = vmatprep.subr.mxu0 %v5343
        %5536 = vmatpush1.msra.mxu0 %v5342
        %5537 = vmatprep.subr.mxu0 %v5345
        %5538 = vmatpush1.msra.mxu0 %v5344
        %5539 = vmatprep.subr.mxu0 %v5347
        %5540 = vmatpush1.msra.mxu0 %v5346
        %5541 = vmatprep.subr.mxu0 %v5349
        %5542 = vmatpush1.msra.mxu0 %v5348
        %5543 = vmatprep.subr.mxu0 %v5351
        %5544 = vmatpush1.msra.mxu0 %v5350
        %5545 = vmatprep.subr.mxu0 %v5353
        %5546 = vmatpush1.msra.mxu0 %v5352
        %5547 = vmatprep.subr.mxu0 %v5355
        %5548 = vmatpush1.msra.mxu0 %v5354
        %5549 = vmatprep.subr.mxu0 %v5357
        %5550 = vmatpush1.msra.mxu0 %v5356
        %5551 = vmatprep.subr.mxu0 %v5359
        %5552 = vmatpush1.msra.mxu0 %v5358
        %5553 = vmatprep.subr.mxu0 %v5361
        %5554 = vmatpush1.msra.mxu0 %v5360
        %5555 = vmatprep.subr.mxu0 %v5363
        %5556 = vmatpush1.msra.mxu0 %v5362
        %5557 = vmatprep.subr.mxu0 %v5365
        %5558 = vmatpush1.msra.mxu0 %v5364
        %5559 = vmatprep.subr.mxu0 %v5367
        %5560 = vmatpush1.msra.mxu0 %v5366
        %5561 = vmatprep.subr.mxu0 %v5369
        %5562 = vmatpush1.msra.mxu0 %v5368
        %5563 = vmatprep.mubr.f32.mxu0 %v5373
        %5564 = vmatmul.mubr.f32.gmra.mrb[0].mxu0 %v5372
        %v5565 = vpop.f32.mrb[0].mxu0
        %v5566 = vadd.f32 %v5477, %v5565
        %v5567 = vpop.f32.mrb[0].mxu0
        %v5568 = vadd.f32 %v5479, %v5567
        %5569 = vmatprep.mubr.f32.mxu0 %v5377
        %5570 = vmatmul.mubr.f32.gmra.mrb[0].mxu0 %v5376
        %v5571 = vpop.f32.mrb[0].mxu0
        %v5572 = vadd.f32 %v5483, %v5571
        %v5573 = vpop.f32.mrb[0].mxu0
        %v5574 = vadd.f32 %v5485, %v5573
        %5575 = vmatprep.mubr.f32.mxu0 %v5381
        %5576 = vmatmul.mubr.f32.gmra.mrb[0].mxu0 %v5380
        %v5577 = vpop.f32.mrb[0].mxu0
        %v5578 = vadd.f32 %v5489, %v5577
        %v5579 = vpop.f32.mrb[0].mxu0
        %v5580 = vadd.f32 %v5491, %v5579
        %5581 = vmatprep.mubr.f32.mxu0 %v5385
        %5582 = vmatmul.mubr.f32.gmra.mrb[0].mxu0 %v5384
        %v5583 = vpop.f32.mrb[0].mxu0
        %v5584 = vadd.f32 %v5495, %v5583
        %v5585 = vpop.f32.mrb[0].mxu0
        %v5586 = vadd.f32 %v5497, %v5585
        %5587 = vdwg.mxu0
        %5588 = vst [vmem:[%s608] sm:$0xff] %v5566
        %5589 = vst [vmem:[%s608 + $0x8] sm:$0xff] %v5568
        %5590 = vst [vmem:[%s608 + $0x10] sm:$0xff] %v5572
        %5591 = vst [vmem:[%s608 + $0x18] sm:$0xff] %v5574
        %5592 = vst [vmem:[%s608 + $0x20] sm:$0xff] %v5578
        %5593 = vst [vmem:[%s608 + $0x28] sm:$0xff] %v5580
        %5594 = vst [vmem:[%s608 + $0x30] sm:$0xff] %v5584
        %5595 = vst [vmem:[%s608 + $0x38] sm:$0xff] %v5586
        %s5596 = sand.u32 %s444, 1
        %s5597 = scalar_lea.sflag [#allocation7], %s5596
        %s5598 = sand.u32 %s444, 1
        %s5599 = smul.addr %s5598, 64
        %s5600 = scalar_lea.vmem [#allocation6], %s5599
        // Predicated region
        $region97: #{tpu_custom_call.1} parent=91 // pred_check
          %p5601 = pneg %p454
        $region98: #{tpu_custom_call.1} parent=91 // pred_check_branch
          %5603 = sbr.rel (%p5601) target = $region100
        $region99: #{tpu_custom_call.1} parent=91 // pred_region
          %s5604 = smul.u32 2, %s37
          %s5606 = ssub.s32 1024, 1024
          %5607 = vsyncadd %s5597, %s5606
          %s5608 = smul.addr %s36, 8
          %s5609 = sadd.s32 %s5604, %s5608
          %s5610 = smul.addr %s5609, 128
          %s5611 = scalar_lea.hbm %s18, %s5610
          %s5612 = sshll.u32 %s5600, 4
          %s5613 = int_to_ptr.vmem [resolvable:$true] %s5612
          %5618 = dma.vmem_to_hbm [thread:$0]  %s5613, 1024, %s5611, %s5597, 256, 256, 16
        $region100: #{tpu_custom_call.1} parent=91 // pred_fallthru
          _
      $region92: #{tpu_custom_call.1} parent=5 // pred_fallthru
        _
      %p5619 = scmp.le.s32.totalorder 2, %s27
      // Predicated region
      $region101: #{tpu_custom_call.1} parent=5 // pred_check
        %p5620 = pneg %p5619
      $region102: #{tpu_custom_call.1} parent=5 // pred_check_branch
        %5622 = sbr.rel (%p5620) target = $region104
      $region103: #{tpu_custom_call.1} parent=5 // pred_region
        %s5623 = ssub.s32 %s27, 2
        // Predicated region
        $region105: #{tpu_custom_call.1} parent=103 // pred_check
          %p5624 = pneg %p460
        $region106: #{tpu_custom_call.1} parent=103 // pred_check_branch
          %5626 = sbr.rel (%p5624) target = $region108
        $region107: #{tpu_custom_call.1} parent=103 // pred_region
          %s5627 = sand.u32 %s445, 1
          %s5628 = scalar_lea.sflag [#allocation7], %s5627
          %s5629 = sand.u32 %s445, 1
          %s5630 = smul.addr %s5629, 64
          %s5631 = scalar_lea.vmem [#allocation6], %s5630
          %5632 = dma.done %s5628, 1024
        $region108: #{tpu_custom_call.1} parent=103 // pred_fallthru
          _
      $region104: #{tpu_custom_call.1} parent=5 // pred_fallthru
        _
    $region6: #{tpu_custom_call.1} parent=1 // loop_footer
      %s31 = sadd.s32 1, %s27
    $region7: #{tpu_custom_call.1} parent=1 // loop_footer_branch
      %26 = sbr.rel target = $region3
    $region8: #{tpu_custom_call.1} parent=1 // loop_exit
      _
    %5633 = vsyncpa [#allocation7], 1
    %s5634 = scalar_lea.sflag [#allocation7], 1
    %5635 = vsyncpa %s5634, 1

</llo_original>
